<compile_context>
chip_gen: v6e
topology: v6e:2x2x1
jax: 0.10.0
libtpu: 0.0.40
codegen_flags: <defaults>
</compile_context>

<pallas_src>
import jax
import jax.numpy as jnp
from jax.experimental import pallas as pl
from jax.experimental.pallas import tpu as pltpu

BN_EPS = 1e-5

_VMEM_LIMIT_CACHE = None


def _vmem_limit_bytes():
    """Per-generation scoped-VMEM budget: half of physical VMEM, capped at 64 MiB.

    v5e/v6e (128 MiB physical) -> 64 MiB; v7x (64 MiB physical) -> 32 MiB.
    Falls back to a safe 32 MiB if the query is unavailable.
    """
    global _VMEM_LIMIT_CACHE
    if _VMEM_LIMIT_CACHE is None:
        limit = 32 * 1024 * 1024
        try:
            cap = getattr(pltpu.get_tpu_info(), "vmem_capacity_bytes", None)
            if cap:
                limit = int(min(max(cap // 2, 16 * 1024 * 1024),
                                64 * 1024 * 1024))
        except Exception:
            pass
        _VMEM_LIMIT_CACHE = limit
    return _VMEM_LIMIT_CACHE


def _row_cap(cin, c16, in_bytes, out_bytes=2):
    """Max rows per M-tile so double-buffered x/out blocks + weights fit VMEM."""
    budget = _vmem_limit_bytes()
    weights = 2 * cin * c16 * 2                      # double-buffered bf16 weights
    per_row = 2 * (cin * in_bytes + c16 * out_bytes)  # double-buffered x + out row
    return max((budget - weights) // per_row, 8)


def _tile_rows(m, cap):
    """Largest power-of-two tile <= cap that divides m (falls back to full m)."""
    cap = int(max(min(cap, 4096), 8))
    t = 1 << (cap.bit_length() - 1)
    while t >= 8:
        if t <= m and m % t == 0:
            return t
        t //= 2
    return m


# ---------------------------------------------------------------------------
# Pallas kernels
# ---------------------------------------------------------------------------
def _matmul_kernel(x_ref, w_ref, o_ref):
    # x: [tm, Cin] -> bf16, w: [Cin, 16*Cout] bf16 -> o: [tm, 16*Cout] bf16
    # (f32 accumulation on the MXU, bf16 store to halve the dominant HBM stream)
    x = x_ref[...].astype(jnp.bfloat16)
    o_ref[...] = jnp.dot(x, w_ref[...],
                         preferred_element_type=jnp.float32).astype(o_ref.dtype)


def _bn_relu_matmul_kernel(x_ref, scale_ref, shift_ref, w_ref, o_ref):
    # Fused prologue: relu(x * scale + shift) in f32 (folded BatchNorm of the
    # previous layer), then bf16 matmul with f32 accumulation, bf16 store.
    x = x_ref[...].astype(jnp.float32)
    x = jnp.maximum(x * scale_ref[...] + shift_ref[...], 0.0)
    o_ref[...] = jnp.dot(x.astype(jnp.bfloat16), w_ref[...],
                         preferred_element_type=jnp.float32).astype(o_ref.dtype)


# ---------------------------------------------------------------------------
# pallas_call wrappers
# ---------------------------------------------------------------------------
def conv_matmul(x, wmat):
    """x: [M, Cin], wmat: [Cin, C16] bf16 -> [M, C16] bf16 (tiled over M)."""
    m, cin = x.shape
    c16 = wmat.shape[1]
    tm = _tile_rows(m, _row_cap(cin, c16, x.dtype.itemsize))
    return pl.pallas_call(
        _matmul_kernel,
        out_shape=jax.ShapeDtypeStruct((m, c16), jnp.bfloat16),
        grid_spec=pltpu.PrefetchScalarGridSpec(
            num_scalar_prefetch=0,
            grid=(m // tm,),
            in_specs=[
                pl.BlockSpec((tm, cin), lambda i: (i, 0)),
                pl.BlockSpec((cin, c16), lambda i: (0, 0)),   # resident weights
            ],
            out_specs=pl.BlockSpec((tm, c16), lambda i: (i, 0)),
        ),
        compiler_params=pltpu.CompilerParams(
            dimension_semantics=("parallel",),
            vmem_limit_bytes=_vmem_limit_bytes()),
    )(x, wmat)


def bn_relu_conv_matmul(x, scale, shift, wmat):
    """relu(x*scale + shift) @ wmat, tiled over rows of x.  Output bf16."""
    m, cin = x.shape
    c16 = wmat.shape[1]
    tm = _tile_rows(m, _row_cap(cin, c16, x.dtype.itemsize))
    return pl.pallas_call(
        _bn_relu_matmul_kernel,
        out_shape=jax.ShapeDtypeStruct((m, c16), jnp.bfloat16),
        grid_spec=pltpu.PrefetchScalarGridSpec(
            num_scalar_prefetch=0,
            grid=(m // tm,),
            in_specs=[
                pl.BlockSpec((tm, cin), lambda i: (i, 0)),
                pl.BlockSpec((1, cin), lambda i: (0, 0)),
                pl.BlockSpec((1, cin), lambda i: (0, 0)),
                pl.BlockSpec((cin, c16), lambda i: (0, 0)),   # resident weights
            ],
            out_specs=pl.BlockSpec((tm, c16), lambda i: (i, 0)),
        ),
        compiler_params=pltpu.CompilerParams(
            dimension_semantics=("parallel",),
            vmem_limit_bytes=_vmem_limit_bytes()),
    )(x, scale, shift, wmat)


# ---------------------------------------------------------------------------
# JAX glue (col2im / stats / packing are cheap memory-bound ops left to XLA
# so they fuse with their producers — no extra full-tensor HBM round trips)
# ---------------------------------------------------------------------------
def _wmat(w):
    """PyTorch ConvTranspose2d weight [Cin, Cout, 4, 4] -> [Cin, 16*Cout] with
    column ordering (kh, kw, cout); cast to bf16 for the MXU."""
    cin, cout, k, _ = w.shape
    return jnp.transpose(w, (0, 2, 3, 1)).reshape(cin, k * k * cout).astype(
        jnp.bfloat16)


def pack_params(params):
    """One-time weight packing (hoisted out of the jitted forward).  The final
    layer's Cout is zero-padded to a multiple of 8 so 16*Cout is 128-lane dense."""
    packed = {}
    for i in range(5):
        w = params[f"w{i}"]
        if i == 4:
            pad = (-w.shape[1]) % 8
            if pad:
                w = jnp.pad(w, ((0, 0), (0, pad), (0, 0), (0, 0)))
        packed[f"wm{i}"] = _wmat(w)
        if i < 4:
            packed[f"g{i}"] = params[f"g{i}"]
            packed[f"b{i}"] = params[f"b{i}"]
    return packed


def _col2im_stride2(p6):
    """Overlap-add scatter for ConvTranspose2d(K=4, stride=2, pad=1).

    p6: [N, H, W, 4(kh), 4(kw), C]; input pixel (ih, iw) scatters tap (kh, kw)
    to output position (2*ih - 1 + kh, 2*iw - 1 + kw).  Returns [N, 2H, 2W, C].
    Runs in bf16 (BN of the next layer re-normalizes; final layer feeds Tanh).
    """
    n, h, w, _, _, c = p6.shape
    a0, a1, a2, a3 = (p6[:, :, :, k] for k in range(4))        # [N, H, W, 4, C]
    zr = jnp.zeros_like(a0[:, :1])
    even_h = a1 + jnp.concatenate([zr, a3[:, :-1]], axis=1)    # output rows 2m
    odd_h = a2 + jnp.concatenate([a0[:, 1:], zr], axis=1)      # output rows 2m+1
    b = jnp.stack([even_h, odd_h], axis=2).reshape(n, 2 * h, w, 4, c)
    b0, b1, b2, b3 = (b[:, :, :, k] for k in range(4))         # [N, 2H, W, C]
    zc = jnp.zeros_like(b0[:, :, :1])
    even_w = b1 + jnp.concatenate([zc, b3[:, :, :-1]], axis=2)
    odd_w = b2 + jnp.concatenate([b0[:, :, 1:], zc], axis=2)
    return jnp.stack([even_w, odd_w], axis=3).reshape(n, 2 * h, 2 * w, c)


def _bn_scale_shift(y, gamma, beta):
    """Training-mode BatchNorm folded to per-channel (scale, shift).

    y: [N, H, W, C] (bf16).  Single-pass sum / sumsq with f32 accumulation;
    XLA fuses these reductions with the col2im producer, so no extra HBM read.
    """
    m = y.shape[0] * y.shape[1] * y.shape[2]
    s = jnp.sum(y, axis=(0, 1, 2), dtype=jnp.float32)
    ss = jnp.sum(jnp.square(y.astype(jnp.float32)), axis=(0, 1, 2))
    mean = s / m
    var = jnp.maximum(ss / m - mean * mean, 0.0)      # biased var (PyTorch)
    invstd = jax.lax.rsqrt(var + BN_EPS)
    scale = gamma * invstd
    shift = beta - mean * scale
    return scale[None, :], shift[None, :]


def generator_forward(z, packed, nc):
    """z: [N, nz, 1, 1] (NCHW, like PyTorch).  Returns [N, nc, 64, 64] f32."""
    n, nz = z.shape[0], z.shape[1]

    # Layer 0: ConvTranspose2d(nz, ngf*8, 4, 1, 0) on a 1x1 input is a pure
    # matmul; its [N, 16*C0] output reshapes straight to NHWC [N, 4, 4, C0].
    wm0 = packed["wm0"]
    c0 = wm0.shape[1] // 16
    y = conv_matmul(z.reshape(n, nz), wm0).reshape(n, 4, 4, c0)
    h = w = 4

    # Layers 1-4: fused (BN+ReLU of previous raw output) -> scatter-form
    # ConvTranspose2d(K=4, s=2, p=1) matmul -> overlap-add (bf16 end-to-end).
    for i in range(1, 5):
        wm = packed[f"wm{i}"]
        cin = wm.shape[0]
        cout = wm.shape[1] // 16
        scale, shift = _bn_scale_shift(y, packed[f"g{i-1}"], packed[f"b{i-1}"])
        x_flat = y.reshape(n * h * w, cin)
        p = bn_relu_conv_matmul(x_flat, scale, shift, wm)
        y = _col2im_stride2(p.reshape(n, h, w, 4, 4, cout))
        h, w = 2 * h, 2 * w

    # Drop lane-padding channels, apply Tanh in f32, NHWC -> NCHW (XLA fuses
    # slice + tanh + transpose into the col2im producer's consumers).
    y = y[..., :nc]
    out = jnp.tanh(y.astype(jnp.float32))
    return jnp.transpose(out, (0, 3, 1, 2))


# ---------------------------------------------------------------------------
# Pure-JAX reference (lax.conv_general_dilated) and init
# ---------------------------------------------------------------------------
def reference_forward(z, params):
    x = jnp.transpose(z, (0, 2, 3, 1))                    # NHWC
    cfg = [(1, 0), (2, 1), (2, 1), (2, 1), (2, 1)]
    for i, (s, p) in enumerate(cfg):
        wt = params[f"w{i}"]
        k = wt.shape[2]
        rhs = jnp.transpose(wt[:, :, ::-1, ::-1], (2, 3, 0, 1))   # HWIO
        x = jax.lax.conv_general_dilated(
            x, rhs, window_strides=(1, 1),
            padding=[(k - 1 - p, k - 1 - p)] * 2,
            lhs_dilation=(s, s),
            dimension_numbers=("NHWC", "HWIO", "NHWC"),
            precision=jax.lax.Precision.HIGHEST)
        if i < 4:
            mean = jnp.mean(x, axis=(0, 1, 2))
            var = jnp.mean(jnp.square(x - mean), axis=(0, 1, 2))
            x = (x - mean) * jax.lax.rsqrt(var + BN_EPS)
            x = jnp.maximum(x * params[f"g{i}"] + params[f"b{i}"], 0.0)
        else:
            x = jnp.tanh(x)
    return jnp.transpose(x, (0, 3, 1, 2))


def init_params(key, nz, ngf, nc):
    """DCGAN-style init: conv weights ~ N(0, 0.02), BN gamma=1, beta=0."""
    channels = [nz, ngf * 8, ngf * 4, ngf * 2, ngf, nc]
    params = {}
    for i in range(5):
        key, sub = jax.random.split(key)
        cin, cout = channels[i], channels[i + 1]
        params[f"w{i}"] = 0.02 * jax.random.normal(sub, (cin, cout, 4, 4),
                                                   dtype=jnp.float32)
        if i < 4:
            params[f"g{i}"] = jnp.ones((cout,), jnp.float32)
            params[f"b{i}"] = jnp.zeros((cout,), jnp.float32)
    return params


if __name__ == "__main__":
    # Small shapes: batch=2, nz=16, ngf=8, nc=3 -> output (2, 3, 64, 64)
    N, NZ, NGF, NC = 2, 16, 8, 3

    key = jax.random.PRNGKey(0)
    key, kz = jax.random.split(key)
    z = jax.random.normal(kz, (N, NZ, 1, 1), dtype=jnp.float32)   # NCHW
    params = init_params(key, NZ, NGF, NC)
    packed = pack_params(params)        # one-time weight packing (outside jit)

    fwd = jax.jit(generator_forward, static_argnums=(2,))
    out = jax.block_until_ready(fwd(z, packed, NC))

    assert out.shape == (N, NC, 64, 64), out.shape
    assert out.dtype == jnp.float32
    assert bool(jnp.all(jnp.isfinite(out)))
    assert bool(jnp.all(jnp.abs(out) <= 1.0))                     # tanh range

    # Numerical check against a pure-JAX transposed-conv reference.
    # (bf16 MXU operands AND bf16-stored intermediates -> loose tolerance; the
    # per-layer BatchNorm re-normalizes, so errors stay bounded.)
    ref = jax.block_until_ready(jax.jit(reference_forward)(z, params))
    max_err = float(jnp.max(jnp.abs(out - ref)))
    assert max_err < 0.15, f"mismatch vs reference: max abs err = {max_err}"

    print("KERNEL_OK")
</pallas_src>

<mosaic_0001>
module attributes {stable_mosaic.version = 11 : i64} {
  func.func @_matmul_kernel(%arg0: i32, %arg1: memref<2x16xf32, #tpu.memory_space<vmem>>, %arg2: memref<16x1024xbf16, #tpu.memory_space<vmem>>, %arg3: memref<2x1024xbf16, #tpu.memory_space<vmem>>) attributes {dimension_semantics = [#tpu.dimension_semantics<parallel>], iteration_bounds = array<i64: 1>, scalar_prefetch = 0 : i64, scratch_operands = 0 : i64, tpu.core_type = #tpu.core_type<tc>, window_params = [{transform_indices = @transform_0, window_bounds = array<i64: 2, 16>}, {pipeline_mode = #tpu.pipeline_mode<synchronous>, transform_indices = @transform_1, window_bounds = array<i64: 16, 1024>}, {transform_indices = @transform_2, window_bounds = array<i64: 2, 1024>}]} {
    %c0 = arith.constant 0 : index
    %c0_0 = arith.constant 0 : index
    %0 = vector.load %arg1[%c0, %c0_0] : memref<2x16xf32, #tpu.memory_space<vmem>>, vector<2x16xf32>
    %1 = arith.truncf %0 : vector<2x16xf32> to vector<2x16xbf16>
    %c0_1 = arith.constant 0 : index
    %c0_2 = arith.constant 0 : index
    %2 = vector.load %arg2[%c0_1, %c0_2] : memref<16x1024xbf16, #tpu.memory_space<vmem>>, vector<16x1024xbf16>
    %cst = arith.constant dense<0.000000e+00> : vector<2x1024xf32>
    %3 = tpu.matmul %1, %2, %cst {dimension_numbers = #tpu.dot_dimension_numbers<[1], [0], [0], [1], [0, 0, 1, 1], [], []>} : vector<2x16xbf16>, vector<16x1024xbf16>, vector<2x1024xf32> -> vector<2x1024xf32>
    %4 = arith.truncf %3 : vector<2x1024xf32> to vector<2x1024xbf16>
    %c0_3 = arith.constant 0 : index
    %c0_4 = arith.constant 0 : index
    %5 = vector.load %arg3[%c0_3, %c0_4] : memref<2x1024xbf16, #tpu.memory_space<vmem>>, vector<2x1024xbf16>
    tpu.vector_store %arg3[%c0_3, %c0_4], %4 {strides = array<i32>} : memref<2x1024xbf16, #tpu.memory_space<vmem>>, vector<2x1024xbf16>,
    return
  }
  func.func @transform_0(%arg0: i32) -> (i32, i32) {
    %c0_i32 = arith.constant 0 : i32
    %c0_i32_0 = arith.constant 0 : i32
    return %arg0, %c0_i32 : i32, i32
  }
  func.func @transform_1(%arg0: i32) -> (i32, i32) {
    %c0_i32 = arith.constant 0 : i32
    %c0_i32_0 = arith.constant 0 : i32
    %c0_i32_1 = arith.constant 0 : i32
    return %c0_i32, %c0_i32_0 : i32, i32
  }
  func.func @transform_2(%arg0: i32) -> (i32, i32) {
    %c0_i32 = arith.constant 0 : i32
    %c0_i32_0 = arith.constant 0 : i32
    return %arg0, %c0_i32 : i32, i32
  }
}

module attributes {stable_mosaic.version = 11 : i64} {
  func.func @_bn_relu_matmul_kernel(%arg0: i32, %arg1: memref<32x64xbf16, #tpu.memory_space<vmem>>, %arg2: memref<1x64xf32, #tpu.memory_space<vmem>>, %arg3: memref<1x64xf32, #tpu.memory_space<vmem>>, %arg4: memref<64x512xbf16, #tpu.memory_space<vmem>>, %arg5: memref<32x512xbf16, #tpu.memory_space<vmem>>) attributes {dimension_semantics = [#tpu.dimension_semantics<parallel>], iteration_bounds = array<i64: 1>, scalar_prefetch = 0 : i64, scratch_operands = 0 : i64, tpu.core_type = #tpu.core_type<tc>, window_params = [{transform_indices = @transform_0, window_bounds = array<i64: 32, 64>}, {pipeline_mode = #tpu.pipeline_mode<synchronous>, transform_indices = @transform_1, window_bounds = array<i64: 1, 64>}, {pipeline_mode = #tpu.pipeline_mode<synchronous>, transform_indices = @transform_2, window_bounds = array<i64: 1, 64>}, {pipeline_mode = #tpu.pipeline_mode<synchronous>, transform_indices = @transform_3, window_bounds = array<i64: 64, 512>}, {transform_indices = @transform_4, window_bounds = array<i64: 32, 512>}]} {
    %c0 = arith.constant 0 : index
    %c0_0 = arith.constant 0 : index
    %0 = vector.load %arg1[%c0, %c0_0] : memref<32x64xbf16, #tpu.memory_space<vmem>>, vector<32x64xbf16>
    %1 = arith.extf %0 : vector<32x64xbf16> to vector<32x64xf32>
    %c0_1 = arith.constant 0 : index
    %c0_2 = arith.constant 0 : index
    %2 = vector.load %arg2[%c0_1, %c0_2] : memref<1x64xf32, #tpu.memory_space<vmem>>, vector<1x64xf32>
    %3 = vector.broadcast %2 : vector<1x64xf32> to vector<32x64xf32>
    %4 = arith.mulf %1, %3 : vector<32x64xf32>
    %c0_3 = arith.constant 0 : index
    %c0_4 = arith.constant 0 : index
    %5 = vector.load %arg3[%c0_3, %c0_4] : memref<1x64xf32, #tpu.memory_space<vmem>>, vector<1x64xf32>
    %6 = vector.broadcast %5 : vector<1x64xf32> to vector<32x64xf32>
    %7 = arith.addf %4, %6 : vector<32x64xf32>
    %cst = arith.constant 0.000000e+00 : f32
    %8 = vector.broadcast %cst : f32 to vector<32x64xf32>
    %9 = arith.maximumf %7, %8 : vector<32x64xf32>
    %10 = arith.truncf %9 : vector<32x64xf32> to vector<32x64xbf16>
    %c0_5 = arith.constant 0 : index
    %c0_6 = arith.constant 0 : index
    %11 = vector.load %arg4[%c0_5, %c0_6] : memref<64x512xbf16, #tpu.memory_space<vmem>>, vector<64x512xbf16>
    %cst_7 = arith.constant dense<0.000000e+00> : vector<32x512xf32>
    %12 = tpu.matmul %10, %11, %cst_7 {dimension_numbers = #tpu.dot_dimension_numbers<[1], [0], [0], [1], [0, 0, 1, 1], [], []>} : vector<32x64xbf16>, vector<64x512xbf16>, vector<32x512xf32> -> vector<32x512xf32>
    %13 = arith.truncf %12 : vector<32x512xf32> to vector<32x512xbf16>
    %c0_8 = arith.constant 0 : index
    %c0_9 = arith.constant 0 : index
    %14 = vector.load %arg5[%c0_8, %c0_9] : memref<32x512xbf16, #tpu.memory_space<vmem>>, vector<32x512xbf16>
    tpu.vector_store %arg5[%c0_8, %c0_9], %13 {strides = array<i32>} : memref<32x512xbf16, #tpu.memory_space<vmem>>, vector<32x512xbf16>,
    return
  }
  func.func @transform_0(%arg0: i32) -> (i32, i32) {
    %c0_i32 = arith.constant 0 : i32
    %c0_i32_0 = arith.constant 0 : i32
    return %arg0, %c0_i32 : i32, i32
  }
  func.func @transform_1(%arg0: i32) -> (i32, i32) {
    %c0_i32 = arith.constant 0 : i32
    %c0_i32_0 = arith.constant 0 : i32
    %c0_i32_1 = arith.constant 0 : i32
    return %c0_i32, %c0_i32_0 : i32, i32
  }
  func.func @transform_2(%arg0: i32) -> (i32, i32) {
    %c0_i32 = arith.constant 0 : i32
    %c0_i32_0 = arith.constant 0 : i32
    %c0_i32_1 = arith.constant 0 : i32
    return %c0_i32, %c0_i32_0 : i32, i32
  }
  func.func @transform_3(%arg0: i32) -> (i32, i32) {
    %c0_i32 = arith.constant 0 : i32
    %c0_i32_0 = arith.constant 0 : i32
    %c0_i32_1 = arith.constant 0 : i32
    return %c0_i32, %c0_i32_0 : i32, i32
  }
  func.func @transform_4(%arg0: i32) -> (i32, i32) {
    %c0_i32 = arith.constant 0 : i32
    %c0_i32_0 = arith.constant 0 : i32
    return %arg0, %c0_i32 : i32, i32
  }
}

module attributes {stable_mosaic.version = 11 : i64} {
  func.func @_bn_relu_matmul_kernel(%arg0: i32, %arg1: memref<128x32xbf16, #tpu.memory_space<vmem>>, %arg2: memref<1x32xf32, #tpu.memory_space<vmem>>, %arg3: memref<1x32xf32, #tpu.memory_space<vmem>>, %arg4: memref<32x256xbf16, #tpu.memory_space<vmem>>, %arg5: memref<128x256xbf16, #tpu.memory_space<vmem>>) attributes {dimension_semantics = [#tpu.dimension_semantics<parallel>], iteration_bounds = array<i64: 1>, scalar_prefetch = 0 : i64, scratch_operands = 0 : i64, tpu.core_type = #tpu.core_type<tc>, window_params = [{transform_indices = @transform_0, window_bounds = array<i64: 128, 32>}, {pipeline_mode = #tpu.pipeline_mode<synchronous>, transform_indices = @transform_1, window_bounds = array<i64: 1, 32>}, {pipeline_mode = #tpu.pipeline_mode<synchronous>, transform_indices = @transform_2, window_bounds = array<i64: 1, 32>}, {pipeline_mode = #tpu.pipeline_mode<synchronous>, transform_indices = @transform_3, window_bounds = array<i64: 32, 256>}, {transform_indices = @transform_4, window_bounds = array<i64: 128, 256>}]} {
    %c0 = arith.constant 0 : index
    %c0_0 = arith.constant 0 : index
    %0 = vector.load %arg1[%c0, %c0_0] : memref<128x32xbf16, #tpu.memory_space<vmem>>, vector<128x32xbf16>
    %1 = arith.extf %0 : vector<128x32xbf16> to vector<128x32xf32>
    %c0_1 = arith.constant 0 : index
    %c0_2 = arith.constant 0 : index
    %2 = vector.load %arg2[%c0_1, %c0_2] : memref<1x32xf32, #tpu.memory_space<vmem>>, vector<1x32xf32>
    %3 = vector.broadcast %2 : vector<1x32xf32> to vector<128x32xf32>
    %4 = arith.mulf %1, %3 : vector<128x32xf32>
    %c0_3 = arith.constant 0 : index
    %c0_4 = arith.constant 0 : index
    %5 = vector.load %arg3[%c0_3, %c0_4] : memref<1x32xf32, #tpu.memory_space<vmem>>, vector<1x32xf32>
    %6 = vector.broadcast %5 : vector<1x32xf32> to vector<128x32xf32>
    %7 = arith.addf %4, %6 : vector<128x32xf32>
    %cst = arith.constant 0.000000e+00 : f32
    %8 = vector.broadcast %cst : f32 to vector<128x32xf32>
    %9 = arith.maximumf %7, %8 : vector<128x32xf32>
    %10 = arith.truncf %9 : vector<128x32xf32> to vector<128x32xbf16>
    %c0_5 = arith.constant 0 : index
    %c0_6 = arith.constant 0 : index
    %11 = vector.load %arg4[%c0_5, %c0_6] : memref<32x256xbf16, #tpu.memory_space<vmem>>, vector<32x256xbf16>
    %cst_7 = arith.constant dense<0.000000e+00> : vector<128x256xf32>
    %12 = tpu.matmul %10, %11, %cst_7 {dimension_numbers = #tpu.dot_dimension_numbers<[1], [0], [0], [1], [0, 0, 1, 1], [], []>} : vector<128x32xbf16>, vector<32x256xbf16>, vector<128x256xf32> -> vector<128x256xf32>
    %13 = arith.truncf %12 : vector<128x256xf32> to vector<128x256xbf16>
    %c0_8 = arith.constant 0 : index
    %c0_9 = arith.constant 0 : index
    %14 = vector.load %arg5[%c0_8, %c0_9] : memref<128x256xbf16, #tpu.memory_space<vmem>>, vector<128x256xbf16>
    tpu.vector_store %arg5[%c0_8, %c0_9], %13 {strides = array<i32>} : memref<128x256xbf16, #tpu.memory_space<vmem>>, vector<128x256xbf16>,
    return
  }
  func.func @transform_0(%arg0: i32) -> (i32, i32) {
    %c0_i32 = arith.constant 0 : i32
    %c0_i32_0 = arith.constant 0 : i32
    return %arg0, %c0_i32 : i32, i32
  }
  func.func @transform_1(%arg0: i32) -> (i32, i32) {
    %c0_i32 = arith.constant 0 : i32
    %c0_i32_0 = arith.constant 0 : i32
    %c0_i32_1 = arith.constant 0 : i32
    return %c0_i32, %c0_i32_0 : i32, i32
  }
  func.func @transform_2(%arg0: i32) -> (i32, i32) {
    %c0_i32 = arith.constant 0 : i32
    %c0_i32_0 = arith.constant 0 : i32
    %c0_i32_1 = arith.constant 0 : i32
    return %c0_i32, %c0_i32_0 : i32, i32
  }
  func.func @transform_3(%arg0: i32) -> (i32, i32) {
    %c0_i32 = arith.constant 0 : i32
    %c0_i32_0 = arith.constant 0 : i32
    %c0_i32_1 = arith.constant 0 : i32
    return %c0_i32, %c0_i32_0 : i32, i32
  }
  func.func @transform_4(%arg0: i32) -> (i32, i32) {
    %c0_i32 = arith.constant 0 : i32
    %c0_i32_0 = arith.constant 0 : i32
    return %arg0, %c0_i32 : i32, i32
  }
}

module attributes {stable_mosaic.version = 11 : i64} {
  func.func @_bn_relu_matmul_kernel(%arg0: i32, %arg1: memref<512x16xbf16, #tpu.memory_space<vmem>>, %arg2: memref<1x16xf32, #tpu.memory_space<vmem>>, %arg3: memref<1x16xf32, #tpu.memory_space<vmem>>, %arg4: memref<16x128xbf16, #tpu.memory_space<vmem>>, %arg5: memref<512x128xbf16, #tpu.memory_space<vmem>>) attributes {dimension_semantics = [#tpu.dimension_semantics<parallel>], iteration_bounds = array<i64: 1>, scalar_prefetch = 0 : i64, scratch_operands = 0 : i64, tpu.core_type = #tpu.core_type<tc>, window_params = [{transform_indices = @transform_0, window_bounds = array<i64: 512, 16>}, {pipeline_mode = #tpu.pipeline_mode<synchronous>, transform_indices = @transform_1, window_bounds = array<i64: 1, 16>}, {pipeline_mode = #tpu.pipeline_mode<synchronous>, transform_indices = @transform_2, window_bounds = array<i64: 1, 16>}, {pipeline_mode = #tpu.pipeline_mode<synchronous>, transform_indices = @transform_3, window_bounds = array<i64: 16, 128>}, {transform_indices = @transform_4, window_bounds = array<i64: 512, 128>}]} {
    %c0 = arith.constant 0 : index
    %c0_0 = arith.constant 0 : index
    %0 = vector.load %arg1[%c0, %c0_0] : memref<512x16xbf16, #tpu.memory_space<vmem>>, vector<512x16xbf16>
    %1 = arith.extf %0 : vector<512x16xbf16> to vector<512x16xf32>
    %c0_1 = arith.constant 0 : index
    %c0_2 = arith.constant 0 : index
    %2 = vector.load %arg2[%c0_1, %c0_2] : memref<1x16xf32, #tpu.memory_space<vmem>>, vector<1x16xf32>
    %3 = vector.broadcast %2 : vector<1x16xf32> to vector<512x16xf32>
    %4 = arith.mulf %1, %3 : vector<512x16xf32>
    %c0_3 = arith.constant 0 : index
    %c0_4 = arith.constant 0 : index
    %5 = vector.load %arg3[%c0_3, %c0_4] : memref<1x16xf32, #tpu.memory_space<vmem>>, vector<1x16xf32>
    %6 = vector.broadcast %5 : vector<1x16xf32> to vector<512x16xf32>
    %7 = arith.addf %4, %6 : vector<512x16xf32>
    %cst = arith.constant 0.000000e+00 : f32
    %8 = vector.broadcast %cst : f32 to vector<512x16xf32>
    %9 = arith.maximumf %7, %8 : vector<512x16xf32>
    %10 = arith.truncf %9 : vector<512x16xf32> to vector<512x16xbf16>
    %c0_5 = arith.constant 0 : index
    %c0_6 = arith.constant 0 : index
    %11 = vector.load %arg4[%c0_5, %c0_6] : memref<16x128xbf16, #tpu.memory_space<vmem>>, vector<16x128xbf16>
    %cst_7 = arith.constant dense<0.000000e+00> : vector<512x128xf32>
    %12 = tpu.matmul %10, %11, %cst_7 {dimension_numbers = #tpu.dot_dimension_numbers<[1], [0], [0], [1], [0, 0, 1, 1], [], []>} : vector<512x16xbf16>, vector<16x128xbf16>, vector<512x128xf32> -> vector<512x128xf32>
    %13 = arith.truncf %12 : vector<512x128xf32> to vector<512x128xbf16>
    %c0_8 = arith.constant 0 : index
    %c0_9 = arith.constant 0 : index
    %14 = vector.load %arg5[%c0_8, %c0_9] : memref<512x128xbf16, #tpu.memory_space<vmem>>, vector<512x128xbf16>
    tpu.vector_store %arg5[%c0_8, %c0_9], %13 {strides = array<i32>} : memref<512x128xbf16, #tpu.memory_space<vmem>>, vector<512x128xbf16>,
    return
  }
  func.func @transform_0(%arg0: i32) -> (i32, i32) {
    %c0_i32 = arith.constant 0 : i32
    %c0_i32_0 = arith.constant 0 : i32
    return %arg0, %c0_i32 : i32, i32
  }
  func.func @transform_1(%arg0: i32) -> (i32, i32) {
    %c0_i32 = arith.constant 0 : i32
    %c0_i32_0 = arith.constant 0 : i32
    %c0_i32_1 = arith.constant 0 : i32
    return %c0_i32, %c0_i32_0 : i32, i32
  }
  func.func @transform_2(%arg0: i32) -> (i32, i32) {
    %c0_i32 = arith.constant 0 : i32
    %c0_i32_0 = arith.constant 0 : i32
    %c0_i32_1 = arith.constant 0 : i32
    return %c0_i32, %c0_i32_0 : i32, i32
  }
  func.func @transform_3(%arg0: i32) -> (i32, i32) {
    %c0_i32 = arith.constant 0 : i32
    %c0_i32_0 = arith.constant 0 : i32
    %c0_i32_1 = arith.constant 0 : i32
    return %c0_i32, %c0_i32_0 : i32, i32
  }
  func.func @transform_4(%arg0: i32) -> (i32, i32) {
    %c0_i32 = arith.constant 0 : i32
    %c0_i32_0 = arith.constant 0 : i32
    return %arg0, %c0_i32 : i32, i32
  }
}

module attributes {stable_mosaic.version = 11 : i64} {
  func.func @_bn_relu_matmul_kernel(%arg0: i32, %arg1: memref<2048x8xbf16, #tpu.memory_space<vmem>>, %arg2: memref<1x8xf32, #tpu.memory_space<vmem>>, %arg3: memref<1x8xf32, #tpu.memory_space<vmem>>, %arg4: memref<8x128xbf16, #tpu.memory_space<vmem>>, %arg5: memref<2048x128xbf16, #tpu.memory_space<vmem>>) attributes {dimension_semantics = [#tpu.dimension_semantics<parallel>], iteration_bounds = array<i64: 1>, scalar_prefetch = 0 : i64, scratch_operands = 0 : i64, tpu.core_type = #tpu.core_type<tc>, window_params = [{transform_indices = @transform_0, window_bounds = array<i64: 2048, 8>}, {pipeline_mode = #tpu.pipeline_mode<synchronous>, transform_indices = @transform_1, window_bounds = array<i64: 1, 8>}, {pipeline_mode = #tpu.pipeline_mode<synchronous>, transform_indices = @transform_2, window_bounds = array<i64: 1, 8>}, {pipeline_mode = #tpu.pipeline_mode<synchronous>, transform_indices = @transform_3, window_bounds = array<i64: 8, 128>}, {transform_indices = @transform_4, window_bounds = array<i64: 2048, 128>}]} {
    %c0 = arith.constant 0 : index
    %c0_0 = arith.constant 0 : index
    %0 = vector.load %arg1[%c0, %c0_0] : memref<2048x8xbf16, #tpu.memory_space<vmem>>, vector<2048x8xbf16>
    %1 = arith.extf %0 : vector<2048x8xbf16> to vector<2048x8xf32>
    %c0_1 = arith.constant 0 : index
    %c0_2 = arith.constant 0 : index
    %2 = vector.load %arg2[%c0_1, %c0_2] : memref<1x8xf32, #tpu.memory_space<vmem>>, vector<1x8xf32>
    %3 = vector.broadcast %2 : vector<1x8xf32> to vector<2048x8xf32>
    %4 = arith.mulf %1, %3 : vector<2048x8xf32>
    %c0_3 = arith.constant 0 : index
    %c0_4 = arith.constant 0 : index
    %5 = vector.load %arg3[%c0_3, %c0_4] : memref<1x8xf32, #tpu.memory_space<vmem>>, vector<1x8xf32>
    %6 = vector.broadcast %5 : vector<1x8xf32> to vector<2048x8xf32>
    %7 = arith.addf %4, %6 : vector<2048x8xf32>
    %cst = arith.constant 0.000000e+00 : f32
    %8 = vector.broadcast %cst : f32 to vector<2048x8xf32>
    %9 = arith.maximumf %7, %8 : vector<2048x8xf32>
    %10 = arith.truncf %9 : vector<2048x8xf32> to vector<2048x8xbf16>
    %c0_5 = arith.constant 0 : index
    %c0_6 = arith.constant 0 : index
    %11 = vector.load %arg4[%c0_5, %c0_6] : memref<8x128xbf16, #tpu.memory_space<vmem>>, vector<8x128xbf16>
    %cst_7 = arith.constant dense<0.000000e+00> : vector<2048x128xf32>
    %12 = tpu.matmul %10, %11, %cst_7 {dimension_numbers = #tpu.dot_dimension_numbers<[1], [0], [0], [1], [0, 0, 1, 1], [], []>} : vector<2048x8xbf16>, vector<8x128xbf16>, vector<2048x128xf32> -> vector<2048x128xf32>
    %13 = arith.truncf %12 : vector<2048x128xf32> to vector<2048x128xbf16>
    %c0_8 = arith.constant 0 : index
    %c0_9 = arith.constant 0 : index
    %14 = vector.load %arg5[%c0_8, %c0_9] : memref<2048x128xbf16, #tpu.memory_space<vmem>>, vector<2048x128xbf16>
    tpu.vector_store %arg5[%c0_8, %c0_9], %13 {strides = array<i32>} : memref<2048x128xbf16, #tpu.memory_space<vmem>>, vector<2048x128xbf16>,
    return
  }
  func.func @transform_0(%arg0: i32) -> (i32, i32) {
    %c0_i32 = arith.constant 0 : i32
    %c0_i32_0 = arith.constant 0 : i32
    return %arg0, %c0_i32 : i32, i32
  }
  func.func @transform_1(%arg0: i32) -> (i32, i32) {
    %c0_i32 = arith.constant 0 : i32
    %c0_i32_0 = arith.constant 0 : i32
    %c0_i32_1 = arith.constant 0 : i32
    return %c0_i32, %c0_i32_0 : i32, i32
  }
  func.func @transform_2(%arg0: i32) -> (i32, i32) {
    %c0_i32 = arith.constant 0 : i32
    %c0_i32_0 = arith.constant 0 : i32
    %c0_i32_1 = arith.constant 0 : i32
    return %c0_i32, %c0_i32_0 : i32, i32
  }
  func.func @transform_3(%arg0: i32) -> (i32, i32) {
    %c0_i32 = arith.constant 0 : i32
    %c0_i32_0 = arith.constant 0 : i32
    %c0_i32_1 = arith.constant 0 : i32
    return %c0_i32, %c0_i32_0 : i32, i32
  }
  func.func @transform_4(%arg0: i32) -> (i32, i32) {
    %c0_i32 = arith.constant 0 : i32
    %c0_i32_0 = arith.constant 0 : i32
    return %arg0, %c0_i32 : i32, i32
  }
}

</mosaic_0001>

<llo_original>
// kernel: generator_forward.5
$region0: #{generator_forward.5}
  #allocation0 [shape = 'u32[]', space=smem, size = 0x4, offset = 0x4, fixed_abs, tag = 'smem constant byte address 0x4 - core index']
  #allocation1 [shape = 'u32[144,128]{1,0:T(1,128)}', space=vmem, size = 0x12000, scoped, tag = 'internal scratch']
  %s0 = inlined_call_operand.hbm [shape: f32[2,16], index: 0, kind: input, shape index: {}]
  %s1 = inlined_call_operand.hbm [shape: bf16[16,1024], index: 1, kind: input, shape index: {}]
  %s2 = inlined_call_operand.vmem [shape: bf16[2,1024], index: 2, kind: output, shape index: {}]
  %s3 = sld [smem:[#allocation0]]
  $region26: #{generator_forward.5} parent=0
    _
  %s5 = ssub.s32 1, %s3
  %s6 = scalar_select 0, %s5, %s3
  $region1: #{generator_forward.5} parent=0
    #allocation2 [shape = 'u8[1024]{0}', space=vmem, size = 0x400, scoped, tag = 'input window, operand 0, single buffered']
    #allocation3 [shape = 's32[1]{0}', space=sflag, size = 0x4, scoped, tag = 'scoped memory for generator_forward.5']
    #allocation4 [shape = 'u8[32768]{0}', space=vmem, size = 0x8000, scoped, tag = 'input window, operand 1, single buffered']
    #allocation5 [shape = 's32[1]{0}', space=sflag, size = 0x4, scoped, tag = 'scoped memory for generator_forward.5']
    %7 = vsyncpa [#allocation3], 0
    %8 = vsyncpa [#allocation5], 0
    // Predicated region
    $region2: #{generator_forward.5} parent=1 // pred_check
      _
    $region3: #{generator_forward.5} parent=1 // pred_check_branch
      %10 = sbr.rel (0) target = $region5
    $region4: #{generator_forward.5} parent=1 // pred_region
      %s12 = ssub.s32 32, 32
      %13 = vsyncadd [#allocation3], %s12
      %s15 = sshll.u32 [#allocation2], 4
      %s16 = int_to_ptr.vmem [resolvable:$true] %s15
      %18 = dma.hbm_to_vmem [thread:$0]  %s0, 32, %s16, [#allocation3]
    $region5: #{generator_forward.5} parent=1 // pred_fallthru
      _
    // Predicated region
    $region6: #{generator_forward.5} parent=1 // pred_check
      _
    $region7: #{generator_forward.5} parent=1 // pred_check_branch
      %20 = sbr.rel (0) target = $region9
    $region8: #{generator_forward.5} parent=1 // pred_region
      %s22 = ssub.s32 1024, 1024
      %23 = vsyncadd [#allocation5], %s22
      %s24 = sshll.u32 [#allocation4], 4
      %s25 = int_to_ptr.vmem [resolvable:$true] %s24
      %30 = dma.hbm_to_vmem [thread:$0]  %s1, 1024, %s25, [#allocation5], 512, 512, 32
    $region9: #{generator_forward.5} parent=1 // pred_fallthru
      _
    // Predicated region
    $region10: #{generator_forward.5} parent=1 // pred_check
      _
    $region11: #{generator_forward.5} parent=1 // pred_check_branch
      %32 = sbr.rel (0) target = $region13
    $region12: #{generator_forward.5} parent=1 // pred_region
      %33 = dma.done [#allocation3], 32
    $region13: #{generator_forward.5} parent=1 // pred_fallthru
      _
    // Predicated region
    $region14: #{generator_forward.5} parent=1 // pred_check
      _
    $region15: #{generator_forward.5} parent=1 // pred_check_branch
      %35 = sbr.rel (0) target = $region17
    $region16: #{generator_forward.5} parent=1 // pred_region
      %36 = dma.done [#allocation5], 1024
    $region17: #{generator_forward.5} parent=1 // pred_fallthru
      _
    %v38 = vld [vmem:[#allocation2] sm:$0x3]
    %v39 = vpack.c.bf16 %v38, %v38
    %v40 = vld [vmem:[#allocation4] sm:$0xff]
    %v41 = vld [vmem:[#allocation4 + $0x8] sm:$0xff]
    %v42 = vld [vmem:[#allocation4 + $0x10] sm:$0xff]
    %v43 = vld [vmem:[#allocation4 + $0x18] sm:$0xff]
    %v44 = vld [vmem:[#allocation4 + $0x20] sm:$0xff]
    %v45 = vld [vmem:[#allocation4 + $0x28] sm:$0xff]
    %v46 = vld [vmem:[#allocation4 + $0x30] sm:$0xff]
    %v47 = vld [vmem:[#allocation4 + $0x38] sm:$0xff]
    %v56 = vunpack.c.l.b16 %v40
    %v57 = vunpack.c.h.b16 %v40
    %v58 = vunpack.c.l.b16 %v41
    %v59 = vunpack.c.h.b16 %v41
    %v60 = vunpack.c.l.b16 %v42
    %v61 = vunpack.c.h.b16 %v42
    %v62 = vunpack.c.l.b16 %v43
    %v63 = vunpack.c.h.b16 %v43
    %v64 = vunpack.c.l.b16 %v44
    %v65 = vunpack.c.h.b16 %v44
    %v66 = vunpack.c.l.b16 %v45
    %v67 = vunpack.c.h.b16 %v45
    %v68 = vunpack.c.l.b16 %v46
    %v69 = vunpack.c.h.b16 %v46
    %v70 = vunpack.c.l.b16 %v47
    %v71 = vunpack.c.h.b16 %v47
    %v72 = vpack.c.b16 %v64, %v56
    %v73 = vpack.c.b16 %v65, %v57
    %v74 = vpack.c.b16 %v66, %v58
    %v75 = vpack.c.b16 %v67, %v59
    %v76 = vpack.c.b16 %v68, %v60
    %v77 = vpack.c.b16 %v69, %v61
    %v78 = vpack.c.b16 %v70, %v62
    %v79 = vpack.c.b16 %v71, %v63
    %vm88 = vcmask 130048
    %v90 = vsel %vm88, %v39, 0
    %92 = vmatprep.subr.bf16.mxu0 0
    %93 = vmatpush1.bf16.msra.mxu0 0
    %94 = vmatprep.subr.bf16.mxu0 0
    %95 = vmatpush1.bf16.msra.mxu0 0
    %96 = vmatprep.subr.bf16.mxu0 0
    %97 = vmatpush1.bf16.msra.mxu0 0
    %98 = vmatprep.subr.bf16.mxu0 0
    %99 = vmatpush1.bf16.msra.mxu0 0
    %100 = vmatprep.subr.bf16.mxu0 0
    %101 = vmatpush1.bf16.msra.mxu0 0
    %102 = vmatprep.subr.bf16.mxu0 0
    %103 = vmatpush1.bf16.msra.mxu0 0
    %104 = vmatprep.subr.bf16.mxu0 0
    %105 = vmatpush1.bf16.msra.mxu0 0
    %106 = vmatprep.subr.bf16.mxu0 %v73
    %107 = vmatpush1.bf16.msra.mxu0 %v72
    %108 = vmatprep.subr.bf16.mxu0 0
    %109 = vmatpush2.bf16.msra.mxu0 0
    %110 = vmatprep.subr.bf16.mxu0 0
    %111 = vmatpush2.bf16.msra.mxu0 0
    %112 = vmatprep.subr.bf16.mxu0 0
    %113 = vmatpush2.bf16.msra.mxu0 0
    %114 = vmatprep.subr.bf16.mxu0 0
    %115 = vmatpush2.bf16.msra.mxu0 0
    %116 = vmatprep.subr.bf16.mxu0 0
    %117 = vmatpush2.bf16.msra.mxu0 0
    %118 = vmatprep.subr.bf16.mxu0 0
    %119 = vmatpush2.bf16.msra.mxu0 0
    %120 = vmatprep.subr.bf16.mxu0 0
    %121 = vmatpush2.bf16.msra.mxu0 0
    %122 = vmatprep.subr.bf16.mxu0 0
    %123 = vmatpush2.bf16.msra.mxu0 0
    %124 = vmatprep.mubr.bf16.mxu0 0
    %125 = vmatmul.mubr.bf16.gmra.mxu0 %v90
    %v126 = vpop.f32.mrf.mxu0
    %v127 = vadd.f32 0.0, %v126
    %v128 = vpop.f32.mrf.mxu0
    %v129 = vadd.f32 0.0, %v128
    %v130 = vpop.f32.mrf.mxu0
    %v131 = vpop.f32.mrf.mxu0
    %132 = vdwg.mxu0
    %133 = vmatprep.subr.bf16.mxu0 0
    %134 = vmatpush1.bf16.msra.mxu0 0
    %135 = vmatprep.subr.bf16.mxu0 0
    %136 = vmatpush1.bf16.msra.mxu0 0
    %137 = vmatprep.subr.bf16.mxu0 0
    %138 = vmatpush1.bf16.msra.mxu0 0
    %139 = vmatprep.subr.bf16.mxu0 0
    %140 = vmatpush1.bf16.msra.mxu0 0
    %141 = vmatprep.subr.bf16.mxu0 0
    %142 = vmatpush1.bf16.msra.mxu0 0
    %143 = vmatprep.subr.bf16.mxu0 0
    %144 = vmatpush1.bf16.msra.mxu0 0
    %145 = vmatprep.subr.bf16.mxu0 0
    %146 = vmatpush1.bf16.msra.mxu0 0
    %147 = vmatprep.subr.bf16.mxu0 %v75
    %148 = vmatpush1.bf16.msra.mxu0 %v74
    %149 = vmatprep.subr.bf16.mxu0 0
    %150 = vmatpush2.bf16.msra.mxu0 0
    %151 = vmatprep.subr.bf16.mxu0 0
    %152 = vmatpush2.bf16.msra.mxu0 0
    %153 = vmatprep.subr.bf16.mxu0 0
    %154 = vmatpush2.bf16.msra.mxu0 0
    %155 = vmatprep.subr.bf16.mxu0 0
    %156 = vmatpush2.bf16.msra.mxu0 0
    %157 = vmatprep.subr.bf16.mxu0 0
    %158 = vmatpush2.bf16.msra.mxu0 0
    %159 = vmatprep.subr.bf16.mxu0 0
    %160 = vmatpush2.bf16.msra.mxu0 0
    %161 = vmatprep.subr.bf16.mxu0 0
    %162 = vmatpush2.bf16.msra.mxu0 0
    %163 = vmatprep.subr.bf16.mxu0 0
    %164 = vmatpush2.bf16.msra.mxu0 0
    %165 = vmatprep.mubr.bf16.mxu0 0
    %166 = vmatmul.mubr.bf16.gmra.mxu0 %v90
    %v167 = vpop.f32.mrf.mxu0
    %v168 = vadd.f32 0.0, %v167
    %v169 = vpop.f32.mrf.mxu0
    %v170 = vadd.f32 0.0, %v169
    %v171 = vpop.f32.mrf.mxu0
    %v172 = vpop.f32.mrf.mxu0
    %173 = vdwg.mxu0
    %174 = vmatprep.subr.bf16.mxu0 0
    %175 = vmatpush1.bf16.msra.mxu0 0
    %176 = vmatprep.subr.bf16.mxu0 0
    %177 = vmatpush1.bf16.msra.mxu0 0
    %178 = vmatprep.subr.bf16.mxu0 0
    %179 = vmatpush1.bf16.msra.mxu0 0
    %180 = vmatprep.subr.bf16.mxu0 0
    %181 = vmatpush1.bf16.msra.mxu0 0
    %182 = vmatprep.subr.bf16.mxu0 0
    %183 = vmatpush1.bf16.msra.mxu0 0
    %184 = vmatprep.subr.bf16.mxu0 0
    %185 = vmatpush1.bf16.msra.mxu0 0
    %186 = vmatprep.subr.bf16.mxu0 0
    %187 = vmatpush1.bf16.msra.mxu0 0
    %188 = vmatprep.subr.bf16.mxu0 %v77
    %189 = vmatpush1.bf16.msra.mxu0 %v76
    %190 = vmatprep.subr.bf16.mxu0 0
    %191 = vmatpush2.bf16.msra.mxu0 0
    %192 = vmatprep.subr.bf16.mxu0 0
    %193 = vmatpush2.bf16.msra.mxu0 0
    %194 = vmatprep.subr.bf16.mxu0 0
    %195 = vmatpush2.bf16.msra.mxu0 0
    %196 = vmatprep.subr.bf16.mxu0 0
    %197 = vmatpush2.bf16.msra.mxu0 0
    %198 = vmatprep.subr.bf16.mxu0 0
    %199 = vmatpush2.bf16.msra.mxu0 0
    %200 = vmatprep.subr.bf16.mxu0 0
    %201 = vmatpush2.bf16.msra.mxu0 0
    %202 = vmatprep.subr.bf16.mxu0 0
    %203 = vmatpush2.bf16.msra.mxu0 0
    %204 = vmatprep.subr.bf16.mxu0 0
    %205 = vmatpush2.bf16.msra.mxu0 0
    %206 = vmatprep.mubr.bf16.mxu0 0
    %207 = vmatmul.mubr.bf16.gmra.mxu0 %v90
    %v208 = vpop.f32.mrf.mxu0
    %v209 = vadd.f32 0.0, %v208
    %v210 = vpop.f32.mrf.mxu0
    %v211 = vadd.f32 0.0, %v210
    %v212 = vpop.f32.mrf.mxu0
    %v213 = vpop.f32.mrf.mxu0
    %214 = vdwg.mxu0
    %215 = vmatprep.subr.bf16.mxu0 0
    %216 = vmatpush1.bf16.msra.mxu0 0
    %217 = vmatprep.subr.bf16.mxu0 0
    %218 = vmatpush1.bf16.msra.mxu0 0
    %219 = vmatprep.subr.bf16.mxu0 0
    %220 = vmatpush1.bf16.msra.mxu0 0
    %221 = vmatprep.subr.bf16.mxu0 0
    %222 = vmatpush1.bf16.msra.mxu0 0
    %223 = vmatprep.subr.bf16.mxu0 0
    %224 = vmatpush1.bf16.msra.mxu0 0
    %225 = vmatprep.subr.bf16.mxu0 0
    %226 = vmatpush1.bf16.msra.mxu0 0
    %227 = vmatprep.subr.bf16.mxu0 0
    %228 = vmatpush1.bf16.msra.mxu0 0
    %229 = vmatprep.subr.bf16.mxu0 %v79
    %230 = vmatpush1.bf16.msra.mxu0 %v78
    %231 = vmatprep.subr.bf16.mxu0 0
    %232 = vmatpush2.bf16.msra.mxu0 0
    %233 = vmatprep.subr.bf16.mxu0 0
    %234 = vmatpush2.bf16.msra.mxu0 0
    %235 = vmatprep.subr.bf16.mxu0 0
    %236 = vmatpush2.bf16.msra.mxu0 0
    %237 = vmatprep.subr.bf16.mxu0 0
    %238 = vmatpush2.bf16.msra.mxu0 0
    %239 = vmatprep.subr.bf16.mxu0 0
    %240 = vmatpush2.bf16.msra.mxu0 0
    %241 = vmatprep.subr.bf16.mxu0 0
    %242 = vmatpush2.bf16.msra.mxu0 0
    %243 = vmatprep.subr.bf16.mxu0 0
    %244 = vmatpush2.bf16.msra.mxu0 0
    %245 = vmatprep.subr.bf16.mxu0 0
    %246 = vmatpush2.bf16.msra.mxu0 0
    %247 = vmatprep.mubr.bf16.mxu0 0
    %248 = vmatmul.mubr.bf16.gmra.mxu0 %v90
    %v249 = vpop.f32.mrf.mxu0
    %v250 = vadd.f32 0.0, %v249
    %v251 = vpop.f32.mrf.mxu0
    %v252 = vadd.f32 0.0, %v251
    %v253 = vpop.f32.mrf.mxu0
    %v254 = vpop.f32.mrf.mxu0
    %255 = vdwg.mxu0
    %v256 = vpack.c.bf16 %v127, %v127
    %v257 = vpack.c.bf16 %v129, %v129
    %v258 = vpack.c.bf16 %v168, %v168
    %v259 = vpack.c.bf16 %v170, %v170
    %v260 = vpack.c.bf16 %v209, %v209
    %v261 = vpack.c.bf16 %v211, %v211
    %v262 = vpack.c.bf16 %v250, %v250
    %v263 = vpack.c.bf16 %v252, %v252
    %v272 = vcombine.low %v256, %v257
    %v273 = vcombine.low %v258, %v259
    %v274 = vcombine.low %v260, %v261
    %v275 = vcombine.low %v262, %v263
    %v277 = vunpack.c.l.s4 1966171168
    %v278 = vunpack.c.0.s8 %v277
    %v279 = vlaneseq
    %v280 = vshrl.u32 %v279, 7
    %v281 = vsub.s32 %v278, %v280
    %v282 = vrot.slane %v272, %v281
    %v284 = vunpack.c.l.s4 1966171168
    %v285 = vunpack.c.0.s8 %v284
    %v286 = vlaneseq
    %v287 = vshrl.u32 %v286, 7
    %v288 = vsub.s32 %v285, %v287
    %v289 = vrot.slane %v273, %v288
    %v291 = vunpack.c.l.s4 1966171168
    %v292 = vunpack.c.0.s8 %v291
    %v293 = vlaneseq
    %v294 = vshrl.u32 %v293, 7
    %v295 = vsub.s32 %v292, %v294
    %v296 = vrot.slane %v274, %v295
    %v298 = vunpack.c.l.s4 1966171168
    %v299 = vunpack.c.0.s8 %v298
    %v300 = vlaneseq
    %v301 = vshrl.u32 %v300, 7
    %v302 = vsub.s32 %v299, %v301
    %v303 = vrot.slane %v275, %v302
    %v304 = vcombine.low %v282, %v289
    %v305 = vcombine.low %v296, %v303
    %v307 = vunpack.c.l.s4 1966171168
    %v308 = vunpack.c.0.s8 %v307
    %v309 = vlaneseq
    %v310 = vshrl.u32 %v309, 7
    %v311 = vsub.s32 %v308, %v310
    %v312 = vrot.slane %v304, %v311
    %v314 = vunpack.c.l.s4 1966171168
    %v315 = vunpack.c.0.s8 %v314
    %v316 = vlaneseq
    %v317 = vshrl.u32 %v316, 7
    %v318 = vsub.s32 %v315, %v317
    %v319 = vrot.slane %v305, %v318
    %v320 = vcombine.low %v312, %v319
    %322 = vst [vmem:[%s2] sm:$0xff] %v320
    // Predicated region
    $region18: #{generator_forward.5} parent=1 // pred_check
      _
    $region19: #{generator_forward.5} parent=1 // pred_check_branch
      %324 = sbr.rel (0) target = $region21
    $region20: #{generator_forward.5} parent=1 // pred_region
      _
    $region21: #{generator_forward.5} parent=1 // pred_fallthru
      _
    // Predicated region
    $region22: #{generator_forward.5} parent=1 // pred_check
      _
    $region23: #{generator_forward.5} parent=1 // pred_check_branch
      %326 = sbr.rel (0) target = $region25
    $region24: #{generator_forward.5} parent=1 // pred_region
      _
    $region25: #{generator_forward.5} parent=1 // pred_fallthru
      _
    %327 = vsyncpa [#allocation3], 1
    %328 = vsyncpa [#allocation5], 1

// kernel: generator_forward.6
$region0: #{generator_forward.6}
  #allocation0 [shape = 'u32[]', space=smem, size = 0x4, offset = 0x4, fixed_abs, tag = 'smem constant byte address 0x4 - core index']
  #allocation1 [shape = 'u32[144,128]{1,0:T(1,128)}', space=vmem, size = 0x12000, scoped, tag = 'internal scratch']
  %s0 = inlined_call_operand.vmem [shape: bf16[32,64], index: 0, kind: input, shape index: {}]
  %s1 = inlined_call_operand.vmem [shape: f32[1,64], index: 1, kind: input, shape index: {}]
  %s2 = inlined_call_operand.vmem [shape: f32[1,64], index: 2, kind: input, shape index: {}]
  %s3 = inlined_call_operand.hbm [shape: bf16[64,512], index: 3, kind: input, shape index: {}]
  %s4 = inlined_call_operand.vmem [shape: bf16[32,512], index: 4, kind: output, shape index: {}]
  %s5 = sld [smem:[#allocation0]]
  $region30: #{generator_forward.6} parent=0
    _
  %s7 = ssub.s32 1, %s5
  %s8 = scalar_select 0, %s7, %s5
  $region1: #{generator_forward.6} parent=0
    #allocation2 [shape = 'u8[65536]{0}', space=vmem, size = 0x10000, scoped, tag = 'input window, operand 3, single buffered']
    #allocation3 [shape = 's32[1]{0}', space=sflag, size = 0x4, scoped, tag = 'scoped memory for generator_forward.6']
    %9 = vsyncpa [#allocation3], 0
    // Predicated region
    $region2: #{generator_forward.6} parent=1 // pred_check
      _
    $region3: #{generator_forward.6} parent=1 // pred_check_branch
      %11 = sbr.rel (0) target = $region5
    $region4: #{generator_forward.6} parent=1 // pred_region
      _
    $region5: #{generator_forward.6} parent=1 // pred_fallthru
      _
    // Predicated region
    $region6: #{generator_forward.6} parent=1 // pred_check
      _
    $region7: #{generator_forward.6} parent=1 // pred_check_branch
      %13 = sbr.rel (0) target = $region9
    $region8: #{generator_forward.6} parent=1 // pred_region
      _
    $region9: #{generator_forward.6} parent=1 // pred_fallthru
      _
    // Predicated region
    $region10: #{generator_forward.6} parent=1 // pred_check
      _
    $region11: #{generator_forward.6} parent=1 // pred_check_branch
      %15 = sbr.rel (0) target = $region13
    $region12: #{generator_forward.6} parent=1 // pred_region
      _
    $region13: #{generator_forward.6} parent=1 // pred_fallthru
      _
    // Predicated region
    $region14: #{generator_forward.6} parent=1 // pred_check
      _
    $region15: #{generator_forward.6} parent=1 // pred_check_branch
      %17 = sbr.rel (0) target = $region17
    $region16: #{generator_forward.6} parent=1 // pred_region
      %s19 = ssub.s32 2048, 2048
      %20 = vsyncadd [#allocation3], %s19
      %s21 = sshll.u32 [#allocation2], 4
      %s22 = int_to_ptr.vmem [resolvable:$true] %s21
      %27 = dma.hbm_to_vmem [thread:$0]  %s3, 2048, %s22, [#allocation3], 256, 256, 16
    $region17: #{generator_forward.6} parent=1 // pred_fallthru
      _
    // Predicated region
    $region18: #{generator_forward.6} parent=1 // pred_check
      _
    $region19: #{generator_forward.6} parent=1 // pred_check_branch
      %29 = sbr.rel (0) target = $region21
    $region20: #{generator_forward.6} parent=1 // pred_region
      %30 = dma.done [#allocation3], 2048
    $region21: #{generator_forward.6} parent=1 // pred_fallthru
      _
    %v32 = vld [vmem:[%s0] sm:$0xf]
    %v33 = vld [vmem:[%s0 + $0x4] sm:$0xf]
    %v34 = vld [vmem:[%s0 + $0x8] sm:$0xf]
    %v35 = vld [vmem:[%s0 + $0xc] sm:$0xf]
    %v36 = vunpack.c.l.bf16 %v32
    %v37 = vunpack.c.l.bf16 %v33
    %v38 = vunpack.c.l.bf16 %v34
    %v39 = vunpack.c.l.bf16 %v35
    %v40 = vld [vmem:[%s1] sm:$0x1]
    %v42 = vlaneseq
    %v43 = vshrl.u32 %v42, 7
    %v44 = vsub.s32 0, %v43
    %v45 = vrot.slane %v40, %v44
    %v47 = vmul.f32 %v36, %v45
    %v48 = vmul.f32 %v37, %v45
    %v49 = vmul.f32 %v38, %v45
    %v50 = vmul.f32 %v39, %v45
    %v51 = vld [vmem:[%s2] sm:$0x1]
    %v53 = vlaneseq
    %v54 = vshrl.u32 %v53, 7
    %v55 = vsub.s32 0, %v54
    %v56 = vrot.slane %v51, %v55
    %v58 = vadd.f32 %v47, %v56
    %v59 = vadd.f32 %v48, %v56
    %v60 = vadd.f32 %v49, %v56
    %v61 = vadd.f32 %v50, %v56
    %v62 = vmax.f32 %v58, 0.0
    %v63 = vmax.f32 %v59, 0.0
    %v64 = vmax.f32 %v60, 0.0
    %v65 = vmax.f32 %v61, 0.0
    %v66 = vpack.c.bf16 %v63, %v62
    %v67 = vpack.c.bf16 %v65, %v64
    %v68 = vld [vmem:[#allocation2] sm:$0xff]
    %v69 = vld [vmem:[#allocation2 + $0x8] sm:$0xff]
    %v70 = vld [vmem:[#allocation2 + $0x10] sm:$0xff]
    %v71 = vld [vmem:[#allocation2 + $0x18] sm:$0xff]
    %v72 = vld [vmem:[#allocation2 + $0x20] sm:$0xff]
    %v73 = vld [vmem:[#allocation2 + $0x28] sm:$0xff]
    %v74 = vld [vmem:[#allocation2 + $0x30] sm:$0xff]
    %v75 = vld [vmem:[#allocation2 + $0x38] sm:$0xff]
    %v76 = vld [vmem:[#allocation2 + $0x40] sm:$0xff]
    %v77 = vld [vmem:[#allocation2 + $0x48] sm:$0xff]
    %v78 = vld [vmem:[#allocation2 + $0x50] sm:$0xff]
    %v79 = vld [vmem:[#allocation2 + $0x58] sm:$0xff]
    %v80 = vld [vmem:[#allocation2 + $0x60] sm:$0xff]
    %v81 = vld [vmem:[#allocation2 + $0x68] sm:$0xff]
    %v82 = vld [vmem:[#allocation2 + $0x70] sm:$0xff]
    %v83 = vld [vmem:[#allocation2 + $0x78] sm:$0xff]
    %v100 = vunpack.c.l.b16 %v68
    %v101 = vunpack.c.h.b16 %v68
    %v102 = vunpack.c.l.b16 %v69
    %v103 = vunpack.c.h.b16 %v69
    %v104 = vunpack.c.l.b16 %v70
    %v105 = vunpack.c.h.b16 %v70
    %v106 = vunpack.c.l.b16 %v71
    %v107 = vunpack.c.h.b16 %v71
    %v108 = vunpack.c.l.b16 %v72
    %v109 = vunpack.c.h.b16 %v72
    %v110 = vunpack.c.l.b16 %v73
    %v111 = vunpack.c.h.b16 %v73
    %v112 = vunpack.c.l.b16 %v74
    %v113 = vunpack.c.h.b16 %v74
    %v114 = vunpack.c.l.b16 %v75
    %v115 = vunpack.c.h.b16 %v75
    %v116 = vunpack.c.l.b16 %v76
    %v117 = vunpack.c.h.b16 %v76
    %v118 = vunpack.c.l.b16 %v77
    %v119 = vunpack.c.h.b16 %v77
    %v120 = vunpack.c.l.b16 %v78
    %v121 = vunpack.c.h.b16 %v78
    %v122 = vunpack.c.l.b16 %v79
    %v123 = vunpack.c.h.b16 %v79
    %v124 = vunpack.c.l.b16 %v80
    %v125 = vunpack.c.h.b16 %v80
    %v126 = vunpack.c.l.b16 %v81
    %v127 = vunpack.c.h.b16 %v81
    %v128 = vunpack.c.l.b16 %v82
    %v129 = vunpack.c.h.b16 %v82
    %v130 = vunpack.c.l.b16 %v83
    %v131 = vunpack.c.h.b16 %v83
    %v132 = vpack.c.b16 %v104, %v100
    %v133 = vpack.c.b16 %v105, %v101
    %v134 = vpack.c.b16 %v106, %v102
    %v135 = vpack.c.b16 %v107, %v103
    %v136 = vpack.c.b16 %v112, %v108
    %v137 = vpack.c.b16 %v113, %v109
    %v138 = vpack.c.b16 %v114, %v110
    %v139 = vpack.c.b16 %v115, %v111
    %v140 = vpack.c.b16 %v120, %v116
    %v141 = vpack.c.b16 %v121, %v117
    %v142 = vpack.c.b16 %v122, %v118
    %v143 = vpack.c.b16 %v123, %v119
    %v144 = vpack.c.b16 %v128, %v124
    %v145 = vpack.c.b16 %v129, %v125
    %v146 = vpack.c.b16 %v130, %v126
    %v147 = vpack.c.b16 %v131, %v127
    %vm164 = vcmask 523264
    %v166 = vsel %vm164, %v66, 0
    %v169 = vsel %vm164, %v67, 0
    %171 = vmatprep.subr.bf16.mxu0 0
    %172 = vmatpush1.bf16.msra.mxu0 0
    %173 = vmatprep.subr.bf16.mxu0 0
    %174 = vmatpush1.bf16.msra.mxu0 0
    %175 = vmatprep.subr.bf16.mxu0 0
    %176 = vmatpush1.bf16.msra.mxu0 0
    %177 = vmatprep.subr.bf16.mxu0 0
    %178 = vmatpush1.bf16.msra.mxu0 0
    %179 = vmatprep.subr.bf16.mxu0 %v145
    %180 = vmatpush1.bf16.msra.mxu0 %v144
    %181 = vmatprep.subr.bf16.mxu0 %v141
    %182 = vmatpush1.bf16.msra.mxu0 %v140
    %183 = vmatprep.subr.bf16.mxu0 %v137
    %184 = vmatpush1.bf16.msra.mxu0 %v136
    %185 = vmatprep.subr.bf16.mxu0 %v133
    %186 = vmatpush1.bf16.msra.mxu0 %v132
    %187 = vmatprep.subr.bf16.mxu0 0
    %188 = vmatpush2.bf16.msra.mxu0 0
    %189 = vmatprep.subr.bf16.mxu0 0
    %190 = vmatpush2.bf16.msra.mxu0 0
    %191 = vmatprep.subr.bf16.mxu0 0
    %192 = vmatpush2.bf16.msra.mxu0 0
    %193 = vmatprep.subr.bf16.mxu0 0
    %194 = vmatpush2.bf16.msra.mxu0 0
    %195 = vmatprep.subr.bf16.mxu0 0
    %196 = vmatpush2.bf16.msra.mxu0 0
    %197 = vmatprep.subr.bf16.mxu0 0
    %198 = vmatpush2.bf16.msra.mxu0 0
    %199 = vmatprep.subr.bf16.mxu0 0
    %200 = vmatpush2.bf16.msra.mxu0 0
    %201 = vmatprep.subr.bf16.mxu0 0
    %202 = vmatpush2.bf16.msra.mxu0 0
    %203 = vmatprep.mubr.bf16.mxu0 0
    %204 = vmatmul.mubr.bf16.gmra.mxu0 %v166
    %v205 = vpop.f32.mrf.mxu0
    %v206 = vadd.f32 0.0, %v205
    %v207 = vpop.f32.mrf.mxu0
    %v208 = vadd.f32 0.0, %v207
    %v209 = vpop.f32.mrf.mxu0
    %v210 = vadd.f32 0.0, %v209
    %v211 = vpop.f32.mrf.mxu0
    %v212 = vadd.f32 0.0, %v211
    %213 = vmatprep.mubr.bf16.mxu0 0
    %214 = vmatmul.mubr.bf16.gmra.mxu0 %v169
    %v215 = vpop.f32.mrf.mxu0
    %v216 = vadd.f32 0.0, %v215
    %v217 = vpop.f32.mrf.mxu0
    %v218 = vadd.f32 0.0, %v217
    %v219 = vpop.f32.mrf.mxu0
    %v220 = vadd.f32 0.0, %v219
    %v221 = vpop.f32.mrf.mxu0
    %v222 = vadd.f32 0.0, %v221
    %223 = vdwg.mxu0
    %224 = vmatprep.subr.bf16.mxu0 0
    %225 = vmatpush1.bf16.msra.mxu0 0
    %226 = vmatprep.subr.bf16.mxu0 0
    %227 = vmatpush1.bf16.msra.mxu0 0
    %228 = vmatprep.subr.bf16.mxu0 0
    %229 = vmatpush1.bf16.msra.mxu0 0
    %230 = vmatprep.subr.bf16.mxu0 0
    %231 = vmatpush1.bf16.msra.mxu0 0
    %232 = vmatprep.subr.bf16.mxu0 %v147
    %233 = vmatpush1.bf16.msra.mxu0 %v146
    %234 = vmatprep.subr.bf16.mxu0 %v143
    %235 = vmatpush1.bf16.msra.mxu0 %v142
    %236 = vmatprep.subr.bf16.mxu0 %v139
    %237 = vmatpush1.bf16.msra.mxu0 %v138
    %238 = vmatprep.subr.bf16.mxu0 %v135
    %239 = vmatpush1.bf16.msra.mxu0 %v134
    %240 = vmatprep.subr.bf16.mxu0 0
    %241 = vmatpush2.bf16.msra.mxu0 0
    %242 = vmatprep.subr.bf16.mxu0 0
    %243 = vmatpush2.bf16.msra.mxu0 0
    %244 = vmatprep.subr.bf16.mxu0 0
    %245 = vmatpush2.bf16.msra.mxu0 0
    %246 = vmatprep.subr.bf16.mxu0 0
    %247 = vmatpush2.bf16.msra.mxu0 0
    %248 = vmatprep.subr.bf16.mxu0 0
    %249 = vmatpush2.bf16.msra.mxu0 0
    %250 = vmatprep.subr.bf16.mxu0 0
    %251 = vmatpush2.bf16.msra.mxu0 0
    %252 = vmatprep.subr.bf16.mxu0 0
    %253 = vmatpush2.bf16.msra.mxu0 0
    %254 = vmatprep.subr.bf16.mxu0 0
    %255 = vmatpush2.bf16.msra.mxu0 0
    %256 = vmatprep.mubr.bf16.mxu0 0
    %257 = vmatmul.mubr.bf16.gmra.mxu0 %v166
    %v258 = vpop.f32.mrf.mxu0
    %v259 = vadd.f32 0.0, %v258
    %v260 = vpop.f32.mrf.mxu0
    %v261 = vadd.f32 0.0, %v260
    %v262 = vpop.f32.mrf.mxu0
    %v263 = vadd.f32 0.0, %v262
    %v264 = vpop.f32.mrf.mxu0
    %v265 = vadd.f32 0.0, %v264
    %266 = vmatprep.mubr.bf16.mxu0 0
    %267 = vmatmul.mubr.bf16.gmra.mxu0 %v169
    %v268 = vpop.f32.mrf.mxu0
    %v269 = vadd.f32 0.0, %v268
    %v270 = vpop.f32.mrf.mxu0
    %v271 = vadd.f32 0.0, %v270
    %v272 = vpop.f32.mrf.mxu0
    %v273 = vadd.f32 0.0, %v272
    %v274 = vpop.f32.mrf.mxu0
    %v275 = vadd.f32 0.0, %v274
    %276 = vdwg.mxu0
    %v277 = vpack.c.bf16 %v210, %v206
    %v278 = vpack.c.bf16 %v212, %v208
    %v279 = vpack.c.bf16 %v263, %v259
    %v280 = vpack.c.bf16 %v265, %v261
    %v281 = vpack.c.bf16 %v220, %v216
    %v282 = vpack.c.bf16 %v222, %v218
    %v283 = vpack.c.bf16 %v273, %v269
    %v284 = vpack.c.bf16 %v275, %v271
    %v293 = vunpack.c.l.b16 %v277
    %v294 = vunpack.c.l.b16 %v278
    %v295 = vunpack.c.l.b16 %v279
    %v296 = vunpack.c.l.b16 %v280
    %v297 = vunpack.c.h.b16 %v277
    %v298 = vunpack.c.h.b16 %v278
    %v299 = vunpack.c.h.b16 %v279
    %v300 = vunpack.c.h.b16 %v280
    %v301 = vunpack.c.l.b16 %v281
    %v302 = vunpack.c.l.b16 %v282
    %v303 = vunpack.c.l.b16 %v283
    %v304 = vunpack.c.l.b16 %v284
    %v305 = vunpack.c.h.b16 %v281
    %v306 = vunpack.c.h.b16 %v282
    %v307 = vunpack.c.h.b16 %v283
    %v308 = vunpack.c.h.b16 %v284
    %v309 = vpack.c.b16 %v294, %v293
    %v310 = vpack.c.b16 %v296, %v295
    %v311 = vpack.c.b16 %v298, %v297
    %v312 = vpack.c.b16 %v300, %v299
    %v313 = vpack.c.b16 %v302, %v301
    %v314 = vpack.c.b16 %v304, %v303
    %v315 = vpack.c.b16 %v306, %v305
    %v316 = vpack.c.b16 %v308, %v307
    %325 = vst [vmem:[%s4] sm:$0xff] %v309
    %326 = vst [vmem:[%s4 + $0x8] sm:$0xff] %v310
    %327 = vst [vmem:[%s4 + $0x10] sm:$0xff] %v311
    %328 = vst [vmem:[%s4 + $0x18] sm:$0xff] %v312
    %329 = vst [vmem:[%s4 + $0x20] sm:$0xff] %v313
    %330 = vst [vmem:[%s4 + $0x28] sm:$0xff] %v314
    %331 = vst [vmem:[%s4 + $0x30] sm:$0xff] %v315
    %332 = vst [vmem:[%s4 + $0x38] sm:$0xff] %v316
    // Predicated region
    $region22: #{generator_forward.6} parent=1 // pred_check
      _
    $region23: #{generator_forward.6} parent=1 // pred_check_branch
      %334 = sbr.rel (0) target = $region25
    $region24: #{generator_forward.6} parent=1 // pred_region
      _
    $region25: #{generator_forward.6} parent=1 // pred_fallthru
      _
    // Predicated region
    $region26: #{generator_forward.6} parent=1 // pred_check
      _
    $region27: #{generator_forward.6} parent=1 // pred_check_branch
      %336 = sbr.rel (0) target = $region29
    $region28: #{generator_forward.6} parent=1 // pred_region
      _
    $region29: #{generator_forward.6} parent=1 // pred_fallthru
      _
    %337 = vsyncpa [#allocation3], 1

// kernel: generator_forward.7
$region0: #{generator_forward.7}
  #allocation0 [shape = 'u32[]', space=smem, size = 0x4, offset = 0x4, fixed_abs, tag = 'smem constant byte address 0x4 - core index']
  #allocation1 [shape = 'u32[144,128]{1,0:T(1,128)}', space=vmem, size = 0x12000, scoped, tag = 'internal scratch']
  %s0 = inlined_call_operand.vmem [shape: bf16[128,32], index: 0, kind: input, shape index: {}]
  %s1 = inlined_call_operand.vmem [shape: f32[1,32], index: 1, kind: input, shape index: {}]
  %s2 = inlined_call_operand.vmem [shape: f32[1,32], index: 2, kind: input, shape index: {}]
  %s3 = inlined_call_operand.hbm [shape: bf16[32,256], index: 3, kind: input, shape index: {}]
  %s4 = inlined_call_operand.vmem [shape: bf16[128,256], index: 4, kind: output, shape index: {}]
  %s5 = sld [smem:[#allocation0]]
  $region30: #{generator_forward.7} parent=0
    _
  %s7 = ssub.s32 1, %s5
  %s8 = scalar_select 0, %s7, %s5
  $region1: #{generator_forward.7} parent=0
    #allocation2 [shape = 'u8[16384]{0}', space=vmem, size = 0x4000, scoped, tag = 'input window, operand 3, single buffered']
    #allocation3 [shape = 's32[1]{0}', space=sflag, size = 0x4, scoped, tag = 'scoped memory for generator_forward.7']
    %9 = vsyncpa [#allocation3], 0
    // Predicated region
    $region2: #{generator_forward.7} parent=1 // pred_check
      _
    $region3: #{generator_forward.7} parent=1 // pred_check_branch
      %11 = sbr.rel (0) target = $region5
    $region4: #{generator_forward.7} parent=1 // pred_region
      _
    $region5: #{generator_forward.7} parent=1 // pred_fallthru
      _
    // Predicated region
    $region6: #{generator_forward.7} parent=1 // pred_check
      _
    $region7: #{generator_forward.7} parent=1 // pred_check_branch
      %13 = sbr.rel (0) target = $region9
    $region8: #{generator_forward.7} parent=1 // pred_region
      _
    $region9: #{generator_forward.7} parent=1 // pred_fallthru
      _
    // Predicated region
    $region10: #{generator_forward.7} parent=1 // pred_check
      _
    $region11: #{generator_forward.7} parent=1 // pred_check_branch
      %15 = sbr.rel (0) target = $region13
    $region12: #{generator_forward.7} parent=1 // pred_region
      _
    $region13: #{generator_forward.7} parent=1 // pred_fallthru
      _
    // Predicated region
    $region14: #{generator_forward.7} parent=1 // pred_check
      _
    $region15: #{generator_forward.7} parent=1 // pred_check_branch
      %17 = sbr.rel (0) target = $region17
    $region16: #{generator_forward.7} parent=1 // pred_region
      %s19 = ssub.s32 512, 512
      %20 = vsyncadd [#allocation3], %s19
      %s21 = sshll.u32 [#allocation2], 4
      %s22 = int_to_ptr.vmem [resolvable:$true] %s21
      %27 = dma.hbm_to_vmem [thread:$0]  %s3, 512, %s22, [#allocation3], 128, 128, 8
    $region17: #{generator_forward.7} parent=1 // pred_fallthru
      _
    // Predicated region
    $region18: #{generator_forward.7} parent=1 // pred_check
      _
    $region19: #{generator_forward.7} parent=1 // pred_check_branch
      %29 = sbr.rel (0) target = $region21
    $region20: #{generator_forward.7} parent=1 // pred_region
      %30 = dma.done [#allocation3], 512
    $region21: #{generator_forward.7} parent=1 // pred_fallthru
      _
    %v32 = vld [vmem:[%s0] sm:$0xf]
    %v33 = vld [vmem:[%s0 + $0x4] sm:$0xf]
    %v34 = vld [vmem:[%s0 + $0x8] sm:$0xf]
    %v35 = vld [vmem:[%s0 + $0xc] sm:$0xf]
    %v36 = vld [vmem:[%s0 + $0x10] sm:$0xf]
    %v37 = vld [vmem:[%s0 + $0x14] sm:$0xf]
    %v38 = vld [vmem:[%s0 + $0x18] sm:$0xf]
    %v39 = vld [vmem:[%s0 + $0x1c] sm:$0xf]
    %v40 = vld [vmem:[%s0 + $0x20] sm:$0xf]
    %v41 = vld [vmem:[%s0 + $0x24] sm:$0xf]
    %v42 = vld [vmem:[%s0 + $0x28] sm:$0xf]
    %v43 = vld [vmem:[%s0 + $0x2c] sm:$0xf]
    %v44 = vld [vmem:[%s0 + $0x30] sm:$0xf]
    %v45 = vld [vmem:[%s0 + $0x34] sm:$0xf]
    %v46 = vld [vmem:[%s0 + $0x38] sm:$0xf]
    %v47 = vld [vmem:[%s0 + $0x3c] sm:$0xf]
    %v48 = vunpack.c.l.bf16 %v32
    %v49 = vunpack.c.l.bf16 %v33
    %v50 = vunpack.c.l.bf16 %v34
    %v51 = vunpack.c.l.bf16 %v35
    %v52 = vunpack.c.l.bf16 %v36
    %v53 = vunpack.c.l.bf16 %v37
    %v54 = vunpack.c.l.bf16 %v38
    %v55 = vunpack.c.l.bf16 %v39
    %v56 = vunpack.c.l.bf16 %v40
    %v57 = vunpack.c.l.bf16 %v41
    %v58 = vunpack.c.l.bf16 %v42
    %v59 = vunpack.c.l.bf16 %v43
    %v60 = vunpack.c.l.bf16 %v44
    %v61 = vunpack.c.l.bf16 %v45
    %v62 = vunpack.c.l.bf16 %v46
    %v63 = vunpack.c.l.bf16 %v47
    %v64 = vld [vmem:[%s1] sm:$0x1]
    %v66 = vlaneseq
    %v67 = vshrl.u32 %v66, 7
    %v68 = vsub.s32 0, %v67
    %v69 = vrot.slane %v64, %v68
    %v71 = vmul.f32 %v48, %v69
    %v72 = vmul.f32 %v49, %v69
    %v73 = vmul.f32 %v50, %v69
    %v74 = vmul.f32 %v51, %v69
    %v75 = vmul.f32 %v52, %v69
    %v76 = vmul.f32 %v53, %v69
    %v77 = vmul.f32 %v54, %v69
    %v78 = vmul.f32 %v55, %v69
    %v79 = vmul.f32 %v56, %v69
    %v80 = vmul.f32 %v57, %v69
    %v81 = vmul.f32 %v58, %v69
    %v82 = vmul.f32 %v59, %v69
    %v83 = vmul.f32 %v60, %v69
    %v84 = vmul.f32 %v61, %v69
    %v85 = vmul.f32 %v62, %v69
    %v86 = vmul.f32 %v63, %v69
    %v87 = vld [vmem:[%s2] sm:$0x1]
    %v89 = vlaneseq
    %v90 = vshrl.u32 %v89, 7
    %v91 = vsub.s32 0, %v90
    %v92 = vrot.slane %v87, %v91
    %v94 = vadd.f32 %v71, %v92
    %v95 = vadd.f32 %v72, %v92
    %v96 = vadd.f32 %v73, %v92
    %v97 = vadd.f32 %v74, %v92
    %v98 = vadd.f32 %v75, %v92
    %v99 = vadd.f32 %v76, %v92
    %v100 = vadd.f32 %v77, %v92
    %v101 = vadd.f32 %v78, %v92
    %v102 = vadd.f32 %v79, %v92
    %v103 = vadd.f32 %v80, %v92
    %v104 = vadd.f32 %v81, %v92
    %v105 = vadd.f32 %v82, %v92
    %v106 = vadd.f32 %v83, %v92
    %v107 = vadd.f32 %v84, %v92
    %v108 = vadd.f32 %v85, %v92
    %v109 = vadd.f32 %v86, %v92
    %v110 = vmax.f32 %v94, 0.0
    %v111 = vmax.f32 %v95, 0.0
    %v112 = vmax.f32 %v96, 0.0
    %v113 = vmax.f32 %v97, 0.0
    %v114 = vmax.f32 %v98, 0.0
    %v115 = vmax.f32 %v99, 0.0
    %v116 = vmax.f32 %v100, 0.0
    %v117 = vmax.f32 %v101, 0.0
    %v118 = vmax.f32 %v102, 0.0
    %v119 = vmax.f32 %v103, 0.0
    %v120 = vmax.f32 %v104, 0.0
    %v121 = vmax.f32 %v105, 0.0
    %v122 = vmax.f32 %v106, 0.0
    %v123 = vmax.f32 %v107, 0.0
    %v124 = vmax.f32 %v108, 0.0
    %v125 = vmax.f32 %v109, 0.0
    %v126 = vpack.c.bf16 %v111, %v110
    %v127 = vpack.c.bf16 %v113, %v112
    %v128 = vpack.c.bf16 %v115, %v114
    %v129 = vpack.c.bf16 %v117, %v116
    %v130 = vpack.c.bf16 %v119, %v118
    %v131 = vpack.c.bf16 %v121, %v120
    %v132 = vpack.c.bf16 %v123, %v122
    %v133 = vpack.c.bf16 %v125, %v124
    %v134 = vld [vmem:[#allocation2] sm:$0xff]
    %v135 = vld [vmem:[#allocation2 + $0x8] sm:$0xff]
    %v136 = vld [vmem:[#allocation2 + $0x10] sm:$0xff]
    %v137 = vld [vmem:[#allocation2 + $0x18] sm:$0xff]
    %v142 = vunpack.c.l.b16 %v134
    %v143 = vunpack.c.h.b16 %v134
    %v144 = vunpack.c.l.b16 %v135
    %v145 = vunpack.c.h.b16 %v135
    %v146 = vunpack.c.l.b16 %v136
    %v147 = vunpack.c.h.b16 %v136
    %v148 = vunpack.c.l.b16 %v137
    %v149 = vunpack.c.h.b16 %v137
    %v150 = vpack.c.b16 %v144, %v142
    %v151 = vpack.c.b16 %v145, %v143
    %v152 = vpack.c.b16 %v148, %v146
    %v153 = vpack.c.b16 %v149, %v147
    %vm158 = vcmask 261120
    %v160 = vsel %vm158, %v126, 0
    %v163 = vsel %vm158, %v127, 0
    %v166 = vsel %vm158, %v128, 0
    %v169 = vsel %vm158, %v129, 0
    %v172 = vsel %vm158, %v130, 0
    %v175 = vsel %vm158, %v131, 0
    %v178 = vsel %vm158, %v132, 0
    %v181 = vsel %vm158, %v133, 0
    %183 = vmatprep.subr.bf16.mxu0 0
    %184 = vmatpush1.bf16.msra.mxu0 0
    %185 = vmatprep.subr.bf16.mxu0 0
    %186 = vmatpush1.bf16.msra.mxu0 0
    %187 = vmatprep.subr.bf16.mxu0 0
    %188 = vmatpush1.bf16.msra.mxu0 0
    %189 = vmatprep.subr.bf16.mxu0 0
    %190 = vmatpush1.bf16.msra.mxu0 0
    %191 = vmatprep.subr.bf16.mxu0 0
    %192 = vmatpush1.bf16.msra.mxu0 0
    %193 = vmatprep.subr.bf16.mxu0 0
    %194 = vmatpush1.bf16.msra.mxu0 0
    %195 = vmatprep.subr.bf16.mxu0 %v153
    %196 = vmatpush1.bf16.msra.mxu0 %v152
    %197 = vmatprep.subr.bf16.mxu0 %v151
    %198 = vmatpush1.bf16.msra.mxu0 %v150
    %199 = vmatprep.subr.bf16.mxu0 0
    %200 = vmatpush2.bf16.msra.mxu0 0
    %201 = vmatprep.subr.bf16.mxu0 0
    %202 = vmatpush2.bf16.msra.mxu0 0
    %203 = vmatprep.subr.bf16.mxu0 0
    %204 = vmatpush2.bf16.msra.mxu0 0
    %205 = vmatprep.subr.bf16.mxu0 0
    %206 = vmatpush2.bf16.msra.mxu0 0
    %207 = vmatprep.subr.bf16.mxu0 0
    %208 = vmatpush2.bf16.msra.mxu0 0
    %209 = vmatprep.subr.bf16.mxu0 0
    %210 = vmatpush2.bf16.msra.mxu0 0
    %211 = vmatprep.subr.bf16.mxu0 0
    %212 = vmatpush2.bf16.msra.mxu0 0
    %213 = vmatprep.subr.bf16.mxu0 0
    %214 = vmatpush2.bf16.msra.mxu0 0
    %215 = vmatprep.mubr.bf16.mxu0 0
    %216 = vmatmul.mubr.bf16.gmra.mxu0 %v160
    %v217 = vpop.f32.mrf.mxu0
    %v218 = vadd.f32 0.0, %v217
    %v219 = vpop.f32.mrf.mxu0
    %v220 = vadd.f32 0.0, %v219
    %v221 = vpop.f32.mrf.mxu0
    %v222 = vadd.f32 0.0, %v221
    %v223 = vpop.f32.mrf.mxu0
    %v224 = vadd.f32 0.0, %v223
    %225 = vmatprep.mubr.bf16.mxu0 0
    %226 = vmatmul.mubr.bf16.gmra.mxu0 %v163
    %v227 = vpop.f32.mrf.mxu0
    %v228 = vadd.f32 0.0, %v227
    %v229 = vpop.f32.mrf.mxu0
    %v230 = vadd.f32 0.0, %v229
    %v231 = vpop.f32.mrf.mxu0
    %v232 = vadd.f32 0.0, %v231
    %v233 = vpop.f32.mrf.mxu0
    %v234 = vadd.f32 0.0, %v233
    %235 = vmatprep.mubr.bf16.mxu0 0
    %236 = vmatmul.mubr.bf16.gmra.mxu0 %v166
    %v237 = vpop.f32.mrf.mxu0
    %v238 = vadd.f32 0.0, %v237
    %v239 = vpop.f32.mrf.mxu0
    %v240 = vadd.f32 0.0, %v239
    %v241 = vpop.f32.mrf.mxu0
    %v242 = vadd.f32 0.0, %v241
    %v243 = vpop.f32.mrf.mxu0
    %v244 = vadd.f32 0.0, %v243
    %245 = vmatprep.mubr.bf16.mxu0 0
    %246 = vmatmul.mubr.bf16.gmra.mxu0 %v169
    %v247 = vpop.f32.mrf.mxu0
    %v248 = vadd.f32 0.0, %v247
    %v249 = vpop.f32.mrf.mxu0
    %v250 = vadd.f32 0.0, %v249
    %v251 = vpop.f32.mrf.mxu0
    %v252 = vadd.f32 0.0, %v251
    %v253 = vpop.f32.mrf.mxu0
    %v254 = vadd.f32 0.0, %v253
    %255 = vmatprep.mubr.bf16.mxu0 0
    %256 = vmatmul.mubr.bf16.gmra.mxu0 %v172
    %v257 = vpop.f32.mrf.mxu0
    %v258 = vadd.f32 0.0, %v257
    %v259 = vpop.f32.mrf.mxu0
    %v260 = vadd.f32 0.0, %v259
    %v261 = vpop.f32.mrf.mxu0
    %v262 = vadd.f32 0.0, %v261
    %v263 = vpop.f32.mrf.mxu0
    %v264 = vadd.f32 0.0, %v263
    %265 = vmatprep.mubr.bf16.mxu0 0
    %266 = vmatmul.mubr.bf16.gmra.mxu0 %v175
    %v267 = vpop.f32.mrf.mxu0
    %v268 = vadd.f32 0.0, %v267
    %v269 = vpop.f32.mrf.mxu0
    %v270 = vadd.f32 0.0, %v269
    %v271 = vpop.f32.mrf.mxu0
    %v272 = vadd.f32 0.0, %v271
    %v273 = vpop.f32.mrf.mxu0
    %v274 = vadd.f32 0.0, %v273
    %275 = vmatprep.mubr.bf16.mxu0 0
    %276 = vmatmul.mubr.bf16.gmra.mxu0 %v178
    %v277 = vpop.f32.mrf.mxu0
    %v278 = vadd.f32 0.0, %v277
    %v279 = vpop.f32.mrf.mxu0
    %v280 = vadd.f32 0.0, %v279
    %v281 = vpop.f32.mrf.mxu0
    %v282 = vadd.f32 0.0, %v281
    %v283 = vpop.f32.mrf.mxu0
    %v284 = vadd.f32 0.0, %v283
    %285 = vmatprep.mubr.bf16.mxu0 0
    %286 = vmatmul.mubr.bf16.gmra.mxu0 %v181
    %v287 = vpop.f32.mrf.mxu0
    %v288 = vadd.f32 0.0, %v287
    %v289 = vpop.f32.mrf.mxu0
    %v290 = vadd.f32 0.0, %v289
    %v291 = vpop.f32.mrf.mxu0
    %v292 = vadd.f32 0.0, %v291
    %v293 = vpop.f32.mrf.mxu0
    %v294 = vadd.f32 0.0, %v293
    %295 = vdwg.mxu0
    %v296 = vpack.c.bf16 %v222, %v218
    %v297 = vpack.c.bf16 %v224, %v220
    %v298 = vpack.c.bf16 %v232, %v228
    %v299 = vpack.c.bf16 %v234, %v230
    %v300 = vpack.c.bf16 %v242, %v238
    %v301 = vpack.c.bf16 %v244, %v240
    %v302 = vpack.c.bf16 %v252, %v248
    %v303 = vpack.c.bf16 %v254, %v250
    %v304 = vpack.c.bf16 %v262, %v258
    %v305 = vpack.c.bf16 %v264, %v260
    %v306 = vpack.c.bf16 %v272, %v268
    %v307 = vpack.c.bf16 %v274, %v270
    %v308 = vpack.c.bf16 %v282, %v278
    %v309 = vpack.c.bf16 %v284, %v280
    %v310 = vpack.c.bf16 %v292, %v288
    %v311 = vpack.c.bf16 %v294, %v290
    %v328 = vunpack.c.l.b16 %v296
    %v329 = vunpack.c.l.b16 %v297
    %v330 = vunpack.c.h.b16 %v296
    %v331 = vunpack.c.h.b16 %v297
    %v332 = vunpack.c.l.b16 %v298
    %v333 = vunpack.c.l.b16 %v299
    %v334 = vunpack.c.h.b16 %v298
    %v335 = vunpack.c.h.b16 %v299
    %v336 = vunpack.c.l.b16 %v300
    %v337 = vunpack.c.l.b16 %v301
    %v338 = vunpack.c.h.b16 %v300
    %v339 = vunpack.c.h.b16 %v301
    %v340 = vunpack.c.l.b16 %v302
    %v341 = vunpack.c.l.b16 %v303
    %v342 = vunpack.c.h.b16 %v302
    %v343 = vunpack.c.h.b16 %v303
    %v344 = vunpack.c.l.b16 %v304
    %v345 = vunpack.c.l.b16 %v305
    %v346 = vunpack.c.h.b16 %v304
    %v347 = vunpack.c.h.b16 %v305
    %v348 = vunpack.c.l.b16 %v306
    %v349 = vunpack.c.l.b16 %v307
    %v350 = vunpack.c.h.b16 %v306
    %v351 = vunpack.c.h.b16 %v307
    %v352 = vunpack.c.l.b16 %v308
    %v353 = vunpack.c.l.b16 %v309
    %v354 = vunpack.c.h.b16 %v308
    %v355 = vunpack.c.h.b16 %v309
    %v356 = vunpack.c.l.b16 %v310
    %v357 = vunpack.c.l.b16 %v311
    %v358 = vunpack.c.h.b16 %v310
    %v359 = vunpack.c.h.b16 %v311
    %v360 = vpack.c.b16 %v329, %v328
    %v361 = vpack.c.b16 %v331, %v330
    %v362 = vpack.c.b16 %v333, %v332
    %v363 = vpack.c.b16 %v335, %v334
    %v364 = vpack.c.b16 %v337, %v336
    %v365 = vpack.c.b16 %v339, %v338
    %v366 = vpack.c.b16 %v341, %v340
    %v367 = vpack.c.b16 %v343, %v342
    %v368 = vpack.c.b16 %v345, %v344
    %v369 = vpack.c.b16 %v347, %v346
    %v370 = vpack.c.b16 %v349, %v348
    %v371 = vpack.c.b16 %v351, %v350
    %v372 = vpack.c.b16 %v353, %v352
    %v373 = vpack.c.b16 %v355, %v354
    %v374 = vpack.c.b16 %v357, %v356
    %v375 = vpack.c.b16 %v359, %v358
    %392 = vst [vmem:[%s4] sm:$0xff] %v360
    %393 = vst [vmem:[%s4 + $0x8] sm:$0xff] %v361
    %394 = vst [vmem:[%s4 + $0x10] sm:$0xff] %v362
    %395 = vst [vmem:[%s4 + $0x18] sm:$0xff] %v363
    %396 = vst [vmem:[%s4 + $0x20] sm:$0xff] %v364
    %397 = vst [vmem:[%s4 + $0x28] sm:$0xff] %v365
    %398 = vst [vmem:[%s4 + $0x30] sm:$0xff] %v366
    %399 = vst [vmem:[%s4 + $0x38] sm:$0xff] %v367
    %400 = vst [vmem:[%s4 + $0x40] sm:$0xff] %v368
    %401 = vst [vmem:[%s4 + $0x48] sm:$0xff] %v369
    %402 = vst [vmem:[%s4 + $0x50] sm:$0xff] %v370
    %403 = vst [vmem:[%s4 + $0x58] sm:$0xff] %v371
    %404 = vst [vmem:[%s4 + $0x60] sm:$0xff] %v372
    %405 = vst [vmem:[%s4 + $0x68] sm:$0xff] %v373
    %406 = vst [vmem:[%s4 + $0x70] sm:$0xff] %v374
    %407 = vst [vmem:[%s4 + $0x78] sm:$0xff] %v375
    // Predicated region
    $region22: #{generator_forward.7} parent=1 // pred_check
      _
    $region23: #{generator_forward.7} parent=1 // pred_check_branch
      %409 = sbr.rel (0) target = $region25
    $region24: #{generator_forward.7} parent=1 // pred_region
      _
    $region25: #{generator_forward.7} parent=1 // pred_fallthru
      _
    // Predicated region
    $region26: #{generator_forward.7} parent=1 // pred_check
      _
    $region27: #{generator_forward.7} parent=1 // pred_check_branch
      %411 = sbr.rel (0) target = $region29
    $region28: #{generator_forward.7} parent=1 // pred_region
      _
    $region29: #{generator_forward.7} parent=1 // pred_fallthru
      _
    %412 = vsyncpa [#allocation3], 1

// kernel: generator_forward.8
$region0: #{generator_forward.8}
  #allocation0 [shape = 'u32[]', space=smem, size = 0x4, offset = 0x4, fixed_abs, tag = 'smem constant byte address 0x4 - core index']
  #allocation1 [shape = 'u32[144,128]{1,0:T(1,128)}', space=vmem, size = 0x12000, scoped, tag = 'internal scratch']
  %s0 = inlined_call_operand.vmem [shape: bf16[512,16], index: 0, kind: input, shape index: {}]
  %s1 = inlined_call_operand.vmem [shape: f32[1,16], index: 1, kind: input, shape index: {}]
  %s2 = inlined_call_operand.vmem [shape: f32[1,16], index: 2, kind: input, shape index: {}]
  %s3 = inlined_call_operand.vmem [shape: bf16[16,128], index: 3, kind: input, shape index: {}]
  %s4 = inlined_call_operand.vmem [shape: bf16[512,128], index: 4, kind: output, shape index: {}]
  %s5 = sld [smem:[#allocation0]]
  $region26: #{generator_forward.8} parent=0
    _
  %s7 = ssub.s32 1, %s5
  %s8 = scalar_select 0, %s7, %s5
  // Predicated region
  $region2: #{generator_forward.8} parent=0 // pred_check
    _
  $region3: #{generator_forward.8} parent=0 // pred_check_branch
    %10 = sbr.rel (0) target = $region5
  $region4: #{generator_forward.8} parent=0 // pred_region
    _
  $region5: #{generator_forward.8} parent=0 // pred_fallthru
    _
  // Predicated region
  $region6: #{generator_forward.8} parent=0 // pred_check
    _
  $region7: #{generator_forward.8} parent=0 // pred_check_branch
    %12 = sbr.rel (0) target = $region9
  $region8: #{generator_forward.8} parent=0 // pred_region
    _
  $region9: #{generator_forward.8} parent=0 // pred_fallthru
    _
  // Predicated region
  $region10: #{generator_forward.8} parent=0 // pred_check
    _
  $region11: #{generator_forward.8} parent=0 // pred_check_branch
    %14 = sbr.rel (0) target = $region13
  $region12: #{generator_forward.8} parent=0 // pred_region
    _
  $region13: #{generator_forward.8} parent=0 // pred_fallthru
    _
  // Predicated region
  $region14: #{generator_forward.8} parent=0 // pred_check
    _
  $region15: #{generator_forward.8} parent=0 // pred_check_branch
    %16 = sbr.rel (0) target = $region17
  $region16: #{generator_forward.8} parent=0 // pred_region
    _
  $region17: #{generator_forward.8} parent=0 // pred_fallthru
    _
  %v18 = vld [vmem:[%s0] sm:$0xf]
  %v19 = vld [vmem:[%s0 + $0x4] sm:$0xf]
  %v20 = vld [vmem:[%s0 + $0x8] sm:$0xf]
  %v21 = vld [vmem:[%s0 + $0xc] sm:$0xf]
  %v22 = vld [vmem:[%s0 + $0x10] sm:$0xf]
  %v23 = vld [vmem:[%s0 + $0x14] sm:$0xf]
  %v24 = vld [vmem:[%s0 + $0x18] sm:$0xf]
  %v25 = vld [vmem:[%s0 + $0x1c] sm:$0xf]
  %v26 = vld [vmem:[%s0 + $0x20] sm:$0xf]
  %v27 = vld [vmem:[%s0 + $0x24] sm:$0xf]
  %v28 = vld [vmem:[%s0 + $0x28] sm:$0xf]
  %v29 = vld [vmem:[%s0 + $0x2c] sm:$0xf]
  %v30 = vld [vmem:[%s0 + $0x30] sm:$0xf]
  %v31 = vld [vmem:[%s0 + $0x34] sm:$0xf]
  %v32 = vld [vmem:[%s0 + $0x38] sm:$0xf]
  %v33 = vld [vmem:[%s0 + $0x3c] sm:$0xf]
  %v34 = vld [vmem:[%s0 + $0x40] sm:$0xf]
  %v35 = vld [vmem:[%s0 + $0x44] sm:$0xf]
  %v36 = vld [vmem:[%s0 + $0x48] sm:$0xf]
  %v37 = vld [vmem:[%s0 + $0x4c] sm:$0xf]
  %v38 = vld [vmem:[%s0 + $0x50] sm:$0xf]
  %v39 = vld [vmem:[%s0 + $0x54] sm:$0xf]
  %v40 = vld [vmem:[%s0 + $0x58] sm:$0xf]
  %v41 = vld [vmem:[%s0 + $0x5c] sm:$0xf]
  %v42 = vld [vmem:[%s0 + $0x60] sm:$0xf]
  %v43 = vld [vmem:[%s0 + $0x64] sm:$0xf]
  %v44 = vld [vmem:[%s0 + $0x68] sm:$0xf]
  %v45 = vld [vmem:[%s0 + $0x6c] sm:$0xf]
  %v46 = vld [vmem:[%s0 + $0x70] sm:$0xf]
  %v47 = vld [vmem:[%s0 + $0x74] sm:$0xf]
  %v48 = vld [vmem:[%s0 + $0x78] sm:$0xf]
  %v49 = vld [vmem:[%s0 + $0x7c] sm:$0xf]
  %v50 = vld [vmem:[%s0 + $0x80] sm:$0xf]
  %v51 = vld [vmem:[%s0 + $0x84] sm:$0xf]
  %v52 = vld [vmem:[%s0 + $0x88] sm:$0xf]
  %v53 = vld [vmem:[%s0 + $0x8c] sm:$0xf]
  %v54 = vld [vmem:[%s0 + $0x90] sm:$0xf]
  %v55 = vld [vmem:[%s0 + $0x94] sm:$0xf]
  %v56 = vld [vmem:[%s0 + $0x98] sm:$0xf]
  %v57 = vld [vmem:[%s0 + $0x9c] sm:$0xf]
  %v58 = vld [vmem:[%s0 + $0xa0] sm:$0xf]
  %v59 = vld [vmem:[%s0 + $0xa4] sm:$0xf]
  %v60 = vld [vmem:[%s0 + $0xa8] sm:$0xf]
  %v61 = vld [vmem:[%s0 + $0xac] sm:$0xf]
  %v62 = vld [vmem:[%s0 + $0xb0] sm:$0xf]
  %v63 = vld [vmem:[%s0 + $0xb4] sm:$0xf]
  %v64 = vld [vmem:[%s0 + $0xb8] sm:$0xf]
  %v65 = vld [vmem:[%s0 + $0xbc] sm:$0xf]
  %v66 = vld [vmem:[%s0 + $0xc0] sm:$0xf]
  %v67 = vld [vmem:[%s0 + $0xc4] sm:$0xf]
  %v68 = vld [vmem:[%s0 + $0xc8] sm:$0xf]
  %v69 = vld [vmem:[%s0 + $0xcc] sm:$0xf]
  %v70 = vld [vmem:[%s0 + $0xd0] sm:$0xf]
  %v71 = vld [vmem:[%s0 + $0xd4] sm:$0xf]
  %v72 = vld [vmem:[%s0 + $0xd8] sm:$0xf]
  %v73 = vld [vmem:[%s0 + $0xdc] sm:$0xf]
  %v74 = vld [vmem:[%s0 + $0xe0] sm:$0xf]
  %v75 = vld [vmem:[%s0 + $0xe4] sm:$0xf]
  %v76 = vld [vmem:[%s0 + $0xe8] sm:$0xf]
  %v77 = vld [vmem:[%s0 + $0xec] sm:$0xf]
  %v78 = vld [vmem:[%s0 + $0xf0] sm:$0xf]
  %v79 = vld [vmem:[%s0 + $0xf4] sm:$0xf]
  %v80 = vld [vmem:[%s0 + $0xf8] sm:$0xf]
  %v81 = vld [vmem:[%s0 + $0xfc] sm:$0xf]
  %v82 = vunpack.c.l.bf16 %v18
  %v83 = vunpack.c.l.bf16 %v19
  %v84 = vunpack.c.l.bf16 %v20
  %v85 = vunpack.c.l.bf16 %v21
  %v86 = vunpack.c.l.bf16 %v22
  %v87 = vunpack.c.l.bf16 %v23
  %v88 = vunpack.c.l.bf16 %v24
  %v89 = vunpack.c.l.bf16 %v25
  %v90 = vunpack.c.l.bf16 %v26
  %v91 = vunpack.c.l.bf16 %v27
  %v92 = vunpack.c.l.bf16 %v28
  %v93 = vunpack.c.l.bf16 %v29
  %v94 = vunpack.c.l.bf16 %v30
  %v95 = vunpack.c.l.bf16 %v31
  %v96 = vunpack.c.l.bf16 %v32
  %v97 = vunpack.c.l.bf16 %v33
  %v98 = vunpack.c.l.bf16 %v34
  %v99 = vunpack.c.l.bf16 %v35
  %v100 = vunpack.c.l.bf16 %v36
  %v101 = vunpack.c.l.bf16 %v37
  %v102 = vunpack.c.l.bf16 %v38
  %v103 = vunpack.c.l.bf16 %v39
  %v104 = vunpack.c.l.bf16 %v40
  %v105 = vunpack.c.l.bf16 %v41
  %v106 = vunpack.c.l.bf16 %v42
  %v107 = vunpack.c.l.bf16 %v43
  %v108 = vunpack.c.l.bf16 %v44
  %v109 = vunpack.c.l.bf16 %v45
  %v110 = vunpack.c.l.bf16 %v46
  %v111 = vunpack.c.l.bf16 %v47
  %v112 = vunpack.c.l.bf16 %v48
  %v113 = vunpack.c.l.bf16 %v49
  %v114 = vunpack.c.l.bf16 %v50
  %v115 = vunpack.c.l.bf16 %v51
  %v116 = vunpack.c.l.bf16 %v52
  %v117 = vunpack.c.l.bf16 %v53
  %v118 = vunpack.c.l.bf16 %v54
  %v119 = vunpack.c.l.bf16 %v55
  %v120 = vunpack.c.l.bf16 %v56
  %v121 = vunpack.c.l.bf16 %v57
  %v122 = vunpack.c.l.bf16 %v58
  %v123 = vunpack.c.l.bf16 %v59
  %v124 = vunpack.c.l.bf16 %v60
  %v125 = vunpack.c.l.bf16 %v61
  %v126 = vunpack.c.l.bf16 %v62
  %v127 = vunpack.c.l.bf16 %v63
  %v128 = vunpack.c.l.bf16 %v64
  %v129 = vunpack.c.l.bf16 %v65
  %v130 = vunpack.c.l.bf16 %v66
  %v131 = vunpack.c.l.bf16 %v67
  %v132 = vunpack.c.l.bf16 %v68
  %v133 = vunpack.c.l.bf16 %v69
  %v134 = vunpack.c.l.bf16 %v70
  %v135 = vunpack.c.l.bf16 %v71
  %v136 = vunpack.c.l.bf16 %v72
  %v137 = vunpack.c.l.bf16 %v73
  %v138 = vunpack.c.l.bf16 %v74
  %v139 = vunpack.c.l.bf16 %v75
  %v140 = vunpack.c.l.bf16 %v76
  %v141 = vunpack.c.l.bf16 %v77
  %v142 = vunpack.c.l.bf16 %v78
  %v143 = vunpack.c.l.bf16 %v79
  %v144 = vunpack.c.l.bf16 %v80
  %v145 = vunpack.c.l.bf16 %v81
  %v146 = vld [vmem:[%s1] sm:$0x1]
  %v148 = vlaneseq
  %v149 = vshrl.u32 %v148, 7
  %v150 = vsub.s32 0, %v149
  %v151 = vrot.slane %v146, %v150
  %v153 = vmul.f32 %v82, %v151
  %v154 = vmul.f32 %v83, %v151
  %v155 = vmul.f32 %v84, %v151
  %v156 = vmul.f32 %v85, %v151
  %v157 = vmul.f32 %v86, %v151
  %v158 = vmul.f32 %v87, %v151
  %v159 = vmul.f32 %v88, %v151
  %v160 = vmul.f32 %v89, %v151
  %v161 = vmul.f32 %v90, %v151
  %v162 = vmul.f32 %v91, %v151
  %v163 = vmul.f32 %v92, %v151
  %v164 = vmul.f32 %v93, %v151
  %v165 = vmul.f32 %v94, %v151
  %v166 = vmul.f32 %v95, %v151
  %v167 = vmul.f32 %v96, %v151
  %v168 = vmul.f32 %v97, %v151
  %v169 = vmul.f32 %v98, %v151
  %v170 = vmul.f32 %v99, %v151
  %v171 = vmul.f32 %v100, %v151
  %v172 = vmul.f32 %v101, %v151
  %v173 = vmul.f32 %v102, %v151
  %v174 = vmul.f32 %v103, %v151
  %v175 = vmul.f32 %v104, %v151
  %v176 = vmul.f32 %v105, %v151
  %v177 = vmul.f32 %v106, %v151
  %v178 = vmul.f32 %v107, %v151
  %v179 = vmul.f32 %v108, %v151
  %v180 = vmul.f32 %v109, %v151
  %v181 = vmul.f32 %v110, %v151
  %v182 = vmul.f32 %v111, %v151
  %v183 = vmul.f32 %v112, %v151
  %v184 = vmul.f32 %v113, %v151
  %v185 = vmul.f32 %v114, %v151
  %v186 = vmul.f32 %v115, %v151
  %v187 = vmul.f32 %v116, %v151
  %v188 = vmul.f32 %v117, %v151
  %v189 = vmul.f32 %v118, %v151
  %v190 = vmul.f32 %v119, %v151
  %v191 = vmul.f32 %v120, %v151
  %v192 = vmul.f32 %v121, %v151
  %v193 = vmul.f32 %v122, %v151
  %v194 = vmul.f32 %v123, %v151
  %v195 = vmul.f32 %v124, %v151
  %v196 = vmul.f32 %v125, %v151
  %v197 = vmul.f32 %v126, %v151
  %v198 = vmul.f32 %v127, %v151
  %v199 = vmul.f32 %v128, %v151
  %v200 = vmul.f32 %v129, %v151
  %v201 = vmul.f32 %v130, %v151
  %v202 = vmul.f32 %v131, %v151
  %v203 = vmul.f32 %v132, %v151
  %v204 = vmul.f32 %v133, %v151
  %v205 = vmul.f32 %v134, %v151
  %v206 = vmul.f32 %v135, %v151
  %v207 = vmul.f32 %v136, %v151
  %v208 = vmul.f32 %v137, %v151
  %v209 = vmul.f32 %v138, %v151
  %v210 = vmul.f32 %v139, %v151
  %v211 = vmul.f32 %v140, %v151
  %v212 = vmul.f32 %v141, %v151
  %v213 = vmul.f32 %v142, %v151
  %v214 = vmul.f32 %v143, %v151
  %v215 = vmul.f32 %v144, %v151
  %v216 = vmul.f32 %v145, %v151
  %v217 = vld [vmem:[%s2] sm:$0x1]
  %v219 = vlaneseq
  %v220 = vshrl.u32 %v219, 7
  %v221 = vsub.s32 0, %v220
  %v222 = vrot.slane %v217, %v221
  %v224 = vadd.f32 %v153, %v222
  %v225 = vadd.f32 %v154, %v222
  %v226 = vadd.f32 %v155, %v222
  %v227 = vadd.f32 %v156, %v222
  %v228 = vadd.f32 %v157, %v222
  %v229 = vadd.f32 %v158, %v222
  %v230 = vadd.f32 %v159, %v222
  %v231 = vadd.f32 %v160, %v222
  %v232 = vadd.f32 %v161, %v222
  %v233 = vadd.f32 %v162, %v222
  %v234 = vadd.f32 %v163, %v222
  %v235 = vadd.f32 %v164, %v222
  %v236 = vadd.f32 %v165, %v222
  %v237 = vadd.f32 %v166, %v222
  %v238 = vadd.f32 %v167, %v222
  %v239 = vadd.f32 %v168, %v222
  %v240 = vadd.f32 %v169, %v222
  %v241 = vadd.f32 %v170, %v222
  %v242 = vadd.f32 %v171, %v222
  %v243 = vadd.f32 %v172, %v222
  %v244 = vadd.f32 %v173, %v222
  %v245 = vadd.f32 %v174, %v222
  %v246 = vadd.f32 %v175, %v222
  %v247 = vadd.f32 %v176, %v222
  %v248 = vadd.f32 %v177, %v222
  %v249 = vadd.f32 %v178, %v222
  %v250 = vadd.f32 %v179, %v222
  %v251 = vadd.f32 %v180, %v222
  %v252 = vadd.f32 %v181, %v222
  %v253 = vadd.f32 %v182, %v222
  %v254 = vadd.f32 %v183, %v222
  %v255 = vadd.f32 %v184, %v222
  %v256 = vadd.f32 %v185, %v222
  %v257 = vadd.f32 %v186, %v222
  %v258 = vadd.f32 %v187, %v222
  %v259 = vadd.f32 %v188, %v222
  %v260 = vadd.f32 %v189, %v222
  %v261 = vadd.f32 %v190, %v222
  %v262 = vadd.f32 %v191, %v222
  %v263 = vadd.f32 %v192, %v222
  %v264 = vadd.f32 %v193, %v222
  %v265 = vadd.f32 %v194, %v222
  %v266 = vadd.f32 %v195, %v222
  %v267 = vadd.f32 %v196, %v222
  %v268 = vadd.f32 %v197, %v222
  %v269 = vadd.f32 %v198, %v222
  %v270 = vadd.f32 %v199, %v222
  %v271 = vadd.f32 %v200, %v222
  %v272 = vadd.f32 %v201, %v222
  %v273 = vadd.f32 %v202, %v222
  %v274 = vadd.f32 %v203, %v222
  %v275 = vadd.f32 %v204, %v222
  %v276 = vadd.f32 %v205, %v222
  %v277 = vadd.f32 %v206, %v222
  %v278 = vadd.f32 %v207, %v222
  %v279 = vadd.f32 %v208, %v222
  %v280 = vadd.f32 %v209, %v222
  %v281 = vadd.f32 %v210, %v222
  %v282 = vadd.f32 %v211, %v222
  %v283 = vadd.f32 %v212, %v222
  %v284 = vadd.f32 %v213, %v222
  %v285 = vadd.f32 %v214, %v222
  %v286 = vadd.f32 %v215, %v222
  %v287 = vadd.f32 %v216, %v222
  %v288 = vmax.f32 %v224, 0.0
  %v289 = vmax.f32 %v225, 0.0
  %v290 = vmax.f32 %v226, 0.0
  %v291 = vmax.f32 %v227, 0.0
  %v292 = vmax.f32 %v228, 0.0
  %v293 = vmax.f32 %v229, 0.0
  %v294 = vmax.f32 %v230, 0.0
  %v295 = vmax.f32 %v231, 0.0
  %v296 = vmax.f32 %v232, 0.0
  %v297 = vmax.f32 %v233, 0.0
  %v298 = vmax.f32 %v234, 0.0
  %v299 = vmax.f32 %v235, 0.0
  %v300 = vmax.f32 %v236, 0.0
  %v301 = vmax.f32 %v237, 0.0
  %v302 = vmax.f32 %v238, 0.0
  %v303 = vmax.f32 %v239, 0.0
  %v304 = vmax.f32 %v240, 0.0
  %v305 = vmax.f32 %v241, 0.0
  %v306 = vmax.f32 %v242, 0.0
  %v307 = vmax.f32 %v243, 0.0
  %v308 = vmax.f32 %v244, 0.0
  %v309 = vmax.f32 %v245, 0.0
  %v310 = vmax.f32 %v246, 0.0
  %v311 = vmax.f32 %v247, 0.0
  %v312 = vmax.f32 %v248, 0.0
  %v313 = vmax.f32 %v249, 0.0
  %v314 = vmax.f32 %v250, 0.0
  %v315 = vmax.f32 %v251, 0.0
  %v316 = vmax.f32 %v252, 0.0
  %v317 = vmax.f32 %v253, 0.0
  %v318 = vmax.f32 %v254, 0.0
  %v319 = vmax.f32 %v255, 0.0
  %v320 = vmax.f32 %v256, 0.0
  %v321 = vmax.f32 %v257, 0.0
  %v322 = vmax.f32 %v258, 0.0
  %v323 = vmax.f32 %v259, 0.0
  %v324 = vmax.f32 %v260, 0.0
  %v325 = vmax.f32 %v261, 0.0
  %v326 = vmax.f32 %v262, 0.0
  %v327 = vmax.f32 %v263, 0.0
  %v328 = vmax.f32 %v264, 0.0
  %v329 = vmax.f32 %v265, 0.0
  %v330 = vmax.f32 %v266, 0.0
  %v331 = vmax.f32 %v267, 0.0
  %v332 = vmax.f32 %v268, 0.0
  %v333 = vmax.f32 %v269, 0.0
  %v334 = vmax.f32 %v270, 0.0
  %v335 = vmax.f32 %v271, 0.0
  %v336 = vmax.f32 %v272, 0.0
  %v337 = vmax.f32 %v273, 0.0
  %v338 = vmax.f32 %v274, 0.0
  %v339 = vmax.f32 %v275, 0.0
  %v340 = vmax.f32 %v276, 0.0
  %v341 = vmax.f32 %v277, 0.0
  %v342 = vmax.f32 %v278, 0.0
  %v343 = vmax.f32 %v279, 0.0
  %v344 = vmax.f32 %v280, 0.0
  %v345 = vmax.f32 %v281, 0.0
  %v346 = vmax.f32 %v282, 0.0
  %v347 = vmax.f32 %v283, 0.0
  %v348 = vmax.f32 %v284, 0.0
  %v349 = vmax.f32 %v285, 0.0
  %v350 = vmax.f32 %v286, 0.0
  %v351 = vmax.f32 %v287, 0.0
  %v352 = vpack.c.bf16 %v289, %v288
  %v353 = vpack.c.bf16 %v291, %v290
  %v354 = vpack.c.bf16 %v293, %v292
  %v355 = vpack.c.bf16 %v295, %v294
  %v356 = vpack.c.bf16 %v297, %v296
  %v357 = vpack.c.bf16 %v299, %v298
  %v358 = vpack.c.bf16 %v301, %v300
  %v359 = vpack.c.bf16 %v303, %v302
  %v360 = vpack.c.bf16 %v305, %v304
  %v361 = vpack.c.bf16 %v307, %v306
  %v362 = vpack.c.bf16 %v309, %v308
  %v363 = vpack.c.bf16 %v311, %v310
  %v364 = vpack.c.bf16 %v313, %v312
  %v365 = vpack.c.bf16 %v315, %v314
  %v366 = vpack.c.bf16 %v317, %v316
  %v367 = vpack.c.bf16 %v319, %v318
  %v368 = vpack.c.bf16 %v321, %v320
  %v369 = vpack.c.bf16 %v323, %v322
  %v370 = vpack.c.bf16 %v325, %v324
  %v371 = vpack.c.bf16 %v327, %v326
  %v372 = vpack.c.bf16 %v329, %v328
  %v373 = vpack.c.bf16 %v331, %v330
  %v374 = vpack.c.bf16 %v333, %v332
  %v375 = vpack.c.bf16 %v335, %v334
  %v376 = vpack.c.bf16 %v337, %v336
  %v377 = vpack.c.bf16 %v339, %v338
  %v378 = vpack.c.bf16 %v341, %v340
  %v379 = vpack.c.bf16 %v343, %v342
  %v380 = vpack.c.bf16 %v345, %v344
  %v381 = vpack.c.bf16 %v347, %v346
  %v382 = vpack.c.bf16 %v349, %v348
  %v383 = vpack.c.bf16 %v351, %v350
  %v384 = vld [vmem:[%s3] sm:$0xf]
  %v385 = vld [vmem:[%s3 + $0x4] sm:$0xf]
  %v388 = vunpack.c.l.b16 %v384
  %v389 = vunpack.c.l.b16 %v385
  %v390 = vpack.c.b16 %v389, %v388
  %vm392 = vcmask 130048
  %v394 = vsel %vm392, %v352, 0
  %v397 = vsel %vm392, %v353, 0
  %v400 = vsel %vm392, %v354, 0
  %v403 = vsel %vm392, %v355, 0
  %v406 = vsel %vm392, %v356, 0
  %v409 = vsel %vm392, %v357, 0
  %v412 = vsel %vm392, %v358, 0
  %v415 = vsel %vm392, %v359, 0
  %v418 = vsel %vm392, %v360, 0
  %v421 = vsel %vm392, %v361, 0
  %v424 = vsel %vm392, %v362, 0
  %v427 = vsel %vm392, %v363, 0
  %v430 = vsel %vm392, %v364, 0
  %v433 = vsel %vm392, %v365, 0
  %v436 = vsel %vm392, %v366, 0
  %v439 = vsel %vm392, %v367, 0
  %v442 = vsel %vm392, %v368, 0
  %v445 = vsel %vm392, %v369, 0
  %v448 = vsel %vm392, %v370, 0
  %v451 = vsel %vm392, %v371, 0
  %v454 = vsel %vm392, %v372, 0
  %v457 = vsel %vm392, %v373, 0
  %v460 = vsel %vm392, %v374, 0
  %v463 = vsel %vm392, %v375, 0
  %v466 = vsel %vm392, %v376, 0
  %v469 = vsel %vm392, %v377, 0
  %v472 = vsel %vm392, %v378, 0
  %v475 = vsel %vm392, %v379, 0
  %v478 = vsel %vm392, %v380, 0
  %v481 = vsel %vm392, %v381, 0
  %v484 = vsel %vm392, %v382, 0
  %v487 = vsel %vm392, %v383, 0
  %489 = vmatprep.subr.bf16.mxu0 0
  %490 = vmatpush1.bf16.msra.mxu0 0
  %491 = vmatprep.subr.bf16.mxu0 0
  %492 = vmatpush1.bf16.msra.mxu0 0
  %493 = vmatprep.subr.bf16.mxu0 0
  %494 = vmatpush1.bf16.msra.mxu0 0
  %495 = vmatprep.subr.bf16.mxu0 0
  %496 = vmatpush1.bf16.msra.mxu0 0
  %497 = vmatprep.subr.bf16.mxu0 0
  %498 = vmatpush1.bf16.msra.mxu0 0
  %499 = vmatprep.subr.bf16.mxu0 0
  %500 = vmatpush1.bf16.msra.mxu0 0
  %501 = vmatprep.subr.bf16.mxu0 0
  %502 = vmatpush1.bf16.msra.mxu0 0
  %503 = vmatprep.subr.bf16.mxu0 0
  %504 = vmatpush1.bf16.msra.mxu0 %v390
  %505 = vmatprep.subr.bf16.mxu0 0
  %506 = vmatpush2.bf16.msra.mxu0 0
  %507 = vmatprep.subr.bf16.mxu0 0
  %508 = vmatpush2.bf16.msra.mxu0 0
  %509 = vmatprep.subr.bf16.mxu0 0
  %510 = vmatpush2.bf16.msra.mxu0 0
  %511 = vmatprep.subr.bf16.mxu0 0
  %512 = vmatpush2.bf16.msra.mxu0 0
  %513 = vmatprep.subr.bf16.mxu0 0
  %514 = vmatpush2.bf16.msra.mxu0 0
  %515 = vmatprep.subr.bf16.mxu0 0
  %516 = vmatpush2.bf16.msra.mxu0 0
  %517 = vmatprep.subr.bf16.mxu0 0
  %518 = vmatpush2.bf16.msra.mxu0 0
  %519 = vmatprep.subr.bf16.mxu0 0
  %520 = vmatpush2.bf16.msra.mxu0 0
  %521 = vmatprep.mubr.bf16.mxu0 0
  %522 = vmatmul.mubr.bf16.gmra.mxu0 %v394
  %v523 = vpop.f32.mrf.mxu0
  %v524 = vadd.f32 0.0, %v523
  %v525 = vpop.f32.mrf.mxu0
  %v526 = vpop.f32.mrf.mxu0
  %v527 = vadd.f32 0.0, %v526
  %v528 = vpop.f32.mrf.mxu0
  %529 = vmatprep.mubr.bf16.mxu0 0
  %530 = vmatmul.mubr.bf16.gmra.mxu0 %v397
  %v531 = vpop.f32.mrf.mxu0
  %v532 = vadd.f32 0.0, %v531
  %v533 = vpop.f32.mrf.mxu0
  %v534 = vpop.f32.mrf.mxu0
  %v535 = vadd.f32 0.0, %v534
  %v536 = vpop.f32.mrf.mxu0
  %537 = vmatprep.mubr.bf16.mxu0 0
  %538 = vmatmul.mubr.bf16.gmra.mxu0 %v400
  %v539 = vpop.f32.mrf.mxu0
  %v540 = vadd.f32 0.0, %v539
  %v541 = vpop.f32.mrf.mxu0
  %v542 = vpop.f32.mrf.mxu0
  %v543 = vadd.f32 0.0, %v542
  %v544 = vpop.f32.mrf.mxu0
  %545 = vmatprep.mubr.bf16.mxu0 0
  %546 = vmatmul.mubr.bf16.gmra.mxu0 %v403
  %v547 = vpop.f32.mrf.mxu0
  %v548 = vadd.f32 0.0, %v547
  %v549 = vpop.f32.mrf.mxu0
  %v550 = vpop.f32.mrf.mxu0
  %v551 = vadd.f32 0.0, %v550
  %v552 = vpop.f32.mrf.mxu0
  %553 = vmatprep.mubr.bf16.mxu0 0
  %554 = vmatmul.mubr.bf16.gmra.mxu0 %v406
  %v555 = vpop.f32.mrf.mxu0
  %v556 = vadd.f32 0.0, %v555
  %v557 = vpop.f32.mrf.mxu0
  %v558 = vpop.f32.mrf.mxu0
  %v559 = vadd.f32 0.0, %v558
  %v560 = vpop.f32.mrf.mxu0
  %561 = vmatprep.mubr.bf16.mxu0 0
  %562 = vmatmul.mubr.bf16.gmra.mxu0 %v409
  %v563 = vpop.f32.mrf.mxu0
  %v564 = vadd.f32 0.0, %v563
  %v565 = vpop.f32.mrf.mxu0
  %v566 = vpop.f32.mrf.mxu0
  %v567 = vadd.f32 0.0, %v566
  %v568 = vpop.f32.mrf.mxu0
  %569 = vmatprep.mubr.bf16.mxu0 0
  %570 = vmatmul.mubr.bf16.gmra.mxu0 %v412
  %v571 = vpop.f32.mrf.mxu0
  %v572 = vadd.f32 0.0, %v571
  %v573 = vpop.f32.mrf.mxu0
  %v574 = vpop.f32.mrf.mxu0
  %v575 = vadd.f32 0.0, %v574
  %v576 = vpop.f32.mrf.mxu0
  %577 = vmatprep.mubr.bf16.mxu0 0
  %578 = vmatmul.mubr.bf16.gmra.mxu0 %v415
  %v579 = vpop.f32.mrf.mxu0
  %v580 = vadd.f32 0.0, %v579
  %v581 = vpop.f32.mrf.mxu0
  %v582 = vpop.f32.mrf.mxu0
  %v583 = vadd.f32 0.0, %v582
  %v584 = vpop.f32.mrf.mxu0
  %585 = vmatprep.mubr.bf16.mxu0 0
  %586 = vmatmul.mubr.bf16.gmra.mxu0 %v418
  %v587 = vpop.f32.mrf.mxu0
  %v588 = vadd.f32 0.0, %v587
  %v589 = vpop.f32.mrf.mxu0
  %v590 = vpop.f32.mrf.mxu0
  %v591 = vadd.f32 0.0, %v590
  %v592 = vpop.f32.mrf.mxu0
  %593 = vmatprep.mubr.bf16.mxu0 0
  %594 = vmatmul.mubr.bf16.gmra.mxu0 %v421
  %v595 = vpop.f32.mrf.mxu0
  %v596 = vadd.f32 0.0, %v595
  %v597 = vpop.f32.mrf.mxu0
  %v598 = vpop.f32.mrf.mxu0
  %v599 = vadd.f32 0.0, %v598
  %v600 = vpop.f32.mrf.mxu0
  %601 = vmatprep.mubr.bf16.mxu0 0
  %602 = vmatmul.mubr.bf16.gmra.mxu0 %v424
  %v603 = vpop.f32.mrf.mxu0
  %v604 = vadd.f32 0.0, %v603
  %v605 = vpop.f32.mrf.mxu0
  %v606 = vpop.f32.mrf.mxu0
  %v607 = vadd.f32 0.0, %v606
  %v608 = vpop.f32.mrf.mxu0
  %609 = vmatprep.mubr.bf16.mxu0 0
  %610 = vmatmul.mubr.bf16.gmra.mxu0 %v427
  %v611 = vpop.f32.mrf.mxu0
  %v612 = vadd.f32 0.0, %v611
  %v613 = vpop.f32.mrf.mxu0
  %v614 = vpop.f32.mrf.mxu0
  %v615 = vadd.f32 0.0, %v614
  %v616 = vpop.f32.mrf.mxu0
  %617 = vmatprep.mubr.bf16.mxu0 0
  %618 = vmatmul.mubr.bf16.gmra.mxu0 %v430
  %v619 = vpop.f32.mrf.mxu0
  %v620 = vadd.f32 0.0, %v619
  %v621 = vpop.f32.mrf.mxu0
  %v622 = vpop.f32.mrf.mxu0
  %v623 = vadd.f32 0.0, %v622
  %v624 = vpop.f32.mrf.mxu0
  %625 = vmatprep.mubr.bf16.mxu0 0
  %626 = vmatmul.mubr.bf16.gmra.mxu0 %v433
  %v627 = vpop.f32.mrf.mxu0
  %v628 = vadd.f32 0.0, %v627
  %v629 = vpop.f32.mrf.mxu0
  %v630 = vpop.f32.mrf.mxu0
  %v631 = vadd.f32 0.0, %v630
  %v632 = vpop.f32.mrf.mxu0
  %633 = vmatprep.mubr.bf16.mxu0 0
  %634 = vmatmul.mubr.bf16.gmra.mxu0 %v436
  %v635 = vpop.f32.mrf.mxu0
  %v636 = vadd.f32 0.0, %v635
  %v637 = vpop.f32.mrf.mxu0
  %v638 = vpop.f32.mrf.mxu0
  %v639 = vadd.f32 0.0, %v638
  %v640 = vpop.f32.mrf.mxu0
  %641 = vmatprep.mubr.bf16.mxu0 0
  %642 = vmatmul.mubr.bf16.gmra.mxu0 %v439
  %v643 = vpop.f32.mrf.mxu0
  %v644 = vadd.f32 0.0, %v643
  %v645 = vpop.f32.mrf.mxu0
  %v646 = vpop.f32.mrf.mxu0
  %v647 = vadd.f32 0.0, %v646
  %v648 = vpop.f32.mrf.mxu0
  %649 = vmatprep.mubr.bf16.mxu0 0
  %650 = vmatmul.mubr.bf16.gmra.mxu0 %v442
  %v651 = vpop.f32.mrf.mxu0
  %v652 = vadd.f32 0.0, %v651
  %v653 = vpop.f32.mrf.mxu0
  %v654 = vpop.f32.mrf.mxu0
  %v655 = vadd.f32 0.0, %v654
  %v656 = vpop.f32.mrf.mxu0
  %657 = vmatprep.mubr.bf16.mxu0 0
  %658 = vmatmul.mubr.bf16.gmra.mxu0 %v445
  %v659 = vpop.f32.mrf.mxu0
  %v660 = vadd.f32 0.0, %v659
  %v661 = vpop.f32.mrf.mxu0
  %v662 = vpop.f32.mrf.mxu0
  %v663 = vadd.f32 0.0, %v662
  %v664 = vpop.f32.mrf.mxu0
  %665 = vmatprep.mubr.bf16.mxu0 0
  %666 = vmatmul.mubr.bf16.gmra.mxu0 %v448
  %v667 = vpop.f32.mrf.mxu0
  %v668 = vadd.f32 0.0, %v667
  %v669 = vpop.f32.mrf.mxu0
  %v670 = vpop.f32.mrf.mxu0
  %v671 = vadd.f32 0.0, %v670
  %v672 = vpop.f32.mrf.mxu0
  %673 = vmatprep.mubr.bf16.mxu0 0
  %674 = vmatmul.mubr.bf16.gmra.mxu0 %v451
  %v675 = vpop.f32.mrf.mxu0
  %v676 = vadd.f32 0.0, %v675
  %v677 = vpop.f32.mrf.mxu0
  %v678 = vpop.f32.mrf.mxu0
  %v679 = vadd.f32 0.0, %v678
  %v680 = vpop.f32.mrf.mxu0
  %681 = vmatprep.mubr.bf16.mxu0 0
  %682 = vmatmul.mubr.bf16.gmra.mxu0 %v454
  %v683 = vpop.f32.mrf.mxu0
  %v684 = vadd.f32 0.0, %v683
  %v685 = vpop.f32.mrf.mxu0
  %v686 = vpop.f32.mrf.mxu0
  %v687 = vadd.f32 0.0, %v686
  %v688 = vpop.f32.mrf.mxu0
  %689 = vmatprep.mubr.bf16.mxu0 0
  %690 = vmatmul.mubr.bf16.gmra.mxu0 %v457
  %v691 = vpop.f32.mrf.mxu0
  %v692 = vadd.f32 0.0, %v691
  %v693 = vpop.f32.mrf.mxu0
  %v694 = vpop.f32.mrf.mxu0
  %v695 = vadd.f32 0.0, %v694
  %v696 = vpop.f32.mrf.mxu0
  %697 = vmatprep.mubr.bf16.mxu0 0
  %698 = vmatmul.mubr.bf16.gmra.mxu0 %v460
  %v699 = vpop.f32.mrf.mxu0
  %v700 = vadd.f32 0.0, %v699
  %v701 = vpop.f32.mrf.mxu0
  %v702 = vpop.f32.mrf.mxu0
  %v703 = vadd.f32 0.0, %v702
  %v704 = vpop.f32.mrf.mxu0
  %705 = vmatprep.mubr.bf16.mxu0 0
  %706 = vmatmul.mubr.bf16.gmra.mxu0 %v463
  %v707 = vpop.f32.mrf.mxu0
  %v708 = vadd.f32 0.0, %v707
  %v709 = vpop.f32.mrf.mxu0
  %v710 = vpop.f32.mrf.mxu0
  %v711 = vadd.f32 0.0, %v710
  %v712 = vpop.f32.mrf.mxu0
  %713 = vmatprep.mubr.bf16.mxu0 0
  %714 = vmatmul.mubr.bf16.gmra.mxu0 %v466
  %v715 = vpop.f32.mrf.mxu0
  %v716 = vadd.f32 0.0, %v715
  %v717 = vpop.f32.mrf.mxu0
  %v718 = vpop.f32.mrf.mxu0
  %v719 = vadd.f32 0.0, %v718
  %v720 = vpop.f32.mrf.mxu0
  %721 = vmatprep.mubr.bf16.mxu0 0
  %722 = vmatmul.mubr.bf16.gmra.mxu0 %v469
  %v723 = vpop.f32.mrf.mxu0
  %v724 = vadd.f32 0.0, %v723
  %v725 = vpop.f32.mrf.mxu0
  %v726 = vpop.f32.mrf.mxu0
  %v727 = vadd.f32 0.0, %v726
  %v728 = vpop.f32.mrf.mxu0
  %729 = vmatprep.mubr.bf16.mxu0 0
  %730 = vmatmul.mubr.bf16.gmra.mxu0 %v472
  %v731 = vpop.f32.mrf.mxu0
  %v732 = vadd.f32 0.0, %v731
  %v733 = vpop.f32.mrf.mxu0
  %v734 = vpop.f32.mrf.mxu0
  %v735 = vadd.f32 0.0, %v734
  %v736 = vpop.f32.mrf.mxu0
  %737 = vmatprep.mubr.bf16.mxu0 0
  %738 = vmatmul.mubr.bf16.gmra.mxu0 %v475
  %v739 = vpop.f32.mrf.mxu0
  %v740 = vadd.f32 0.0, %v739
  %v741 = vpop.f32.mrf.mxu0
  %v742 = vpop.f32.mrf.mxu0
  %v743 = vadd.f32 0.0, %v742
  %v744 = vpop.f32.mrf.mxu0
  %745 = vmatprep.mubr.bf16.mxu0 0
  %746 = vmatmul.mubr.bf16.gmra.mxu0 %v478
  %v747 = vpop.f32.mrf.mxu0
  %v748 = vadd.f32 0.0, %v747
  %v749 = vpop.f32.mrf.mxu0
  %v750 = vpop.f32.mrf.mxu0
  %v751 = vadd.f32 0.0, %v750
  %v752 = vpop.f32.mrf.mxu0
  %753 = vmatprep.mubr.bf16.mxu0 0
  %754 = vmatmul.mubr.bf16.gmra.mxu0 %v481
  %v755 = vpop.f32.mrf.mxu0
  %v756 = vadd.f32 0.0, %v755
  %v757 = vpop.f32.mrf.mxu0
  %v758 = vpop.f32.mrf.mxu0
  %v759 = vadd.f32 0.0, %v758
  %v760 = vpop.f32.mrf.mxu0
  %761 = vmatprep.mubr.bf16.mxu0 0
  %762 = vmatmul.mubr.bf16.gmra.mxu0 %v484
  %v763 = vpop.f32.mrf.mxu0
  %v764 = vadd.f32 0.0, %v763
  %v765 = vpop.f32.mrf.mxu0
  %v766 = vpop.f32.mrf.mxu0
  %v767 = vadd.f32 0.0, %v766
  %v768 = vpop.f32.mrf.mxu0
  %769 = vmatprep.mubr.bf16.mxu0 0
  %770 = vmatmul.mubr.bf16.gmra.mxu0 %v487
  %v771 = vpop.f32.mrf.mxu0
  %v772 = vadd.f32 0.0, %v771
  %v773 = vpop.f32.mrf.mxu0
  %v774 = vpop.f32.mrf.mxu0
  %v775 = vadd.f32 0.0, %v774
  %v776 = vpop.f32.mrf.mxu0
  %777 = vdwg.mxu0
  %v778 = vpack.c.bf16 %v527, %v524
  %v779 = vpack.c.bf16 %v535, %v532
  %v780 = vpack.c.bf16 %v543, %v540
  %v781 = vpack.c.bf16 %v551, %v548
  %v782 = vpack.c.bf16 %v559, %v556
  %v783 = vpack.c.bf16 %v567, %v564
  %v784 = vpack.c.bf16 %v575, %v572
  %v785 = vpack.c.bf16 %v583, %v580
  %v786 = vpack.c.bf16 %v591, %v588
  %v787 = vpack.c.bf16 %v599, %v596
  %v788 = vpack.c.bf16 %v607, %v604
  %v789 = vpack.c.bf16 %v615, %v612
  %v790 = vpack.c.bf16 %v623, %v620
  %v791 = vpack.c.bf16 %v631, %v628
  %v792 = vpack.c.bf16 %v639, %v636
  %v793 = vpack.c.bf16 %v647, %v644
  %v794 = vpack.c.bf16 %v655, %v652
  %v795 = vpack.c.bf16 %v663, %v660
  %v796 = vpack.c.bf16 %v671, %v668
  %v797 = vpack.c.bf16 %v679, %v676
  %v798 = vpack.c.bf16 %v687, %v684
  %v799 = vpack.c.bf16 %v695, %v692
  %v800 = vpack.c.bf16 %v703, %v700
  %v801 = vpack.c.bf16 %v711, %v708
  %v802 = vpack.c.bf16 %v719, %v716
  %v803 = vpack.c.bf16 %v727, %v724
  %v804 = vpack.c.bf16 %v735, %v732
  %v805 = vpack.c.bf16 %v743, %v740
  %v806 = vpack.c.bf16 %v751, %v748
  %v807 = vpack.c.bf16 %v759, %v756
  %v808 = vpack.c.bf16 %v767, %v764
  %v809 = vpack.c.bf16 %v775, %v772
  %v842 = vunpack.c.l.b16 %v778
  %v843 = vunpack.c.h.b16 %v778
  %v844 = vunpack.c.l.b16 %v779
  %v845 = vunpack.c.h.b16 %v779
  %v846 = vunpack.c.l.b16 %v780
  %v847 = vunpack.c.h.b16 %v780
  %v848 = vunpack.c.l.b16 %v781
  %v849 = vunpack.c.h.b16 %v781
  %v850 = vunpack.c.l.b16 %v782
  %v851 = vunpack.c.h.b16 %v782
  %v852 = vunpack.c.l.b16 %v783
  %v853 = vunpack.c.h.b16 %v783
  %v854 = vunpack.c.l.b16 %v784
  %v855 = vunpack.c.h.b16 %v784
  %v856 = vunpack.c.l.b16 %v785
  %v857 = vunpack.c.h.b16 %v785
  %v858 = vunpack.c.l.b16 %v786
  %v859 = vunpack.c.h.b16 %v786
  %v860 = vunpack.c.l.b16 %v787
  %v861 = vunpack.c.h.b16 %v787
  %v862 = vunpack.c.l.b16 %v788
  %v863 = vunpack.c.h.b16 %v788
  %v864 = vunpack.c.l.b16 %v789
  %v865 = vunpack.c.h.b16 %v789
  %v866 = vunpack.c.l.b16 %v790
  %v867 = vunpack.c.h.b16 %v790
  %v868 = vunpack.c.l.b16 %v791
  %v869 = vunpack.c.h.b16 %v791
  %v870 = vunpack.c.l.b16 %v792
  %v871 = vunpack.c.h.b16 %v792
  %v872 = vunpack.c.l.b16 %v793
  %v873 = vunpack.c.h.b16 %v793
  %v874 = vunpack.c.l.b16 %v794
  %v875 = vunpack.c.h.b16 %v794
  %v876 = vunpack.c.l.b16 %v795
  %v877 = vunpack.c.h.b16 %v795
  %v878 = vunpack.c.l.b16 %v796
  %v879 = vunpack.c.h.b16 %v796
  %v880 = vunpack.c.l.b16 %v797
  %v881 = vunpack.c.h.b16 %v797
  %v882 = vunpack.c.l.b16 %v798
  %v883 = vunpack.c.h.b16 %v798
  %v884 = vunpack.c.l.b16 %v799
  %v885 = vunpack.c.h.b16 %v799
  %v886 = vunpack.c.l.b16 %v800
  %v887 = vunpack.c.h.b16 %v800
  %v888 = vunpack.c.l.b16 %v801
  %v889 = vunpack.c.h.b16 %v801
  %v890 = vunpack.c.l.b16 %v802
  %v891 = vunpack.c.h.b16 %v802
  %v892 = vunpack.c.l.b16 %v803
  %v893 = vunpack.c.h.b16 %v803
  %v894 = vunpack.c.l.b16 %v804
  %v895 = vunpack.c.h.b16 %v804
  %v896 = vunpack.c.l.b16 %v805
  %v897 = vunpack.c.h.b16 %v805
  %v898 = vunpack.c.l.b16 %v806
  %v899 = vunpack.c.h.b16 %v806
  %v900 = vunpack.c.l.b16 %v807
  %v901 = vunpack.c.h.b16 %v807
  %v902 = vunpack.c.l.b16 %v808
  %v903 = vunpack.c.h.b16 %v808
  %v904 = vunpack.c.l.b16 %v809
  %v905 = vunpack.c.h.b16 %v809
  %v906 = vpack.c.b16 %v842, %v842
  %v907 = vpack.c.b16 %v843, %v843
  %v908 = vpack.c.b16 %v844, %v844
  %v909 = vpack.c.b16 %v845, %v845
  %v910 = vpack.c.b16 %v846, %v846
  %v911 = vpack.c.b16 %v847, %v847
  %v912 = vpack.c.b16 %v848, %v848
  %v913 = vpack.c.b16 %v849, %v849
  %v914 = vpack.c.b16 %v850, %v850
  %v915 = vpack.c.b16 %v851, %v851
  %v916 = vpack.c.b16 %v852, %v852
  %v917 = vpack.c.b16 %v853, %v853
  %v918 = vpack.c.b16 %v854, %v854
  %v919 = vpack.c.b16 %v855, %v855
  %v920 = vpack.c.b16 %v856, %v856
  %v921 = vpack.c.b16 %v857, %v857
  %v922 = vpack.c.b16 %v858, %v858
  %v923 = vpack.c.b16 %v859, %v859
  %v924 = vpack.c.b16 %v860, %v860
  %v925 = vpack.c.b16 %v861, %v861
  %v926 = vpack.c.b16 %v862, %v862
  %v927 = vpack.c.b16 %v863, %v863
  %v928 = vpack.c.b16 %v864, %v864
  %v929 = vpack.c.b16 %v865, %v865
  %v930 = vpack.c.b16 %v866, %v866
  %v931 = vpack.c.b16 %v867, %v867
  %v932 = vpack.c.b16 %v868, %v868
  %v933 = vpack.c.b16 %v869, %v869
  %v934 = vpack.c.b16 %v870, %v870
  %v935 = vpack.c.b16 %v871, %v871
  %v936 = vpack.c.b16 %v872, %v872
  %v937 = vpack.c.b16 %v873, %v873
  %v938 = vpack.c.b16 %v874, %v874
  %v939 = vpack.c.b16 %v875, %v875
  %v940 = vpack.c.b16 %v876, %v876
  %v941 = vpack.c.b16 %v877, %v877
  %v942 = vpack.c.b16 %v878, %v878
  %v943 = vpack.c.b16 %v879, %v879
  %v944 = vpack.c.b16 %v880, %v880
  %v945 = vpack.c.b16 %v881, %v881
  %v946 = vpack.c.b16 %v882, %v882
  %v947 = vpack.c.b16 %v883, %v883
  %v948 = vpack.c.b16 %v884, %v884
  %v949 = vpack.c.b16 %v885, %v885
  %v950 = vpack.c.b16 %v886, %v886
  %v951 = vpack.c.b16 %v887, %v887
  %v952 = vpack.c.b16 %v888, %v888
  %v953 = vpack.c.b16 %v889, %v889
  %v954 = vpack.c.b16 %v890, %v890
  %v955 = vpack.c.b16 %v891, %v891
  %v956 = vpack.c.b16 %v892, %v892
  %v957 = vpack.c.b16 %v893, %v893
  %v958 = vpack.c.b16 %v894, %v894
  %v959 = vpack.c.b16 %v895, %v895
  %v960 = vpack.c.b16 %v896, %v896
  %v961 = vpack.c.b16 %v897, %v897
  %v962 = vpack.c.b16 %v898, %v898
  %v963 = vpack.c.b16 %v899, %v899
  %v964 = vpack.c.b16 %v900, %v900
  %v965 = vpack.c.b16 %v901, %v901
  %v966 = vpack.c.b16 %v902, %v902
  %v967 = vpack.c.b16 %v903, %v903
  %v968 = vpack.c.b16 %v904, %v904
  %v969 = vpack.c.b16 %v905, %v905
  %1034 = vst [vmem:[%s4] sm:$0xf] %v906
  %1035 = vst [vmem:[%s4 + $0x4] sm:$0xf] %v907
  %1036 = vst [vmem:[%s4 + $0x8] sm:$0xf] %v908
  %1037 = vst [vmem:[%s4 + $0xc] sm:$0xf] %v909
  %1038 = vst [vmem:[%s4 + $0x10] sm:$0xf] %v910
  %1039 = vst [vmem:[%s4 + $0x14] sm:$0xf] %v911
  %1040 = vst [vmem:[%s4 + $0x18] sm:$0xf] %v912
  %1041 = vst [vmem:[%s4 + $0x1c] sm:$0xf] %v913
  %1042 = vst [vmem:[%s4 + $0x20] sm:$0xf] %v914
  %1043 = vst [vmem:[%s4 + $0x24] sm:$0xf] %v915
  %1044 = vst [vmem:[%s4 + $0x28] sm:$0xf] %v916
  %1045 = vst [vmem:[%s4 + $0x2c] sm:$0xf] %v917
  %1046 = vst [vmem:[%s4 + $0x30] sm:$0xf] %v918
  %1047 = vst [vmem:[%s4 + $0x34] sm:$0xf] %v919
  %1048 = vst [vmem:[%s4 + $0x38] sm:$0xf] %v920
  %1049 = vst [vmem:[%s4 + $0x3c] sm:$0xf] %v921
  %1050 = vst [vmem:[%s4 + $0x40] sm:$0xf] %v922
  %1051 = vst [vmem:[%s4 + $0x44] sm:$0xf] %v923
  %1052 = vst [vmem:[%s4 + $0x48] sm:$0xf] %v924
  %1053 = vst [vmem:[%s4 + $0x4c] sm:$0xf] %v925
  %1054 = vst [vmem:[%s4 + $0x50] sm:$0xf] %v926
  %1055 = vst [vmem:[%s4 + $0x54] sm:$0xf] %v927
  %1056 = vst [vmem:[%s4 + $0x58] sm:$0xf] %v928
  %1057 = vst [vmem:[%s4 + $0x5c] sm:$0xf] %v929
  %1058 = vst [vmem:[%s4 + $0x60] sm:$0xf] %v930
  %1059 = vst [vmem:[%s4 + $0x64] sm:$0xf] %v931
  %1060 = vst [vmem:[%s4 + $0x68] sm:$0xf] %v932
  %1061 = vst [vmem:[%s4 + $0x6c] sm:$0xf] %v933
  %1062 = vst [vmem:[%s4 + $0x70] sm:$0xf] %v934
  %1063 = vst [vmem:[%s4 + $0x74] sm:$0xf] %v935
  %1064 = vst [vmem:[%s4 + $0x78] sm:$0xf] %v936
  %1065 = vst [vmem:[%s4 + $0x7c] sm:$0xf] %v937
  %1066 = vst [vmem:[%s4 + $0x80] sm:$0xf] %v938
  %1067 = vst [vmem:[%s4 + $0x84] sm:$0xf] %v939
  %1068 = vst [vmem:[%s4 + $0x88] sm:$0xf] %v940
  %1069 = vst [vmem:[%s4 + $0x8c] sm:$0xf] %v941
  %1070 = vst [vmem:[%s4 + $0x90] sm:$0xf] %v942
  %1071 = vst [vmem:[%s4 + $0x94] sm:$0xf] %v943
  %1072 = vst [vmem:[%s4 + $0x98] sm:$0xf] %v944
  %1073 = vst [vmem:[%s4 + $0x9c] sm:$0xf] %v945
  %1074 = vst [vmem:[%s4 + $0xa0] sm:$0xf] %v946
  %1075 = vst [vmem:[%s4 + $0xa4] sm:$0xf] %v947
  %1076 = vst [vmem:[%s4 + $0xa8] sm:$0xf] %v948
  %1077 = vst [vmem:[%s4 + $0xac] sm:$0xf] %v949
  %1078 = vst [vmem:[%s4 + $0xb0] sm:$0xf] %v950
  %1079 = vst [vmem:[%s4 + $0xb4] sm:$0xf] %v951
  %1080 = vst [vmem:[%s4 + $0xb8] sm:$0xf] %v952
  %1081 = vst [vmem:[%s4 + $0xbc] sm:$0xf] %v953
  %1082 = vst [vmem:[%s4 + $0xc0] sm:$0xf] %v954
  %1083 = vst [vmem:[%s4 + $0xc4] sm:$0xf] %v955
  %1084 = vst [vmem:[%s4 + $0xc8] sm:$0xf] %v956
  %1085 = vst [vmem:[%s4 + $0xcc] sm:$0xf] %v957
  %1086 = vst [vmem:[%s4 + $0xd0] sm:$0xf] %v958
  %1087 = vst [vmem:[%s4 + $0xd4] sm:$0xf] %v959
  %1088 = vst [vmem:[%s4 + $0xd8] sm:$0xf] %v960
  %1089 = vst [vmem:[%s4 + $0xdc] sm:$0xf] %v961
  %1090 = vst [vmem:[%s4 + $0xe0] sm:$0xf] %v962
  %1091 = vst [vmem:[%s4 + $0xe4] sm:$0xf] %v963
  %1092 = vst [vmem:[%s4 + $0xe8] sm:$0xf] %v964
  %1093 = vst [vmem:[%s4 + $0xec] sm:$0xf] %v965
  %1094 = vst [vmem:[%s4 + $0xf0] sm:$0xf] %v966
  %1095 = vst [vmem:[%s4 + $0xf4] sm:$0xf] %v967
  %1096 = vst [vmem:[%s4 + $0xf8] sm:$0xf] %v968
  %1097 = vst [vmem:[%s4 + $0xfc] sm:$0xf] %v969
  // Predicated region
  $region18: #{generator_forward.8} parent=0 // pred_check
    _
  $region19: #{generator_forward.8} parent=0 // pred_check_branch
    %1099 = sbr.rel (0) target = $region21
  $region20: #{generator_forward.8} parent=0 // pred_region
    _
  $region21: #{generator_forward.8} parent=0 // pred_fallthru
    _
  // Predicated region
  $region22: #{generator_forward.8} parent=0 // pred_check
    _
  $region23: #{generator_forward.8} parent=0 // pred_check_branch
    %1101 = sbr.rel (0) target = $region25
  $region24: #{generator_forward.8} parent=0 // pred_region
    _
  $region25: #{generator_forward.8} parent=0 // pred_fallthru
    _

// kernel: generator_forward.9
$region0: #{generator_forward.9}
  #allocation0 [shape = 'u32[]', space=smem, size = 0x4, offset = 0x4, fixed_abs, tag = 'smem constant byte address 0x4 - core index']
  #allocation1 [shape = 'u32[144,128]{1,0:T(1,128)}', space=vmem, size = 0x12000, scoped, tag = 'internal scratch']
  %s0 = inlined_call_operand.vmem [shape: bf16[2048,8], index: 0, kind: input, shape index: {}]
  %s1 = inlined_call_operand.vmem [shape: f32[1,8], index: 1, kind: input, shape index: {}]
  %s2 = inlined_call_operand.vmem [shape: f32[1,8], index: 2, kind: input, shape index: {}]
  %s3 = inlined_call_operand.vmem [shape: bf16[8,128], index: 3, kind: input, shape index: {}]
  %s4 = inlined_call_operand.vmem [shape: bf16[2048,128], index: 4, kind: output, shape index: {}]
  %s5 = sld [smem:[#allocation0]]
  $region26: #{generator_forward.9} parent=0
    _
  %s7 = ssub.s32 1, %s5
  %s8 = scalar_select 0, %s7, %s5
  // Predicated region
  $region2: #{generator_forward.9} parent=0 // pred_check
    _
  $region3: #{generator_forward.9} parent=0 // pred_check_branch
    %10 = sbr.rel (0) target = $region5
  $region4: #{generator_forward.9} parent=0 // pred_region
    _
  $region5: #{generator_forward.9} parent=0 // pred_fallthru
    _
  // Predicated region
  $region6: #{generator_forward.9} parent=0 // pred_check
    _
  $region7: #{generator_forward.9} parent=0 // pred_check_branch
    %12 = sbr.rel (0) target = $region9
  $region8: #{generator_forward.9} parent=0 // pred_region
    _
  $region9: #{generator_forward.9} parent=0 // pred_fallthru
    _
  // Predicated region
  $region10: #{generator_forward.9} parent=0 // pred_check
    _
  $region11: #{generator_forward.9} parent=0 // pred_check_branch
    %14 = sbr.rel (0) target = $region13
  $region12: #{generator_forward.9} parent=0 // pred_region
    _
  $region13: #{generator_forward.9} parent=0 // pred_fallthru
    _
  // Predicated region
  $region14: #{generator_forward.9} parent=0 // pred_check
    _
  $region15: #{generator_forward.9} parent=0 // pred_check_branch
    %16 = sbr.rel (0) target = $region17
  $region16: #{generator_forward.9} parent=0 // pred_region
    _
  $region17: #{generator_forward.9} parent=0 // pred_fallthru
    _
  %v18 = vld [vmem:[%s0] sm:$0xf]
  %v19 = vld [vmem:[%s0 + $0x4] sm:$0xf]
  %v20 = vld [vmem:[%s0 + $0x8] sm:$0xf]
  %v21 = vld [vmem:[%s0 + $0xc] sm:$0xf]
  %v22 = vld [vmem:[%s0 + $0x10] sm:$0xf]
  %v23 = vld [vmem:[%s0 + $0x14] sm:$0xf]
  %v24 = vld [vmem:[%s0 + $0x18] sm:$0xf]
  %v25 = vld [vmem:[%s0 + $0x1c] sm:$0xf]
  %v26 = vld [vmem:[%s0 + $0x20] sm:$0xf]
  %v27 = vld [vmem:[%s0 + $0x24] sm:$0xf]
  %v28 = vld [vmem:[%s0 + $0x28] sm:$0xf]
  %v29 = vld [vmem:[%s0 + $0x2c] sm:$0xf]
  %v30 = vld [vmem:[%s0 + $0x30] sm:$0xf]
  %v31 = vld [vmem:[%s0 + $0x34] sm:$0xf]
  %v32 = vld [vmem:[%s0 + $0x38] sm:$0xf]
  %v33 = vld [vmem:[%s0 + $0x3c] sm:$0xf]
  %v34 = vld [vmem:[%s0 + $0x40] sm:$0xf]
  %v35 = vld [vmem:[%s0 + $0x44] sm:$0xf]
  %v36 = vld [vmem:[%s0 + $0x48] sm:$0xf]
  %v37 = vld [vmem:[%s0 + $0x4c] sm:$0xf]
  %v38 = vld [vmem:[%s0 + $0x50] sm:$0xf]
  %v39 = vld [vmem:[%s0 + $0x54] sm:$0xf]
  %v40 = vld [vmem:[%s0 + $0x58] sm:$0xf]
  %v41 = vld [vmem:[%s0 + $0x5c] sm:$0xf]
  %v42 = vld [vmem:[%s0 + $0x60] sm:$0xf]
  %v43 = vld [vmem:[%s0 + $0x64] sm:$0xf]
  %v44 = vld [vmem:[%s0 + $0x68] sm:$0xf]
  %v45 = vld [vmem:[%s0 + $0x6c] sm:$0xf]
  %v46 = vld [vmem:[%s0 + $0x70] sm:$0xf]
  %v47 = vld [vmem:[%s0 + $0x74] sm:$0xf]
  %v48 = vld [vmem:[%s0 + $0x78] sm:$0xf]
  %v49 = vld [vmem:[%s0 + $0x7c] sm:$0xf]
  %v50 = vld [vmem:[%s0 + $0x80] sm:$0xf]
  %v51 = vld [vmem:[%s0 + $0x84] sm:$0xf]
  %v52 = vld [vmem:[%s0 + $0x88] sm:$0xf]
  %v53 = vld [vmem:[%s0 + $0x8c] sm:$0xf]
  %v54 = vld [vmem:[%s0 + $0x90] sm:$0xf]
  %v55 = vld [vmem:[%s0 + $0x94] sm:$0xf]
  %v56 = vld [vmem:[%s0 + $0x98] sm:$0xf]
  %v57 = vld [vmem:[%s0 + $0x9c] sm:$0xf]
  %v58 = vld [vmem:[%s0 + $0xa0] sm:$0xf]
  %v59 = vld [vmem:[%s0 + $0xa4] sm:$0xf]
  %v60 = vld [vmem:[%s0 + $0xa8] sm:$0xf]
  %v61 = vld [vmem:[%s0 + $0xac] sm:$0xf]
  %v62 = vld [vmem:[%s0 + $0xb0] sm:$0xf]
  %v63 = vld [vmem:[%s0 + $0xb4] sm:$0xf]
  %v64 = vld [vmem:[%s0 + $0xb8] sm:$0xf]
  %v65 = vld [vmem:[%s0 + $0xbc] sm:$0xf]
  %v66 = vld [vmem:[%s0 + $0xc0] sm:$0xf]
  %v67 = vld [vmem:[%s0 + $0xc4] sm:$0xf]
  %v68 = vld [vmem:[%s0 + $0xc8] sm:$0xf]
  %v69 = vld [vmem:[%s0 + $0xcc] sm:$0xf]
  %v70 = vld [vmem:[%s0 + $0xd0] sm:$0xf]
  %v71 = vld [vmem:[%s0 + $0xd4] sm:$0xf]
  %v72 = vld [vmem:[%s0 + $0xd8] sm:$0xf]
  %v73 = vld [vmem:[%s0 + $0xdc] sm:$0xf]
  %v74 = vld [vmem:[%s0 + $0xe0] sm:$0xf]
  %v75 = vld [vmem:[%s0 + $0xe4] sm:$0xf]
  %v76 = vld [vmem:[%s0 + $0xe8] sm:$0xf]
  %v77 = vld [vmem:[%s0 + $0xec] sm:$0xf]
  %v78 = vld [vmem:[%s0 + $0xf0] sm:$0xf]
  %v79 = vld [vmem:[%s0 + $0xf4] sm:$0xf]
  %v80 = vld [vmem:[%s0 + $0xf8] sm:$0xf]
  %v81 = vld [vmem:[%s0 + $0xfc] sm:$0xf]
  %v82 = vld [vmem:[%s0 + $0x100] sm:$0xf]
  %v83 = vld [vmem:[%s0 + $0x104] sm:$0xf]
  %v84 = vld [vmem:[%s0 + $0x108] sm:$0xf]
  %v85 = vld [vmem:[%s0 + $0x10c] sm:$0xf]
  %v86 = vld [vmem:[%s0 + $0x110] sm:$0xf]
  %v87 = vld [vmem:[%s0 + $0x114] sm:$0xf]
  %v88 = vld [vmem:[%s0 + $0x118] sm:$0xf]
  %v89 = vld [vmem:[%s0 + $0x11c] sm:$0xf]
  %v90 = vld [vmem:[%s0 + $0x120] sm:$0xf]
  %v91 = vld [vmem:[%s0 + $0x124] sm:$0xf]
  %v92 = vld [vmem:[%s0 + $0x128] sm:$0xf]
  %v93 = vld [vmem:[%s0 + $0x12c] sm:$0xf]
  %v94 = vld [vmem:[%s0 + $0x130] sm:$0xf]
  %v95 = vld [vmem:[%s0 + $0x134] sm:$0xf]
  %v96 = vld [vmem:[%s0 + $0x138] sm:$0xf]
  %v97 = vld [vmem:[%s0 + $0x13c] sm:$0xf]
  %v98 = vld [vmem:[%s0 + $0x140] sm:$0xf]
  %v99 = vld [vmem:[%s0 + $0x144] sm:$0xf]
  %v100 = vld [vmem:[%s0 + $0x148] sm:$0xf]
  %v101 = vld [vmem:[%s0 + $0x14c] sm:$0xf]
  %v102 = vld [vmem:[%s0 + $0x150] sm:$0xf]
  %v103 = vld [vmem:[%s0 + $0x154] sm:$0xf]
  %v104 = vld [vmem:[%s0 + $0x158] sm:$0xf]
  %v105 = vld [vmem:[%s0 + $0x15c] sm:$0xf]
  %v106 = vld [vmem:[%s0 + $0x160] sm:$0xf]
  %v107 = vld [vmem:[%s0 + $0x164] sm:$0xf]
  %v108 = vld [vmem:[%s0 + $0x168] sm:$0xf]
  %v109 = vld [vmem:[%s0 + $0x16c] sm:$0xf]
  %v110 = vld [vmem:[%s0 + $0x170] sm:$0xf]
  %v111 = vld [vmem:[%s0 + $0x174] sm:$0xf]
  %v112 = vld [vmem:[%s0 + $0x178] sm:$0xf]
  %v113 = vld [vmem:[%s0 + $0x17c] sm:$0xf]
  %v114 = vld [vmem:[%s0 + $0x180] sm:$0xf]
  %v115 = vld [vmem:[%s0 + $0x184] sm:$0xf]
  %v116 = vld [vmem:[%s0 + $0x188] sm:$0xf]
  %v117 = vld [vmem:[%s0 + $0x18c] sm:$0xf]
  %v118 = vld [vmem:[%s0 + $0x190] sm:$0xf]
  %v119 = vld [vmem:[%s0 + $0x194] sm:$0xf]
  %v120 = vld [vmem:[%s0 + $0x198] sm:$0xf]
  %v121 = vld [vmem:[%s0 + $0x19c] sm:$0xf]
  %v122 = vld [vmem:[%s0 + $0x1a0] sm:$0xf]
  %v123 = vld [vmem:[%s0 + $0x1a4] sm:$0xf]
  %v124 = vld [vmem:[%s0 + $0x1a8] sm:$0xf]
  %v125 = vld [vmem:[%s0 + $0x1ac] sm:$0xf]
  %v126 = vld [vmem:[%s0 + $0x1b0] sm:$0xf]
  %v127 = vld [vmem:[%s0 + $0x1b4] sm:$0xf]
  %v128 = vld [vmem:[%s0 + $0x1b8] sm:$0xf]
  %v129 = vld [vmem:[%s0 + $0x1bc] sm:$0xf]
  %v130 = vld [vmem:[%s0 + $0x1c0] sm:$0xf]
  %v131 = vld [vmem:[%s0 + $0x1c4] sm:$0xf]
  %v132 = vld [vmem:[%s0 + $0x1c8] sm:$0xf]
  %v133 = vld [vmem:[%s0 + $0x1cc] sm:$0xf]
  %v134 = vld [vmem:[%s0 + $0x1d0] sm:$0xf]
  %v135 = vld [vmem:[%s0 + $0x1d4] sm:$0xf]
  %v136 = vld [vmem:[%s0 + $0x1d8] sm:$0xf]
  %v137 = vld [vmem:[%s0 + $0x1dc] sm:$0xf]
  %v138 = vld [vmem:[%s0 + $0x1e0] sm:$0xf]
  %v139 = vld [vmem:[%s0 + $0x1e4] sm:$0xf]
  %v140 = vld [vmem:[%s0 + $0x1e8] sm:$0xf]
  %v141 = vld [vmem:[%s0 + $0x1ec] sm:$0xf]
  %v142 = vld [vmem:[%s0 + $0x1f0] sm:$0xf]
  %v143 = vld [vmem:[%s0 + $0x1f4] sm:$0xf]
  %v144 = vld [vmem:[%s0 + $0x1f8] sm:$0xf]
  %v145 = vld [vmem:[%s0 + $0x1fc] sm:$0xf]
  %v146 = vld [vmem:[%s0 + $0x200] sm:$0xf]
  %v147 = vld [vmem:[%s0 + $0x204] sm:$0xf]
  %v148 = vld [vmem:[%s0 + $0x208] sm:$0xf]
  %v149 = vld [vmem:[%s0 + $0x20c] sm:$0xf]
  %v150 = vld [vmem:[%s0 + $0x210] sm:$0xf]
  %v151 = vld [vmem:[%s0 + $0x214] sm:$0xf]
  %v152 = vld [vmem:[%s0 + $0x218] sm:$0xf]
  %v153 = vld [vmem:[%s0 + $0x21c] sm:$0xf]
  %v154 = vld [vmem:[%s0 + $0x220] sm:$0xf]
  %v155 = vld [vmem:[%s0 + $0x224] sm:$0xf]
  %v156 = vld [vmem:[%s0 + $0x228] sm:$0xf]
  %v157 = vld [vmem:[%s0 + $0x22c] sm:$0xf]
  %v158 = vld [vmem:[%s0 + $0x230] sm:$0xf]
  %v159 = vld [vmem:[%s0 + $0x234] sm:$0xf]
  %v160 = vld [vmem:[%s0 + $0x238] sm:$0xf]
  %v161 = vld [vmem:[%s0 + $0x23c] sm:$0xf]
  %v162 = vld [vmem:[%s0 + $0x240] sm:$0xf]
  %v163 = vld [vmem:[%s0 + $0x244] sm:$0xf]
  %v164 = vld [vmem:[%s0 + $0x248] sm:$0xf]
  %v165 = vld [vmem:[%s0 + $0x24c] sm:$0xf]
  %v166 = vld [vmem:[%s0 + $0x250] sm:$0xf]
  %v167 = vld [vmem:[%s0 + $0x254] sm:$0xf]
  %v168 = vld [vmem:[%s0 + $0x258] sm:$0xf]
  %v169 = vld [vmem:[%s0 + $0x25c] sm:$0xf]
  %v170 = vld [vmem:[%s0 + $0x260] sm:$0xf]
  %v171 = vld [vmem:[%s0 + $0x264] sm:$0xf]
  %v172 = vld [vmem:[%s0 + $0x268] sm:$0xf]
  %v173 = vld [vmem:[%s0 + $0x26c] sm:$0xf]
  %v174 = vld [vmem:[%s0 + $0x270] sm:$0xf]
  %v175 = vld [vmem:[%s0 + $0x274] sm:$0xf]
  %v176 = vld [vmem:[%s0 + $0x278] sm:$0xf]
  %v177 = vld [vmem:[%s0 + $0x27c] sm:$0xf]
  %v178 = vld [vmem:[%s0 + $0x280] sm:$0xf]
  %v179 = vld [vmem:[%s0 + $0x284] sm:$0xf]
  %v180 = vld [vmem:[%s0 + $0x288] sm:$0xf]
  %v181 = vld [vmem:[%s0 + $0x28c] sm:$0xf]
  %v182 = vld [vmem:[%s0 + $0x290] sm:$0xf]
  %v183 = vld [vmem:[%s0 + $0x294] sm:$0xf]
  %v184 = vld [vmem:[%s0 + $0x298] sm:$0xf]
  %v185 = vld [vmem:[%s0 + $0x29c] sm:$0xf]
  %v186 = vld [vmem:[%s0 + $0x2a0] sm:$0xf]
  %v187 = vld [vmem:[%s0 + $0x2a4] sm:$0xf]
  %v188 = vld [vmem:[%s0 + $0x2a8] sm:$0xf]
  %v189 = vld [vmem:[%s0 + $0x2ac] sm:$0xf]
  %v190 = vld [vmem:[%s0 + $0x2b0] sm:$0xf]
  %v191 = vld [vmem:[%s0 + $0x2b4] sm:$0xf]
  %v192 = vld [vmem:[%s0 + $0x2b8] sm:$0xf]
  %v193 = vld [vmem:[%s0 + $0x2bc] sm:$0xf]
  %v194 = vld [vmem:[%s0 + $0x2c0] sm:$0xf]
  %v195 = vld [vmem:[%s0 + $0x2c4] sm:$0xf]
  %v196 = vld [vmem:[%s0 + $0x2c8] sm:$0xf]
  %v197 = vld [vmem:[%s0 + $0x2cc] sm:$0xf]
  %v198 = vld [vmem:[%s0 + $0x2d0] sm:$0xf]
  %v199 = vld [vmem:[%s0 + $0x2d4] sm:$0xf]
  %v200 = vld [vmem:[%s0 + $0x2d8] sm:$0xf]
  %v201 = vld [vmem:[%s0 + $0x2dc] sm:$0xf]
  %v202 = vld [vmem:[%s0 + $0x2e0] sm:$0xf]
  %v203 = vld [vmem:[%s0 + $0x2e4] sm:$0xf]
  %v204 = vld [vmem:[%s0 + $0x2e8] sm:$0xf]
  %v205 = vld [vmem:[%s0 + $0x2ec] sm:$0xf]
  %v206 = vld [vmem:[%s0 + $0x2f0] sm:$0xf]
  %v207 = vld [vmem:[%s0 + $0x2f4] sm:$0xf]
  %v208 = vld [vmem:[%s0 + $0x2f8] sm:$0xf]
  %v209 = vld [vmem:[%s0 + $0x2fc] sm:$0xf]
  %v210 = vld [vmem:[%s0 + $0x300] sm:$0xf]
  %v211 = vld [vmem:[%s0 + $0x304] sm:$0xf]
  %v212 = vld [vmem:[%s0 + $0x308] sm:$0xf]
  %v213 = vld [vmem:[%s0 + $0x30c] sm:$0xf]
  %v214 = vld [vmem:[%s0 + $0x310] sm:$0xf]
  %v215 = vld [vmem:[%s0 + $0x314] sm:$0xf]
  %v216 = vld [vmem:[%s0 + $0x318] sm:$0xf]
  %v217 = vld [vmem:[%s0 + $0x31c] sm:$0xf]
  %v218 = vld [vmem:[%s0 + $0x320] sm:$0xf]
  %v219 = vld [vmem:[%s0 + $0x324] sm:$0xf]
  %v220 = vld [vmem:[%s0 + $0x328] sm:$0xf]
  %v221 = vld [vmem:[%s0 + $0x32c] sm:$0xf]
  %v222 = vld [vmem:[%s0 + $0x330] sm:$0xf]
  %v223 = vld [vmem:[%s0 + $0x334] sm:$0xf]
  %v224 = vld [vmem:[%s0 + $0x338] sm:$0xf]
  %v225 = vld [vmem:[%s0 + $0x33c] sm:$0xf]
  %v226 = vld [vmem:[%s0 + $0x340] sm:$0xf]
  %v227 = vld [vmem:[%s0 + $0x344] sm:$0xf]
  %v228 = vld [vmem:[%s0 + $0x348] sm:$0xf]
  %v229 = vld [vmem:[%s0 + $0x34c] sm:$0xf]
  %v230 = vld [vmem:[%s0 + $0x350] sm:$0xf]
  %v231 = vld [vmem:[%s0 + $0x354] sm:$0xf]
  %v232 = vld [vmem:[%s0 + $0x358] sm:$0xf]
  %v233 = vld [vmem:[%s0 + $0x35c] sm:$0xf]
  %v234 = vld [vmem:[%s0 + $0x360] sm:$0xf]
  %v235 = vld [vmem:[%s0 + $0x364] sm:$0xf]
  %v236 = vld [vmem:[%s0 + $0x368] sm:$0xf]
  %v237 = vld [vmem:[%s0 + $0x36c] sm:$0xf]
  %v238 = vld [vmem:[%s0 + $0x370] sm:$0xf]
  %v239 = vld [vmem:[%s0 + $0x374] sm:$0xf]
  %v240 = vld [vmem:[%s0 + $0x378] sm:$0xf]
  %v241 = vld [vmem:[%s0 + $0x37c] sm:$0xf]
  %v242 = vld [vmem:[%s0 + $0x380] sm:$0xf]
  %v243 = vld [vmem:[%s0 + $0x384] sm:$0xf]
  %v244 = vld [vmem:[%s0 + $0x388] sm:$0xf]
  %v245 = vld [vmem:[%s0 + $0x38c] sm:$0xf]
  %v246 = vld [vmem:[%s0 + $0x390] sm:$0xf]
  %v247 = vld [vmem:[%s0 + $0x394] sm:$0xf]
  %v248 = vld [vmem:[%s0 + $0x398] sm:$0xf]
  %v249 = vld [vmem:[%s0 + $0x39c] sm:$0xf]
  %v250 = vld [vmem:[%s0 + $0x3a0] sm:$0xf]
  %v251 = vld [vmem:[%s0 + $0x3a4] sm:$0xf]
  %v252 = vld [vmem:[%s0 + $0x3a8] sm:$0xf]
  %v253 = vld [vmem:[%s0 + $0x3ac] sm:$0xf]
  %v254 = vld [vmem:[%s0 + $0x3b0] sm:$0xf]
  %v255 = vld [vmem:[%s0 + $0x3b4] sm:$0xf]
  %v256 = vld [vmem:[%s0 + $0x3b8] sm:$0xf]
  %v257 = vld [vmem:[%s0 + $0x3bc] sm:$0xf]
  %v258 = vld [vmem:[%s0 + $0x3c0] sm:$0xf]
  %v259 = vld [vmem:[%s0 + $0x3c4] sm:$0xf]
  %v260 = vld [vmem:[%s0 + $0x3c8] sm:$0xf]
  %v261 = vld [vmem:[%s0 + $0x3cc] sm:$0xf]
  %v262 = vld [vmem:[%s0 + $0x3d0] sm:$0xf]
  %v263 = vld [vmem:[%s0 + $0x3d4] sm:$0xf]
  %v264 = vld [vmem:[%s0 + $0x3d8] sm:$0xf]
  %v265 = vld [vmem:[%s0 + $0x3dc] sm:$0xf]
  %v266 = vld [vmem:[%s0 + $0x3e0] sm:$0xf]
  %v267 = vld [vmem:[%s0 + $0x3e4] sm:$0xf]
  %v268 = vld [vmem:[%s0 + $0x3e8] sm:$0xf]
  %v269 = vld [vmem:[%s0 + $0x3ec] sm:$0xf]
  %v270 = vld [vmem:[%s0 + $0x3f0] sm:$0xf]
  %v271 = vld [vmem:[%s0 + $0x3f4] sm:$0xf]
  %v272 = vld [vmem:[%s0 + $0x3f8] sm:$0xf]
  %v273 = vld [vmem:[%s0 + $0x3fc] sm:$0xf]
  %v274 = vunpack.c.l.bf16 %v18
  %v275 = vunpack.c.l.bf16 %v19
  %v276 = vunpack.c.l.bf16 %v20
  %v277 = vunpack.c.l.bf16 %v21
  %v278 = vunpack.c.l.bf16 %v22
  %v279 = vunpack.c.l.bf16 %v23
  %v280 = vunpack.c.l.bf16 %v24
  %v281 = vunpack.c.l.bf16 %v25
  %v282 = vunpack.c.l.bf16 %v26
  %v283 = vunpack.c.l.bf16 %v27
  %v284 = vunpack.c.l.bf16 %v28
  %v285 = vunpack.c.l.bf16 %v29
  %v286 = vunpack.c.l.bf16 %v30
  %v287 = vunpack.c.l.bf16 %v31
  %v288 = vunpack.c.l.bf16 %v32
  %v289 = vunpack.c.l.bf16 %v33
  %v290 = vunpack.c.l.bf16 %v34
  %v291 = vunpack.c.l.bf16 %v35
  %v292 = vunpack.c.l.bf16 %v36
  %v293 = vunpack.c.l.bf16 %v37
  %v294 = vunpack.c.l.bf16 %v38
  %v295 = vunpack.c.l.bf16 %v39
  %v296 = vunpack.c.l.bf16 %v40
  %v297 = vunpack.c.l.bf16 %v41
  %v298 = vunpack.c.l.bf16 %v42
  %v299 = vunpack.c.l.bf16 %v43
  %v300 = vunpack.c.l.bf16 %v44
  %v301 = vunpack.c.l.bf16 %v45
  %v302 = vunpack.c.l.bf16 %v46
  %v303 = vunpack.c.l.bf16 %v47
  %v304 = vunpack.c.l.bf16 %v48
  %v305 = vunpack.c.l.bf16 %v49
  %v306 = vunpack.c.l.bf16 %v50
  %v307 = vunpack.c.l.bf16 %v51
  %v308 = vunpack.c.l.bf16 %v52
  %v309 = vunpack.c.l.bf16 %v53
  %v310 = vunpack.c.l.bf16 %v54
  %v311 = vunpack.c.l.bf16 %v55
  %v312 = vunpack.c.l.bf16 %v56
  %v313 = vunpack.c.l.bf16 %v57
  %v314 = vunpack.c.l.bf16 %v58
  %v315 = vunpack.c.l.bf16 %v59
  %v316 = vunpack.c.l.bf16 %v60
  %v317 = vunpack.c.l.bf16 %v61
  %v318 = vunpack.c.l.bf16 %v62
  %v319 = vunpack.c.l.bf16 %v63
  %v320 = vunpack.c.l.bf16 %v64
  %v321 = vunpack.c.l.bf16 %v65
  %v322 = vunpack.c.l.bf16 %v66
  %v323 = vunpack.c.l.bf16 %v67
  %v324 = vunpack.c.l.bf16 %v68
  %v325 = vunpack.c.l.bf16 %v69
  %v326 = vunpack.c.l.bf16 %v70
  %v327 = vunpack.c.l.bf16 %v71
  %v328 = vunpack.c.l.bf16 %v72
  %v329 = vunpack.c.l.bf16 %v73
  %v330 = vunpack.c.l.bf16 %v74
  %v331 = vunpack.c.l.bf16 %v75
  %v332 = vunpack.c.l.bf16 %v76
  %v333 = vunpack.c.l.bf16 %v77
  %v334 = vunpack.c.l.bf16 %v78
  %v335 = vunpack.c.l.bf16 %v79
  %v336 = vunpack.c.l.bf16 %v80
  %v337 = vunpack.c.l.bf16 %v81
  %v338 = vunpack.c.l.bf16 %v82
  %v339 = vunpack.c.l.bf16 %v83
  %v340 = vunpack.c.l.bf16 %v84
  %v341 = vunpack.c.l.bf16 %v85
  %v342 = vunpack.c.l.bf16 %v86
  %v343 = vunpack.c.l.bf16 %v87
  %v344 = vunpack.c.l.bf16 %v88
  %v345 = vunpack.c.l.bf16 %v89
  %v346 = vunpack.c.l.bf16 %v90
  %v347 = vunpack.c.l.bf16 %v91
  %v348 = vunpack.c.l.bf16 %v92
  %v349 = vunpack.c.l.bf16 %v93
  %v350 = vunpack.c.l.bf16 %v94
  %v351 = vunpack.c.l.bf16 %v95
  %v352 = vunpack.c.l.bf16 %v96
  %v353 = vunpack.c.l.bf16 %v97
  %v354 = vunpack.c.l.bf16 %v98
  %v355 = vunpack.c.l.bf16 %v99
  %v356 = vunpack.c.l.bf16 %v100
  %v357 = vunpack.c.l.bf16 %v101
  %v358 = vunpack.c.l.bf16 %v102
  %v359 = vunpack.c.l.bf16 %v103
  %v360 = vunpack.c.l.bf16 %v104
  %v361 = vunpack.c.l.bf16 %v105
  %v362 = vunpack.c.l.bf16 %v106
  %v363 = vunpack.c.l.bf16 %v107
  %v364 = vunpack.c.l.bf16 %v108
  %v365 = vunpack.c.l.bf16 %v109
  %v366 = vunpack.c.l.bf16 %v110
  %v367 = vunpack.c.l.bf16 %v111
  %v368 = vunpack.c.l.bf16 %v112
  %v369 = vunpack.c.l.bf16 %v113
  %v370 = vunpack.c.l.bf16 %v114
  %v371 = vunpack.c.l.bf16 %v115
  %v372 = vunpack.c.l.bf16 %v116
  %v373 = vunpack.c.l.bf16 %v117
  %v374 = vunpack.c.l.bf16 %v118
  %v375 = vunpack.c.l.bf16 %v119
  %v376 = vunpack.c.l.bf16 %v120
  %v377 = vunpack.c.l.bf16 %v121
  %v378 = vunpack.c.l.bf16 %v122
  %v379 = vunpack.c.l.bf16 %v123
  %v380 = vunpack.c.l.bf16 %v124
  %v381 = vunpack.c.l.bf16 %v125
  %v382 = vunpack.c.l.bf16 %v126
  %v383 = vunpack.c.l.bf16 %v127
  %v384 = vunpack.c.l.bf16 %v128
  %v385 = vunpack.c.l.bf16 %v129
  %v386 = vunpack.c.l.bf16 %v130
  %v387 = vunpack.c.l.bf16 %v131
  %v388 = vunpack.c.l.bf16 %v132
  %v389 = vunpack.c.l.bf16 %v133
  %v390 = vunpack.c.l.bf16 %v134
  %v391 = vunpack.c.l.bf16 %v135
  %v392 = vunpack.c.l.bf16 %v136
  %v393 = vunpack.c.l.bf16 %v137
  %v394 = vunpack.c.l.bf16 %v138
  %v395 = vunpack.c.l.bf16 %v139
  %v396 = vunpack.c.l.bf16 %v140
  %v397 = vunpack.c.l.bf16 %v141
  %v398 = vunpack.c.l.bf16 %v142
  %v399 = vunpack.c.l.bf16 %v143
  %v400 = vunpack.c.l.bf16 %v144
  %v401 = vunpack.c.l.bf16 %v145
  %v402 = vunpack.c.l.bf16 %v146
  %v403 = vunpack.c.l.bf16 %v147
  %v404 = vunpack.c.l.bf16 %v148
  %v405 = vunpack.c.l.bf16 %v149
  %v406 = vunpack.c.l.bf16 %v150
  %v407 = vunpack.c.l.bf16 %v151
  %v408 = vunpack.c.l.bf16 %v152
  %v409 = vunpack.c.l.bf16 %v153
  %v410 = vunpack.c.l.bf16 %v154
  %v411 = vunpack.c.l.bf16 %v155
  %v412 = vunpack.c.l.bf16 %v156
  %v413 = vunpack.c.l.bf16 %v157
  %v414 = vunpack.c.l.bf16 %v158
  %v415 = vunpack.c.l.bf16 %v159
  %v416 = vunpack.c.l.bf16 %v160
  %v417 = vunpack.c.l.bf16 %v161
  %v418 = vunpack.c.l.bf16 %v162
  %v419 = vunpack.c.l.bf16 %v163
  %v420 = vunpack.c.l.bf16 %v164
  %v421 = vunpack.c.l.bf16 %v165
  %v422 = vunpack.c.l.bf16 %v166
  %v423 = vunpack.c.l.bf16 %v167
  %v424 = vunpack.c.l.bf16 %v168
  %v425 = vunpack.c.l.bf16 %v169
  %v426 = vunpack.c.l.bf16 %v170
  %v427 = vunpack.c.l.bf16 %v171
  %v428 = vunpack.c.l.bf16 %v172
  %v429 = vunpack.c.l.bf16 %v173
  %v430 = vunpack.c.l.bf16 %v174
  %v431 = vunpack.c.l.bf16 %v175
  %v432 = vunpack.c.l.bf16 %v176
  %v433 = vunpack.c.l.bf16 %v177
  %v434 = vunpack.c.l.bf16 %v178
  %v435 = vunpack.c.l.bf16 %v179
  %v436 = vunpack.c.l.bf16 %v180
  %v437 = vunpack.c.l.bf16 %v181
  %v438 = vunpack.c.l.bf16 %v182
  %v439 = vunpack.c.l.bf16 %v183
  %v440 = vunpack.c.l.bf16 %v184
  %v441 = vunpack.c.l.bf16 %v185
  %v442 = vunpack.c.l.bf16 %v186
  %v443 = vunpack.c.l.bf16 %v187
  %v444 = vunpack.c.l.bf16 %v188
  %v445 = vunpack.c.l.bf16 %v189
  %v446 = vunpack.c.l.bf16 %v190
  %v447 = vunpack.c.l.bf16 %v191
  %v448 = vunpack.c.l.bf16 %v192
  %v449 = vunpack.c.l.bf16 %v193
  %v450 = vunpack.c.l.bf16 %v194
  %v451 = vunpack.c.l.bf16 %v195
  %v452 = vunpack.c.l.bf16 %v196
  %v453 = vunpack.c.l.bf16 %v197
  %v454 = vunpack.c.l.bf16 %v198
  %v455 = vunpack.c.l.bf16 %v199
  %v456 = vunpack.c.l.bf16 %v200
  %v457 = vunpack.c.l.bf16 %v201
  %v458 = vunpack.c.l.bf16 %v202
  %v459 = vunpack.c.l.bf16 %v203
  %v460 = vunpack.c.l.bf16 %v204
  %v461 = vunpack.c.l.bf16 %v205
  %v462 = vunpack.c.l.bf16 %v206
  %v463 = vunpack.c.l.bf16 %v207
  %v464 = vunpack.c.l.bf16 %v208
  %v465 = vunpack.c.l.bf16 %v209
  %v466 = vunpack.c.l.bf16 %v210
  %v467 = vunpack.c.l.bf16 %v211
  %v468 = vunpack.c.l.bf16 %v212
  %v469 = vunpack.c.l.bf16 %v213
  %v470 = vunpack.c.l.bf16 %v214
  %v471 = vunpack.c.l.bf16 %v215
  %v472 = vunpack.c.l.bf16 %v216
  %v473 = vunpack.c.l.bf16 %v217
  %v474 = vunpack.c.l.bf16 %v218
  %v475 = vunpack.c.l.bf16 %v219
  %v476 = vunpack.c.l.bf16 %v220
  %v477 = vunpack.c.l.bf16 %v221
  %v478 = vunpack.c.l.bf16 %v222
  %v479 = vunpack.c.l.bf16 %v223
  %v480 = vunpack.c.l.bf16 %v224
  %v481 = vunpack.c.l.bf16 %v225
  %v482 = vunpack.c.l.bf16 %v226
  %v483 = vunpack.c.l.bf16 %v227
  %v484 = vunpack.c.l.bf16 %v228
  %v485 = vunpack.c.l.bf16 %v229
  %v486 = vunpack.c.l.bf16 %v230
  %v487 = vunpack.c.l.bf16 %v231
  %v488 = vunpack.c.l.bf16 %v232
  %v489 = vunpack.c.l.bf16 %v233
  %v490 = vunpack.c.l.bf16 %v234
  %v491 = vunpack.c.l.bf16 %v235
  %v492 = vunpack.c.l.bf16 %v236
  %v493 = vunpack.c.l.bf16 %v237
  %v494 = vunpack.c.l.bf16 %v238
  %v495 = vunpack.c.l.bf16 %v239
  %v496 = vunpack.c.l.bf16 %v240
  %v497 = vunpack.c.l.bf16 %v241
  %v498 = vunpack.c.l.bf16 %v242
  %v499 = vunpack.c.l.bf16 %v243
  %v500 = vunpack.c.l.bf16 %v244
  %v501 = vunpack.c.l.bf16 %v245
  %v502 = vunpack.c.l.bf16 %v246
  %v503 = vunpack.c.l.bf16 %v247
  %v504 = vunpack.c.l.bf16 %v248
  %v505 = vunpack.c.l.bf16 %v249
  %v506 = vunpack.c.l.bf16 %v250
  %v507 = vunpack.c.l.bf16 %v251
  %v508 = vunpack.c.l.bf16 %v252
  %v509 = vunpack.c.l.bf16 %v253
  %v510 = vunpack.c.l.bf16 %v254
  %v511 = vunpack.c.l.bf16 %v255
  %v512 = vunpack.c.l.bf16 %v256
  %v513 = vunpack.c.l.bf16 %v257
  %v514 = vunpack.c.l.bf16 %v258
  %v515 = vunpack.c.l.bf16 %v259
  %v516 = vunpack.c.l.bf16 %v260
  %v517 = vunpack.c.l.bf16 %v261
  %v518 = vunpack.c.l.bf16 %v262
  %v519 = vunpack.c.l.bf16 %v263
  %v520 = vunpack.c.l.bf16 %v264
  %v521 = vunpack.c.l.bf16 %v265
  %v522 = vunpack.c.l.bf16 %v266
  %v523 = vunpack.c.l.bf16 %v267
  %v524 = vunpack.c.l.bf16 %v268
  %v525 = vunpack.c.l.bf16 %v269
  %v526 = vunpack.c.l.bf16 %v270
  %v527 = vunpack.c.l.bf16 %v271
  %v528 = vunpack.c.l.bf16 %v272
  %v529 = vunpack.c.l.bf16 %v273
  %v530 = vld [vmem:[%s1] sm:$0x1]
  %v532 = vlaneseq
  %v533 = vshrl.u32 %v532, 7
  %v534 = vsub.s32 0, %v533
  %v535 = vrot.slane %v530, %v534
  %v537 = vmul.f32 %v274, %v535
  %v538 = vmul.f32 %v275, %v535
  %v539 = vmul.f32 %v276, %v535
  %v540 = vmul.f32 %v277, %v535
  %v541 = vmul.f32 %v278, %v535
  %v542 = vmul.f32 %v279, %v535
  %v543 = vmul.f32 %v280, %v535
  %v544 = vmul.f32 %v281, %v535
  %v545 = vmul.f32 %v282, %v535
  %v546 = vmul.f32 %v283, %v535
  %v547 = vmul.f32 %v284, %v535
  %v548 = vmul.f32 %v285, %v535
  %v549 = vmul.f32 %v286, %v535
  %v550 = vmul.f32 %v287, %v535
  %v551 = vmul.f32 %v288, %v535
  %v552 = vmul.f32 %v289, %v535
  %v553 = vmul.f32 %v290, %v535
  %v554 = vmul.f32 %v291, %v535
  %v555 = vmul.f32 %v292, %v535
  %v556 = vmul.f32 %v293, %v535
  %v557 = vmul.f32 %v294, %v535
  %v558 = vmul.f32 %v295, %v535
  %v559 = vmul.f32 %v296, %v535
  %v560 = vmul.f32 %v297, %v535
  %v561 = vmul.f32 %v298, %v535
  %v562 = vmul.f32 %v299, %v535
  %v563 = vmul.f32 %v300, %v535
  %v564 = vmul.f32 %v301, %v535
  %v565 = vmul.f32 %v302, %v535
  %v566 = vmul.f32 %v303, %v535
  %v567 = vmul.f32 %v304, %v535
  %v568 = vmul.f32 %v305, %v535
  %v569 = vmul.f32 %v306, %v535
  %v570 = vmul.f32 %v307, %v535
  %v571 = vmul.f32 %v308, %v535
  %v572 = vmul.f32 %v309, %v535
  %v573 = vmul.f32 %v310, %v535
  %v574 = vmul.f32 %v311, %v535
  %v575 = vmul.f32 %v312, %v535
  %v576 = vmul.f32 %v313, %v535
  %v577 = vmul.f32 %v314, %v535
  %v578 = vmul.f32 %v315, %v535
  %v579 = vmul.f32 %v316, %v535
  %v580 = vmul.f32 %v317, %v535
  %v581 = vmul.f32 %v318, %v535
  %v582 = vmul.f32 %v319, %v535
  %v583 = vmul.f32 %v320, %v535
  %v584 = vmul.f32 %v321, %v535
  %v585 = vmul.f32 %v322, %v535
  %v586 = vmul.f32 %v323, %v535
  %v587 = vmul.f32 %v324, %v535
  %v588 = vmul.f32 %v325, %v535
  %v589 = vmul.f32 %v326, %v535
  %v590 = vmul.f32 %v327, %v535
  %v591 = vmul.f32 %v328, %v535
  %v592 = vmul.f32 %v329, %v535
  %v593 = vmul.f32 %v330, %v535
  %v594 = vmul.f32 %v331, %v535
  %v595 = vmul.f32 %v332, %v535
  %v596 = vmul.f32 %v333, %v535
  %v597 = vmul.f32 %v334, %v535
  %v598 = vmul.f32 %v335, %v535
  %v599 = vmul.f32 %v336, %v535
  %v600 = vmul.f32 %v337, %v535
  %v601 = vmul.f32 %v338, %v535
  %v602 = vmul.f32 %v339, %v535
  %v603 = vmul.f32 %v340, %v535
  %v604 = vmul.f32 %v341, %v535
  %v605 = vmul.f32 %v342, %v535
  %v606 = vmul.f32 %v343, %v535
  %v607 = vmul.f32 %v344, %v535
  %v608 = vmul.f32 %v345, %v535
  %v609 = vmul.f32 %v346, %v535
  %v610 = vmul.f32 %v347, %v535
  %v611 = vmul.f32 %v348, %v535
  %v612 = vmul.f32 %v349, %v535
  %v613 = vmul.f32 %v350, %v535
  %v614 = vmul.f32 %v351, %v535
  %v615 = vmul.f32 %v352, %v535
  %v616 = vmul.f32 %v353, %v535
  %v617 = vmul.f32 %v354, %v535
  %v618 = vmul.f32 %v355, %v535
  %v619 = vmul.f32 %v356, %v535
  %v620 = vmul.f32 %v357, %v535
  %v621 = vmul.f32 %v358, %v535
  %v622 = vmul.f32 %v359, %v535
  %v623 = vmul.f32 %v360, %v535
  %v624 = vmul.f32 %v361, %v535
  %v625 = vmul.f32 %v362, %v535
  %v626 = vmul.f32 %v363, %v535
  %v627 = vmul.f32 %v364, %v535
  %v628 = vmul.f32 %v365, %v535
  %v629 = vmul.f32 %v366, %v535
  %v630 = vmul.f32 %v367, %v535
  %v631 = vmul.f32 %v368, %v535
  %v632 = vmul.f32 %v369, %v535
  %v633 = vmul.f32 %v370, %v535
  %v634 = vmul.f32 %v371, %v535
  %v635 = vmul.f32 %v372, %v535
  %v636 = vmul.f32 %v373, %v535
  %v637 = vmul.f32 %v374, %v535
  %v638 = vmul.f32 %v375, %v535
  %v639 = vmul.f32 %v376, %v535
  %v640 = vmul.f32 %v377, %v535
  %v641 = vmul.f32 %v378, %v535
  %v642 = vmul.f32 %v379, %v535
  %v643 = vmul.f32 %v380, %v535
  %v644 = vmul.f32 %v381, %v535
  %v645 = vmul.f32 %v382, %v535
  %v646 = vmul.f32 %v383, %v535
  %v647 = vmul.f32 %v384, %v535
  %v648 = vmul.f32 %v385, %v535
  %v649 = vmul.f32 %v386, %v535
  %v650 = vmul.f32 %v387, %v535
  %v651 = vmul.f32 %v388, %v535
  %v652 = vmul.f32 %v389, %v535
  %v653 = vmul.f32 %v390, %v535
  %v654 = vmul.f32 %v391, %v535
  %v655 = vmul.f32 %v392, %v535
  %v656 = vmul.f32 %v393, %v535
  %v657 = vmul.f32 %v394, %v535
  %v658 = vmul.f32 %v395, %v535
  %v659 = vmul.f32 %v396, %v535
  %v660 = vmul.f32 %v397, %v535
  %v661 = vmul.f32 %v398, %v535
  %v662 = vmul.f32 %v399, %v535
  %v663 = vmul.f32 %v400, %v535
  %v664 = vmul.f32 %v401, %v535
  %v665 = vmul.f32 %v402, %v535
  %v666 = vmul.f32 %v403, %v535
  %v667 = vmul.f32 %v404, %v535
  %v668 = vmul.f32 %v405, %v535
  %v669 = vmul.f32 %v406, %v535
  %v670 = vmul.f32 %v407, %v535
  %v671 = vmul.f32 %v408, %v535
  %v672 = vmul.f32 %v409, %v535
  %v673 = vmul.f32 %v410, %v535
  %v674 = vmul.f32 %v411, %v535
  %v675 = vmul.f32 %v412, %v535
  %v676 = vmul.f32 %v413, %v535
  %v677 = vmul.f32 %v414, %v535
  %v678 = vmul.f32 %v415, %v535
  %v679 = vmul.f32 %v416, %v535
  %v680 = vmul.f32 %v417, %v535
  %v681 = vmul.f32 %v418, %v535
  %v682 = vmul.f32 %v419, %v535
  %v683 = vmul.f32 %v420, %v535
  %v684 = vmul.f32 %v421, %v535
  %v685 = vmul.f32 %v422, %v535
  %v686 = vmul.f32 %v423, %v535
  %v687 = vmul.f32 %v424, %v535
  %v688 = vmul.f32 %v425, %v535
  %v689 = vmul.f32 %v426, %v535
  %v690 = vmul.f32 %v427, %v535
  %v691 = vmul.f32 %v428, %v535
  %v692 = vmul.f32 %v429, %v535
  %v693 = vmul.f32 %v430, %v535
  %v694 = vmul.f32 %v431, %v535
  %v695 = vmul.f32 %v432, %v535
  %v696 = vmul.f32 %v433, %v535
  %v697 = vmul.f32 %v434, %v535
  %v698 = vmul.f32 %v435, %v535
  %v699 = vmul.f32 %v436, %v535
  %v700 = vmul.f32 %v437, %v535
  %v701 = vmul.f32 %v438, %v535
  %v702 = vmul.f32 %v439, %v535
  %v703 = vmul.f32 %v440, %v535
  %v704 = vmul.f32 %v441, %v535
  %v705 = vmul.f32 %v442, %v535
  %v706 = vmul.f32 %v443, %v535
  %v707 = vmul.f32 %v444, %v535
  %v708 = vmul.f32 %v445, %v535
  %v709 = vmul.f32 %v446, %v535
  %v710 = vmul.f32 %v447, %v535
  %v711 = vmul.f32 %v448, %v535
  %v712 = vmul.f32 %v449, %v535
  %v713 = vmul.f32 %v450, %v535
  %v714 = vmul.f32 %v451, %v535
  %v715 = vmul.f32 %v452, %v535
  %v716 = vmul.f32 %v453, %v535
  %v717 = vmul.f32 %v454, %v535
  %v718 = vmul.f32 %v455, %v535
  %v719 = vmul.f32 %v456, %v535
  %v720 = vmul.f32 %v457, %v535
  %v721 = vmul.f32 %v458, %v535
  %v722 = vmul.f32 %v459, %v535
  %v723 = vmul.f32 %v460, %v535
  %v724 = vmul.f32 %v461, %v535
  %v725 = vmul.f32 %v462, %v535
  %v726 = vmul.f32 %v463, %v535
  %v727 = vmul.f32 %v464, %v535
  %v728 = vmul.f32 %v465, %v535
  %v729 = vmul.f32 %v466, %v535
  %v730 = vmul.f32 %v467, %v535
  %v731 = vmul.f32 %v468, %v535
  %v732 = vmul.f32 %v469, %v535
  %v733 = vmul.f32 %v470, %v535
  %v734 = vmul.f32 %v471, %v535
  %v735 = vmul.f32 %v472, %v535
  %v736 = vmul.f32 %v473, %v535
  %v737 = vmul.f32 %v474, %v535
  %v738 = vmul.f32 %v475, %v535
  %v739 = vmul.f32 %v476, %v535
  %v740 = vmul.f32 %v477, %v535
  %v741 = vmul.f32 %v478, %v535
  %v742 = vmul.f32 %v479, %v535
  %v743 = vmul.f32 %v480, %v535
  %v744 = vmul.f32 %v481, %v535
  %v745 = vmul.f32 %v482, %v535
  %v746 = vmul.f32 %v483, %v535
  %v747 = vmul.f32 %v484, %v535
  %v748 = vmul.f32 %v485, %v535
  %v749 = vmul.f32 %v486, %v535
  %v750 = vmul.f32 %v487, %v535
  %v751 = vmul.f32 %v488, %v535
  %v752 = vmul.f32 %v489, %v535
  %v753 = vmul.f32 %v490, %v535
  %v754 = vmul.f32 %v491, %v535
  %v755 = vmul.f32 %v492, %v535
  %v756 = vmul.f32 %v493, %v535
  %v757 = vmul.f32 %v494, %v535
  %v758 = vmul.f32 %v495, %v535
  %v759 = vmul.f32 %v496, %v535
  %v760 = vmul.f32 %v497, %v535
  %v761 = vmul.f32 %v498, %v535
  %v762 = vmul.f32 %v499, %v535
  %v763 = vmul.f32 %v500, %v535
  %v764 = vmul.f32 %v501, %v535
  %v765 = vmul.f32 %v502, %v535
  %v766 = vmul.f32 %v503, %v535
  %v767 = vmul.f32 %v504, %v535
  %v768 = vmul.f32 %v505, %v535
  %v769 = vmul.f32 %v506, %v535
  %v770 = vmul.f32 %v507, %v535
  %v771 = vmul.f32 %v508, %v535
  %v772 = vmul.f32 %v509, %v535
  %v773 = vmul.f32 %v510, %v535
  %v774 = vmul.f32 %v511, %v535
  %v775 = vmul.f32 %v512, %v535
  %v776 = vmul.f32 %v513, %v535
  %v777 = vmul.f32 %v514, %v535
  %v778 = vmul.f32 %v515, %v535
  %v779 = vmul.f32 %v516, %v535
  %v780 = vmul.f32 %v517, %v535
  %v781 = vmul.f32 %v518, %v535
  %v782 = vmul.f32 %v519, %v535
  %v783 = vmul.f32 %v520, %v535
  %v784 = vmul.f32 %v521, %v535
  %v785 = vmul.f32 %v522, %v535
  %v786 = vmul.f32 %v523, %v535
  %v787 = vmul.f32 %v524, %v535
  %v788 = vmul.f32 %v525, %v535
  %v789 = vmul.f32 %v526, %v535
  %v790 = vmul.f32 %v527, %v535
  %v791 = vmul.f32 %v528, %v535
  %v792 = vmul.f32 %v529, %v535
  %v793 = vld [vmem:[%s2] sm:$0x1]
  %v795 = vlaneseq
  %v796 = vshrl.u32 %v795, 7
  %v797 = vsub.s32 0, %v796
  %v798 = vrot.slane %v793, %v797
  %v800 = vadd.f32 %v537, %v798
  %v801 = vadd.f32 %v538, %v798
  %v802 = vadd.f32 %v539, %v798
  %v803 = vadd.f32 %v540, %v798
  %v804 = vadd.f32 %v541, %v798
  %v805 = vadd.f32 %v542, %v798
  %v806 = vadd.f32 %v543, %v798
  %v807 = vadd.f32 %v544, %v798
  %v808 = vadd.f32 %v545, %v798
  %v809 = vadd.f32 %v546, %v798
  %v810 = vadd.f32 %v547, %v798
  %v811 = vadd.f32 %v548, %v798
  %v812 = vadd.f32 %v549, %v798
  %v813 = vadd.f32 %v550, %v798
  %v814 = vadd.f32 %v551, %v798
  %v815 = vadd.f32 %v552, %v798
  %v816 = vadd.f32 %v553, %v798
  %v817 = vadd.f32 %v554, %v798
  %v818 = vadd.f32 %v555, %v798
  %v819 = vadd.f32 %v556, %v798
  %v820 = vadd.f32 %v557, %v798
  %v821 = vadd.f32 %v558, %v798
  %v822 = vadd.f32 %v559, %v798
  %v823 = vadd.f32 %v560, %v798
  %v824 = vadd.f32 %v561, %v798
  %v825 = vadd.f32 %v562, %v798
  %v826 = vadd.f32 %v563, %v798
  %v827 = vadd.f32 %v564, %v798
  %v828 = vadd.f32 %v565, %v798
  %v829 = vadd.f32 %v566, %v798
  %v830 = vadd.f32 %v567, %v798
  %v831 = vadd.f32 %v568, %v798
  %v832 = vadd.f32 %v569, %v798
  %v833 = vadd.f32 %v570, %v798
  %v834 = vadd.f32 %v571, %v798
  %v835 = vadd.f32 %v572, %v798
  %v836 = vadd.f32 %v573, %v798
  %v837 = vadd.f32 %v574, %v798
  %v838 = vadd.f32 %v575, %v798
  %v839 = vadd.f32 %v576, %v798
  %v840 = vadd.f32 %v577, %v798
  %v841 = vadd.f32 %v578, %v798
  %v842 = vadd.f32 %v579, %v798
  %v843 = vadd.f32 %v580, %v798
  %v844 = vadd.f32 %v581, %v798
  %v845 = vadd.f32 %v582, %v798
  %v846 = vadd.f32 %v583, %v798
  %v847 = vadd.f32 %v584, %v798
  %v848 = vadd.f32 %v585, %v798
  %v849 = vadd.f32 %v586, %v798
  %v850 = vadd.f32 %v587, %v798
  %v851 = vadd.f32 %v588, %v798
  %v852 = vadd.f32 %v589, %v798
  %v853 = vadd.f32 %v590, %v798
  %v854 = vadd.f32 %v591, %v798
  %v855 = vadd.f32 %v592, %v798
  %v856 = vadd.f32 %v593, %v798
  %v857 = vadd.f32 %v594, %v798
  %v858 = vadd.f32 %v595, %v798
  %v859 = vadd.f32 %v596, %v798
  %v860 = vadd.f32 %v597, %v798
  %v861 = vadd.f32 %v598, %v798
  %v862 = vadd.f32 %v599, %v798
  %v863 = vadd.f32 %v600, %v798
  %v864 = vadd.f32 %v601, %v798
  %v865 = vadd.f32 %v602, %v798
  %v866 = vadd.f32 %v603, %v798
  %v867 = vadd.f32 %v604, %v798
  %v868 = vadd.f32 %v605, %v798
  %v869 = vadd.f32 %v606, %v798
  %v870 = vadd.f32 %v607, %v798
  %v871 = vadd.f32 %v608, %v798
  %v872 = vadd.f32 %v609, %v798
  %v873 = vadd.f32 %v610, %v798
  %v874 = vadd.f32 %v611, %v798
  %v875 = vadd.f32 %v612, %v798
  %v876 = vadd.f32 %v613, %v798
  %v877 = vadd.f32 %v614, %v798
  %v878 = vadd.f32 %v615, %v798
  %v879 = vadd.f32 %v616, %v798
  %v880 = vadd.f32 %v617, %v798
  %v881 = vadd.f32 %v618, %v798
  %v882 = vadd.f32 %v619, %v798
  %v883 = vadd.f32 %v620, %v798
  %v884 = vadd.f32 %v621, %v798
  %v885 = vadd.f32 %v622, %v798
  %v886 = vadd.f32 %v623, %v798
  %v887 = vadd.f32 %v624, %v798
  %v888 = vadd.f32 %v625, %v798
  %v889 = vadd.f32 %v626, %v798
  %v890 = vadd.f32 %v627, %v798
  %v891 = vadd.f32 %v628, %v798
  %v892 = vadd.f32 %v629, %v798
  %v893 = vadd.f32 %v630, %v798
  %v894 = vadd.f32 %v631, %v798
  %v895 = vadd.f32 %v632, %v798
  %v896 = vadd.f32 %v633, %v798
  %v897 = vadd.f32 %v634, %v798
  %v898 = vadd.f32 %v635, %v798
  %v899 = vadd.f32 %v636, %v798
  %v900 = vadd.f32 %v637, %v798
  %v901 = vadd.f32 %v638, %v798
  %v902 = vadd.f32 %v639, %v798
  %v903 = vadd.f32 %v640, %v798
  %v904 = vadd.f32 %v641, %v798
  %v905 = vadd.f32 %v642, %v798
  %v906 = vadd.f32 %v643, %v798
  %v907 = vadd.f32 %v644, %v798
  %v908 = vadd.f32 %v645, %v798
  %v909 = vadd.f32 %v646, %v798
  %v910 = vadd.f32 %v647, %v798
  %v911 = vadd.f32 %v648, %v798
  %v912 = vadd.f32 %v649, %v798
  %v913 = vadd.f32 %v650, %v798
  %v914 = vadd.f32 %v651, %v798
  %v915 = vadd.f32 %v652, %v798
  %v916 = vadd.f32 %v653, %v798
  %v917 = vadd.f32 %v654, %v798
  %v918 = vadd.f32 %v655, %v798
  %v919 = vadd.f32 %v656, %v798
  %v920 = vadd.f32 %v657, %v798
  %v921 = vadd.f32 %v658, %v798
  %v922 = vadd.f32 %v659, %v798
  %v923 = vadd.f32 %v660, %v798
  %v924 = vadd.f32 %v661, %v798
  %v925 = vadd.f32 %v662, %v798
  %v926 = vadd.f32 %v663, %v798
  %v927 = vadd.f32 %v664, %v798
  %v928 = vadd.f32 %v665, %v798
  %v929 = vadd.f32 %v666, %v798
  %v930 = vadd.f32 %v667, %v798
  %v931 = vadd.f32 %v668, %v798
  %v932 = vadd.f32 %v669, %v798
  %v933 = vadd.f32 %v670, %v798
  %v934 = vadd.f32 %v671, %v798
  %v935 = vadd.f32 %v672, %v798
  %v936 = vadd.f32 %v673, %v798
  %v937 = vadd.f32 %v674, %v798
  %v938 = vadd.f32 %v675, %v798
  %v939 = vadd.f32 %v676, %v798
  %v940 = vadd.f32 %v677, %v798
  %v941 = vadd.f32 %v678, %v798
  %v942 = vadd.f32 %v679, %v798
  %v943 = vadd.f32 %v680, %v798
  %v944 = vadd.f32 %v681, %v798
  %v945 = vadd.f32 %v682, %v798
  %v946 = vadd.f32 %v683, %v798
  %v947 = vadd.f32 %v684, %v798
  %v948 = vadd.f32 %v685, %v798
  %v949 = vadd.f32 %v686, %v798
  %v950 = vadd.f32 %v687, %v798
  %v951 = vadd.f32 %v688, %v798
  %v952 = vadd.f32 %v689, %v798
  %v953 = vadd.f32 %v690, %v798
  %v954 = vadd.f32 %v691, %v798
  %v955 = vadd.f32 %v692, %v798
  %v956 = vadd.f32 %v693, %v798
  %v957 = vadd.f32 %v694, %v798
  %v958 = vadd.f32 %v695, %v798
  %v959 = vadd.f32 %v696, %v798
  %v960 = vadd.f32 %v697, %v798
  %v961 = vadd.f32 %v698, %v798
  %v962 = vadd.f32 %v699, %v798
  %v963 = vadd.f32 %v700, %v798
  %v964 = vadd.f32 %v701, %v798
  %v965 = vadd.f32 %v702, %v798
  %v966 = vadd.f32 %v703, %v798
  %v967 = vadd.f32 %v704, %v798
  %v968 = vadd.f32 %v705, %v798
  %v969 = vadd.f32 %v706, %v798
  %v970 = vadd.f32 %v707, %v798
  %v971 = vadd.f32 %v708, %v798
  %v972 = vadd.f32 %v709, %v798
  %v973 = vadd.f32 %v710, %v798
  %v974 = vadd.f32 %v711, %v798
  %v975 = vadd.f32 %v712, %v798
  %v976 = vadd.f32 %v713, %v798
  %v977 = vadd.f32 %v714, %v798
  %v978 = vadd.f32 %v715, %v798
  %v979 = vadd.f32 %v716, %v798
  %v980 = vadd.f32 %v717, %v798
  %v981 = vadd.f32 %v718, %v798
  %v982 = vadd.f32 %v719, %v798
  %v983 = vadd.f32 %v720, %v798
  %v984 = vadd.f32 %v721, %v798
  %v985 = vadd.f32 %v722, %v798
  %v986 = vadd.f32 %v723, %v798
  %v987 = vadd.f32 %v724, %v798
  %v988 = vadd.f32 %v725, %v798
  %v989 = vadd.f32 %v726, %v798
  %v990 = vadd.f32 %v727, %v798
  %v991 = vadd.f32 %v728, %v798
  %v992 = vadd.f32 %v729, %v798
  %v993 = vadd.f32 %v730, %v798
  %v994 = vadd.f32 %v731, %v798
  %v995 = vadd.f32 %v732, %v798
  %v996 = vadd.f32 %v733, %v798
  %v997 = vadd.f32 %v734, %v798
  %v998 = vadd.f32 %v735, %v798
  %v999 = vadd.f32 %v736, %v798
  %v1000 = vadd.f32 %v737, %v798
  %v1001 = vadd.f32 %v738, %v798
  %v1002 = vadd.f32 %v739, %v798
  %v1003 = vadd.f32 %v740, %v798
  %v1004 = vadd.f32 %v741, %v798
  %v1005 = vadd.f32 %v742, %v798
  %v1006 = vadd.f32 %v743, %v798
  %v1007 = vadd.f32 %v744, %v798
  %v1008 = vadd.f32 %v745, %v798
  %v1009 = vadd.f32 %v746, %v798
  %v1010 = vadd.f32 %v747, %v798
  %v1011 = vadd.f32 %v748, %v798
  %v1012 = vadd.f32 %v749, %v798
  %v1013 = vadd.f32 %v750, %v798
  %v1014 = vadd.f32 %v751, %v798
  %v1015 = vadd.f32 %v752, %v798
  %v1016 = vadd.f32 %v753, %v798
  %v1017 = vadd.f32 %v754, %v798
  %v1018 = vadd.f32 %v755, %v798
  %v1019 = vadd.f32 %v756, %v798
  %v1020 = vadd.f32 %v757, %v798
  %v1021 = vadd.f32 %v758, %v798
  %v1022 = vadd.f32 %v759, %v798
  %v1023 = vadd.f32 %v760, %v798
  %v1024 = vadd.f32 %v761, %v798
  %v1025 = vadd.f32 %v762, %v798
  %v1026 = vadd.f32 %v763, %v798
  %v1027 = vadd.f32 %v764, %v798
  %v1028 = vadd.f32 %v765, %v798
  %v1029 = vadd.f32 %v766, %v798
  %v1030 = vadd.f32 %v767, %v798
  %v1031 = vadd.f32 %v768, %v798
  %v1032 = vadd.f32 %v769, %v798
  %v1033 = vadd.f32 %v770, %v798
  %v1034 = vadd.f32 %v771, %v798
  %v1035 = vadd.f32 %v772, %v798
  %v1036 = vadd.f32 %v773, %v798
  %v1037 = vadd.f32 %v774, %v798
  %v1038 = vadd.f32 %v775, %v798
  %v1039 = vadd.f32 %v776, %v798
  %v1040 = vadd.f32 %v777, %v798
  %v1041 = vadd.f32 %v778, %v798
  %v1042 = vadd.f32 %v779, %v798
  %v1043 = vadd.f32 %v780, %v798
  %v1044 = vadd.f32 %v781, %v798
  %v1045 = vadd.f32 %v782, %v798
  %v1046 = vadd.f32 %v783, %v798
  %v1047 = vadd.f32 %v784, %v798
  %v1048 = vadd.f32 %v785, %v798
  %v1049 = vadd.f32 %v786, %v798
  %v1050 = vadd.f32 %v787, %v798
  %v1051 = vadd.f32 %v788, %v798
  %v1052 = vadd.f32 %v789, %v798
  %v1053 = vadd.f32 %v790, %v798
  %v1054 = vadd.f32 %v791, %v798
  %v1055 = vadd.f32 %v792, %v798
  %v1056 = vmax.f32 %v800, 0.0
  %v1057 = vmax.f32 %v801, 0.0
  %v1058 = vmax.f32 %v802, 0.0
  %v1059 = vmax.f32 %v803, 0.0
  %v1060 = vmax.f32 %v804, 0.0
  %v1061 = vmax.f32 %v805, 0.0
  %v1062 = vmax.f32 %v806, 0.0
  %v1063 = vmax.f32 %v807, 0.0
  %v1064 = vmax.f32 %v808, 0.0
  %v1065 = vmax.f32 %v809, 0.0
  %v1066 = vmax.f32 %v810, 0.0
  %v1067 = vmax.f32 %v811, 0.0
  %v1068 = vmax.f32 %v812, 0.0
  %v1069 = vmax.f32 %v813, 0.0
  %v1070 = vmax.f32 %v814, 0.0
  %v1071 = vmax.f32 %v815, 0.0
  %v1072 = vmax.f32 %v816, 0.0
  %v1073 = vmax.f32 %v817, 0.0
  %v1074 = vmax.f32 %v818, 0.0
  %v1075 = vmax.f32 %v819, 0.0
  %v1076 = vmax.f32 %v820, 0.0
  %v1077 = vmax.f32 %v821, 0.0
  %v1078 = vmax.f32 %v822, 0.0
  %v1079 = vmax.f32 %v823, 0.0
  %v1080 = vmax.f32 %v824, 0.0
  %v1081 = vmax.f32 %v825, 0.0
  %v1082 = vmax.f32 %v826, 0.0
  %v1083 = vmax.f32 %v827, 0.0
  %v1084 = vmax.f32 %v828, 0.0
  %v1085 = vmax.f32 %v829, 0.0
  %v1086 = vmax.f32 %v830, 0.0
  %v1087 = vmax.f32 %v831, 0.0
  %v1088 = vmax.f32 %v832, 0.0
  %v1089 = vmax.f32 %v833, 0.0
  %v1090 = vmax.f32 %v834, 0.0
  %v1091 = vmax.f32 %v835, 0.0
  %v1092 = vmax.f32 %v836, 0.0
  %v1093 = vmax.f32 %v837, 0.0
  %v1094 = vmax.f32 %v838, 0.0
  %v1095 = vmax.f32 %v839, 0.0
  %v1096 = vmax.f32 %v840, 0.0
  %v1097 = vmax.f32 %v841, 0.0
  %v1098 = vmax.f32 %v842, 0.0
  %v1099 = vmax.f32 %v843, 0.0
  %v1100 = vmax.f32 %v844, 0.0
  %v1101 = vmax.f32 %v845, 0.0
  %v1102 = vmax.f32 %v846, 0.0
  %v1103 = vmax.f32 %v847, 0.0
  %v1104 = vmax.f32 %v848, 0.0
  %v1105 = vmax.f32 %v849, 0.0
  %v1106 = vmax.f32 %v850, 0.0
  %v1107 = vmax.f32 %v851, 0.0
  %v1108 = vmax.f32 %v852, 0.0
  %v1109 = vmax.f32 %v853, 0.0
  %v1110 = vmax.f32 %v854, 0.0
  %v1111 = vmax.f32 %v855, 0.0
  %v1112 = vmax.f32 %v856, 0.0
  %v1113 = vmax.f32 %v857, 0.0
  %v1114 = vmax.f32 %v858, 0.0
  %v1115 = vmax.f32 %v859, 0.0
  %v1116 = vmax.f32 %v860, 0.0
  %v1117 = vmax.f32 %v861, 0.0
  %v1118 = vmax.f32 %v862, 0.0
  %v1119 = vmax.f32 %v863, 0.0
  %v1120 = vmax.f32 %v864, 0.0
  %v1121 = vmax.f32 %v865, 0.0
  %v1122 = vmax.f32 %v866, 0.0
  %v1123 = vmax.f32 %v867, 0.0
  %v1124 = vmax.f32 %v868, 0.0
  %v1125 = vmax.f32 %v869, 0.0
  %v1126 = vmax.f32 %v870, 0.0
  %v1127 = vmax.f32 %v871, 0.0
  %v1128 = vmax.f32 %v872, 0.0
  %v1129 = vmax.f32 %v873, 0.0
  %v1130 = vmax.f32 %v874, 0.0
  %v1131 = vmax.f32 %v875, 0.0
  %v1132 = vmax.f32 %v876, 0.0
  %v1133 = vmax.f32 %v877, 0.0
  %v1134 = vmax.f32 %v878, 0.0
  %v1135 = vmax.f32 %v879, 0.0
  %v1136 = vmax.f32 %v880, 0.0
  %v1137 = vmax.f32 %v881, 0.0
  %v1138 = vmax.f32 %v882, 0.0
  %v1139 = vmax.f32 %v883, 0.0
  %v1140 = vmax.f32 %v884, 0.0
  %v1141 = vmax.f32 %v885, 0.0
  %v1142 = vmax.f32 %v886, 0.0
  %v1143 = vmax.f32 %v887, 0.0
  %v1144 = vmax.f32 %v888, 0.0
  %v1145 = vmax.f32 %v889, 0.0
  %v1146 = vmax.f32 %v890, 0.0
  %v1147 = vmax.f32 %v891, 0.0
  %v1148 = vmax.f32 %v892, 0.0
  %v1149 = vmax.f32 %v893, 0.0
  %v1150 = vmax.f32 %v894, 0.0
  %v1151 = vmax.f32 %v895, 0.0
  %v1152 = vmax.f32 %v896, 0.0
  %v1153 = vmax.f32 %v897, 0.0
  %v1154 = vmax.f32 %v898, 0.0
  %v1155 = vmax.f32 %v899, 0.0
  %v1156 = vmax.f32 %v900, 0.0
  %v1157 = vmax.f32 %v901, 0.0
  %v1158 = vmax.f32 %v902, 0.0
  %v1159 = vmax.f32 %v903, 0.0
  %v1160 = vmax.f32 %v904, 0.0
  %v1161 = vmax.f32 %v905, 0.0
  %v1162 = vmax.f32 %v906, 0.0
  %v1163 = vmax.f32 %v907, 0.0
  %v1164 = vmax.f32 %v908, 0.0
  %v1165 = vmax.f32 %v909, 0.0
  %v1166 = vmax.f32 %v910, 0.0
  %v1167 = vmax.f32 %v911, 0.0
  %v1168 = vmax.f32 %v912, 0.0
  %v1169 = vmax.f32 %v913, 0.0
  %v1170 = vmax.f32 %v914, 0.0
  %v1171 = vmax.f32 %v915, 0.0
  %v1172 = vmax.f32 %v916, 0.0
  %v1173 = vmax.f32 %v917, 0.0
  %v1174 = vmax.f32 %v918, 0.0
  %v1175 = vmax.f32 %v919, 0.0
  %v1176 = vmax.f32 %v920, 0.0
  %v1177 = vmax.f32 %v921, 0.0
  %v1178 = vmax.f32 %v922, 0.0
  %v1179 = vmax.f32 %v923, 0.0
  %v1180 = vmax.f32 %v924, 0.0
  %v1181 = vmax.f32 %v925, 0.0
  %v1182 = vmax.f32 %v926, 0.0
  %v1183 = vmax.f32 %v927, 0.0
  %v1184 = vmax.f32 %v928, 0.0
  %v1185 = vmax.f32 %v929, 0.0
  %v1186 = vmax.f32 %v930, 0.0
  %v1187 = vmax.f32 %v931, 0.0
  %v1188 = vmax.f32 %v932, 0.0
  %v1189 = vmax.f32 %v933, 0.0
  %v1190 = vmax.f32 %v934, 0.0
  %v1191 = vmax.f32 %v935, 0.0
  %v1192 = vmax.f32 %v936, 0.0
  %v1193 = vmax.f32 %v937, 0.0
  %v1194 = vmax.f32 %v938, 0.0
  %v1195 = vmax.f32 %v939, 0.0
  %v1196 = vmax.f32 %v940, 0.0
  %v1197 = vmax.f32 %v941, 0.0
  %v1198 = vmax.f32 %v942, 0.0
  %v1199 = vmax.f32 %v943, 0.0
  %v1200 = vmax.f32 %v944, 0.0
  %v1201 = vmax.f32 %v945, 0.0
  %v1202 = vmax.f32 %v946, 0.0
  %v1203 = vmax.f32 %v947, 0.0
  %v1204 = vmax.f32 %v948, 0.0
  %v1205 = vmax.f32 %v949, 0.0
  %v1206 = vmax.f32 %v950, 0.0
  %v1207 = vmax.f32 %v951, 0.0
  %v1208 = vmax.f32 %v952, 0.0
  %v1209 = vmax.f32 %v953, 0.0
  %v1210 = vmax.f32 %v954, 0.0
  %v1211 = vmax.f32 %v955, 0.0
  %v1212 = vmax.f32 %v956, 0.0
  %v1213 = vmax.f32 %v957, 0.0
  %v1214 = vmax.f32 %v958, 0.0
  %v1215 = vmax.f32 %v959, 0.0
  %v1216 = vmax.f32 %v960, 0.0
  %v1217 = vmax.f32 %v961, 0.0
  %v1218 = vmax.f32 %v962, 0.0
  %v1219 = vmax.f32 %v963, 0.0
  %v1220 = vmax.f32 %v964, 0.0
  %v1221 = vmax.f32 %v965, 0.0
  %v1222 = vmax.f32 %v966, 0.0
  %v1223 = vmax.f32 %v967, 0.0
  %v1224 = vmax.f32 %v968, 0.0
  %v1225 = vmax.f32 %v969, 0.0
  %v1226 = vmax.f32 %v970, 0.0
  %v1227 = vmax.f32 %v971, 0.0
  %v1228 = vmax.f32 %v972, 0.0
  %v1229 = vmax.f32 %v973, 0.0
  %v1230 = vmax.f32 %v974, 0.0
  %v1231 = vmax.f32 %v975, 0.0
  %v1232 = vmax.f32 %v976, 0.0
  %v1233 = vmax.f32 %v977, 0.0
  %v1234 = vmax.f32 %v978, 0.0
  %v1235 = vmax.f32 %v979, 0.0
  %v1236 = vmax.f32 %v980, 0.0
  %v1237 = vmax.f32 %v981, 0.0
  %v1238 = vmax.f32 %v982, 0.0
  %v1239 = vmax.f32 %v983, 0.0
  %v1240 = vmax.f32 %v984, 0.0
  %v1241 = vmax.f32 %v985, 0.0
  %v1242 = vmax.f32 %v986, 0.0
  %v1243 = vmax.f32 %v987, 0.0
  %v1244 = vmax.f32 %v988, 0.0
  %v1245 = vmax.f32 %v989, 0.0
  %v1246 = vmax.f32 %v990, 0.0
  %v1247 = vmax.f32 %v991, 0.0
  %v1248 = vmax.f32 %v992, 0.0
  %v1249 = vmax.f32 %v993, 0.0
  %v1250 = vmax.f32 %v994, 0.0
  %v1251 = vmax.f32 %v995, 0.0
  %v1252 = vmax.f32 %v996, 0.0
  %v1253 = vmax.f32 %v997, 0.0
  %v1254 = vmax.f32 %v998, 0.0
  %v1255 = vmax.f32 %v999, 0.0
  %v1256 = vmax.f32 %v1000, 0.0
  %v1257 = vmax.f32 %v1001, 0.0
  %v1258 = vmax.f32 %v1002, 0.0
  %v1259 = vmax.f32 %v1003, 0.0
  %v1260 = vmax.f32 %v1004, 0.0
  %v1261 = vmax.f32 %v1005, 0.0
  %v1262 = vmax.f32 %v1006, 0.0
  %v1263 = vmax.f32 %v1007, 0.0
  %v1264 = vmax.f32 %v1008, 0.0
  %v1265 = vmax.f32 %v1009, 0.0
  %v1266 = vmax.f32 %v1010, 0.0
  %v1267 = vmax.f32 %v1011, 0.0
  %v1268 = vmax.f32 %v1012, 0.0
  %v1269 = vmax.f32 %v1013, 0.0
  %v1270 = vmax.f32 %v1014, 0.0
  %v1271 = vmax.f32 %v1015, 0.0
  %v1272 = vmax.f32 %v1016, 0.0
  %v1273 = vmax.f32 %v1017, 0.0
  %v1274 = vmax.f32 %v1018, 0.0
  %v1275 = vmax.f32 %v1019, 0.0
  %v1276 = vmax.f32 %v1020, 0.0
  %v1277 = vmax.f32 %v1021, 0.0
  %v1278 = vmax.f32 %v1022, 0.0
  %v1279 = vmax.f32 %v1023, 0.0
  %v1280 = vmax.f32 %v1024, 0.0
  %v1281 = vmax.f32 %v1025, 0.0
  %v1282 = vmax.f32 %v1026, 0.0
  %v1283 = vmax.f32 %v1027, 0.0
  %v1284 = vmax.f32 %v1028, 0.0
  %v1285 = vmax.f32 %v1029, 0.0
  %v1286 = vmax.f32 %v1030, 0.0
  %v1287 = vmax.f32 %v1031, 0.0
  %v1288 = vmax.f32 %v1032, 0.0
  %v1289 = vmax.f32 %v1033, 0.0
  %v1290 = vmax.f32 %v1034, 0.0
  %v1291 = vmax.f32 %v1035, 0.0
  %v1292 = vmax.f32 %v1036, 0.0
  %v1293 = vmax.f32 %v1037, 0.0
  %v1294 = vmax.f32 %v1038, 0.0
  %v1295 = vmax.f32 %v1039, 0.0
  %v1296 = vmax.f32 %v1040, 0.0
  %v1297 = vmax.f32 %v1041, 0.0
  %v1298 = vmax.f32 %v1042, 0.0
  %v1299 = vmax.f32 %v1043, 0.0
  %v1300 = vmax.f32 %v1044, 0.0
  %v1301 = vmax.f32 %v1045, 0.0
  %v1302 = vmax.f32 %v1046, 0.0
  %v1303 = vmax.f32 %v1047, 0.0
  %v1304 = vmax.f32 %v1048, 0.0
  %v1305 = vmax.f32 %v1049, 0.0
  %v1306 = vmax.f32 %v1050, 0.0
  %v1307 = vmax.f32 %v1051, 0.0
  %v1308 = vmax.f32 %v1052, 0.0
  %v1309 = vmax.f32 %v1053, 0.0
  %v1310 = vmax.f32 %v1054, 0.0
  %v1311 = vmax.f32 %v1055, 0.0
  %v1312 = vpack.c.bf16 %v1057, %v1056
  %v1313 = vpack.c.bf16 %v1059, %v1058
  %v1314 = vpack.c.bf16 %v1061, %v1060
  %v1315 = vpack.c.bf16 %v1063, %v1062
  %v1316 = vpack.c.bf16 %v1065, %v1064
  %v1317 = vpack.c.bf16 %v1067, %v1066
  %v1318 = vpack.c.bf16 %v1069, %v1068
  %v1319 = vpack.c.bf16 %v1071, %v1070
  %v1320 = vpack.c.bf16 %v1073, %v1072
  %v1321 = vpack.c.bf16 %v1075, %v1074
  %v1322 = vpack.c.bf16 %v1077, %v1076
  %v1323 = vpack.c.bf16 %v1079, %v1078
  %v1324 = vpack.c.bf16 %v1081, %v1080
  %v1325 = vpack.c.bf16 %v1083, %v1082
  %v1326 = vpack.c.bf16 %v1085, %v1084
  %v1327 = vpack.c.bf16 %v1087, %v1086
  %v1328 = vpack.c.bf16 %v1089, %v1088
  %v1329 = vpack.c.bf16 %v1091, %v1090
  %v1330 = vpack.c.bf16 %v1093, %v1092
  %v1331 = vpack.c.bf16 %v1095, %v1094
  %v1332 = vpack.c.bf16 %v1097, %v1096
  %v1333 = vpack.c.bf16 %v1099, %v1098
  %v1334 = vpack.c.bf16 %v1101, %v1100
  %v1335 = vpack.c.bf16 %v1103, %v1102
  %v1336 = vpack.c.bf16 %v1105, %v1104
  %v1337 = vpack.c.bf16 %v1107, %v1106
  %v1338 = vpack.c.bf16 %v1109, %v1108
  %v1339 = vpack.c.bf16 %v1111, %v1110
  %v1340 = vpack.c.bf16 %v1113, %v1112
  %v1341 = vpack.c.bf16 %v1115, %v1114
  %v1342 = vpack.c.bf16 %v1117, %v1116
  %v1343 = vpack.c.bf16 %v1119, %v1118
  %v1344 = vpack.c.bf16 %v1121, %v1120
  %v1345 = vpack.c.bf16 %v1123, %v1122
  %v1346 = vpack.c.bf16 %v1125, %v1124
  %v1347 = vpack.c.bf16 %v1127, %v1126
  %v1348 = vpack.c.bf16 %v1129, %v1128
  %v1349 = vpack.c.bf16 %v1131, %v1130
  %v1350 = vpack.c.bf16 %v1133, %v1132
  %v1351 = vpack.c.bf16 %v1135, %v1134
  %v1352 = vpack.c.bf16 %v1137, %v1136
  %v1353 = vpack.c.bf16 %v1139, %v1138
  %v1354 = vpack.c.bf16 %v1141, %v1140
  %v1355 = vpack.c.bf16 %v1143, %v1142
  %v1356 = vpack.c.bf16 %v1145, %v1144
  %v1357 = vpack.c.bf16 %v1147, %v1146
  %v1358 = vpack.c.bf16 %v1149, %v1148
  %v1359 = vpack.c.bf16 %v1151, %v1150
  %v1360 = vpack.c.bf16 %v1153, %v1152
  %v1361 = vpack.c.bf16 %v1155, %v1154
  %v1362 = vpack.c.bf16 %v1157, %v1156
  %v1363 = vpack.c.bf16 %v1159, %v1158
  %v1364 = vpack.c.bf16 %v1161, %v1160
  %v1365 = vpack.c.bf16 %v1163, %v1162
  %v1366 = vpack.c.bf16 %v1165, %v1164
  %v1367 = vpack.c.bf16 %v1167, %v1166
  %v1368 = vpack.c.bf16 %v1169, %v1168
  %v1369 = vpack.c.bf16 %v1171, %v1170
  %v1370 = vpack.c.bf16 %v1173, %v1172
  %v1371 = vpack.c.bf16 %v1175, %v1174
  %v1372 = vpack.c.bf16 %v1177, %v1176
  %v1373 = vpack.c.bf16 %v1179, %v1178
  %v1374 = vpack.c.bf16 %v1181, %v1180
  %v1375 = vpack.c.bf16 %v1183, %v1182
  %v1376 = vpack.c.bf16 %v1185, %v1184
  %v1377 = vpack.c.bf16 %v1187, %v1186
  %v1378 = vpack.c.bf16 %v1189, %v1188
  %v1379 = vpack.c.bf16 %v1191, %v1190
  %v1380 = vpack.c.bf16 %v1193, %v1192
  %v1381 = vpack.c.bf16 %v1195, %v1194
  %v1382 = vpack.c.bf16 %v1197, %v1196
  %v1383 = vpack.c.bf16 %v1199, %v1198
  %v1384 = vpack.c.bf16 %v1201, %v1200
  %v1385 = vpack.c.bf16 %v1203, %v1202
  %v1386 = vpack.c.bf16 %v1205, %v1204
  %v1387 = vpack.c.bf16 %v1207, %v1206
  %v1388 = vpack.c.bf16 %v1209, %v1208
  %v1389 = vpack.c.bf16 %v1211, %v1210
  %v1390 = vpack.c.bf16 %v1213, %v1212
  %v1391 = vpack.c.bf16 %v1215, %v1214
  %v1392 = vpack.c.bf16 %v1217, %v1216
  %v1393 = vpack.c.bf16 %v1219, %v1218
  %v1394 = vpack.c.bf16 %v1221, %v1220
  %v1395 = vpack.c.bf16 %v1223, %v1222
  %v1396 = vpack.c.bf16 %v1225, %v1224
  %v1397 = vpack.c.bf16 %v1227, %v1226
  %v1398 = vpack.c.bf16 %v1229, %v1228
  %v1399 = vpack.c.bf16 %v1231, %v1230
  %v1400 = vpack.c.bf16 %v1233, %v1232
  %v1401 = vpack.c.bf16 %v1235, %v1234
  %v1402 = vpack.c.bf16 %v1237, %v1236
  %v1403 = vpack.c.bf16 %v1239, %v1238
  %v1404 = vpack.c.bf16 %v1241, %v1240
  %v1405 = vpack.c.bf16 %v1243, %v1242
  %v1406 = vpack.c.bf16 %v1245, %v1244
  %v1407 = vpack.c.bf16 %v1247, %v1246
  %v1408 = vpack.c.bf16 %v1249, %v1248
  %v1409 = vpack.c.bf16 %v1251, %v1250
  %v1410 = vpack.c.bf16 %v1253, %v1252
  %v1411 = vpack.c.bf16 %v1255, %v1254
  %v1412 = vpack.c.bf16 %v1257, %v1256
  %v1413 = vpack.c.bf16 %v1259, %v1258
  %v1414 = vpack.c.bf16 %v1261, %v1260
  %v1415 = vpack.c.bf16 %v1263, %v1262
  %v1416 = vpack.c.bf16 %v1265, %v1264
  %v1417 = vpack.c.bf16 %v1267, %v1266
  %v1418 = vpack.c.bf16 %v1269, %v1268
  %v1419 = vpack.c.bf16 %v1271, %v1270
  %v1420 = vpack.c.bf16 %v1273, %v1272
  %v1421 = vpack.c.bf16 %v1275, %v1274
  %v1422 = vpack.c.bf16 %v1277, %v1276
  %v1423 = vpack.c.bf16 %v1279, %v1278
  %v1424 = vpack.c.bf16 %v1281, %v1280
  %v1425 = vpack.c.bf16 %v1283, %v1282
  %v1426 = vpack.c.bf16 %v1285, %v1284
  %v1427 = vpack.c.bf16 %v1287, %v1286
  %v1428 = vpack.c.bf16 %v1289, %v1288
  %v1429 = vpack.c.bf16 %v1291, %v1290
  %v1430 = vpack.c.bf16 %v1293, %v1292
  %v1431 = vpack.c.bf16 %v1295, %v1294
  %v1432 = vpack.c.bf16 %v1297, %v1296
  %v1433 = vpack.c.bf16 %v1299, %v1298
  %v1434 = vpack.c.bf16 %v1301, %v1300
  %v1435 = vpack.c.bf16 %v1303, %v1302
  %v1436 = vpack.c.bf16 %v1305, %v1304
  %v1437 = vpack.c.bf16 %v1307, %v1306
  %v1438 = vpack.c.bf16 %v1309, %v1308
  %v1439 = vpack.c.bf16 %v1311, %v1310
  %v1440 = vld [vmem:[%s3] sm:$0xf]
  %vm1441 = vcmask 64512
  %v1443 = vsel %vm1441, %v1312, 0
  %v1446 = vsel %vm1441, %v1313, 0
  %v1449 = vsel %vm1441, %v1314, 0
  %v1452 = vsel %vm1441, %v1315, 0
  %v1455 = vsel %vm1441, %v1316, 0
  %v1458 = vsel %vm1441, %v1317, 0
  %v1461 = vsel %vm1441, %v1318, 0
  %v1464 = vsel %vm1441, %v1319, 0
  %v1467 = vsel %vm1441, %v1320, 0
  %v1470 = vsel %vm1441, %v1321, 0
  %v1473 = vsel %vm1441, %v1322, 0
  %v1476 = vsel %vm1441, %v1323, 0
  %v1479 = vsel %vm1441, %v1324, 0
  %v1482 = vsel %vm1441, %v1325, 0
  %v1485 = vsel %vm1441, %v1326, 0
  %v1488 = vsel %vm1441, %v1327, 0
  %v1491 = vsel %vm1441, %v1328, 0
  %v1494 = vsel %vm1441, %v1329, 0
  %v1497 = vsel %vm1441, %v1330, 0
  %v1500 = vsel %vm1441, %v1331, 0
  %v1503 = vsel %vm1441, %v1332, 0
  %v1506 = vsel %vm1441, %v1333, 0
  %v1509 = vsel %vm1441, %v1334, 0
  %v1512 = vsel %vm1441, %v1335, 0
  %v1515 = vsel %vm1441, %v1336, 0
  %v1518 = vsel %vm1441, %v1337, 0
  %v1521 = vsel %vm1441, %v1338, 0
  %v1524 = vsel %vm1441, %v1339, 0
  %v1527 = vsel %vm1441, %v1340, 0
  %v1530 = vsel %vm1441, %v1341, 0
  %v1533 = vsel %vm1441, %v1342, 0
  %v1536 = vsel %vm1441, %v1343, 0
  %v1539 = vsel %vm1441, %v1344, 0
  %v1542 = vsel %vm1441, %v1345, 0
  %v1545 = vsel %vm1441, %v1346, 0
  %v1548 = vsel %vm1441, %v1347, 0
  %v1551 = vsel %vm1441, %v1348, 0
  %v1554 = vsel %vm1441, %v1349, 0
  %v1557 = vsel %vm1441, %v1350, 0
  %v1560 = vsel %vm1441, %v1351, 0
  %v1563 = vsel %vm1441, %v1352, 0
  %v1566 = vsel %vm1441, %v1353, 0
  %v1569 = vsel %vm1441, %v1354, 0
  %v1572 = vsel %vm1441, %v1355, 0
  %v1575 = vsel %vm1441, %v1356, 0
  %v1578 = vsel %vm1441, %v1357, 0
  %v1581 = vsel %vm1441, %v1358, 0
  %v1584 = vsel %vm1441, %v1359, 0
  %v1587 = vsel %vm1441, %v1360, 0
  %v1590 = vsel %vm1441, %v1361, 0
  %v1593 = vsel %vm1441, %v1362, 0
  %v1596 = vsel %vm1441, %v1363, 0
  %v1599 = vsel %vm1441, %v1364, 0
  %v1602 = vsel %vm1441, %v1365, 0
  %v1605 = vsel %vm1441, %v1366, 0
  %v1608 = vsel %vm1441, %v1367, 0
  %v1611 = vsel %vm1441, %v1368, 0
  %v1614 = vsel %vm1441, %v1369, 0
  %v1617 = vsel %vm1441, %v1370, 0
  %v1620 = vsel %vm1441, %v1371, 0
  %v1623 = vsel %vm1441, %v1372, 0
  %v1626 = vsel %vm1441, %v1373, 0
  %v1629 = vsel %vm1441, %v1374, 0
  %v1632 = vsel %vm1441, %v1375, 0
  %v1635 = vsel %vm1441, %v1376, 0
  %v1638 = vsel %vm1441, %v1377, 0
  %v1641 = vsel %vm1441, %v1378, 0
  %v1644 = vsel %vm1441, %v1379, 0
  %v1647 = vsel %vm1441, %v1380, 0
  %v1650 = vsel %vm1441, %v1381, 0
  %v1653 = vsel %vm1441, %v1382, 0
  %v1656 = vsel %vm1441, %v1383, 0
  %v1659 = vsel %vm1441, %v1384, 0
  %v1662 = vsel %vm1441, %v1385, 0
  %v1665 = vsel %vm1441, %v1386, 0
  %v1668 = vsel %vm1441, %v1387, 0
  %v1671 = vsel %vm1441, %v1388, 0
  %v1674 = vsel %vm1441, %v1389, 0
  %v1677 = vsel %vm1441, %v1390, 0
  %v1680 = vsel %vm1441, %v1391, 0
  %v1683 = vsel %vm1441, %v1392, 0
  %v1686 = vsel %vm1441, %v1393, 0
  %v1689 = vsel %vm1441, %v1394, 0
  %v1692 = vsel %vm1441, %v1395, 0
  %v1695 = vsel %vm1441, %v1396, 0
  %v1698 = vsel %vm1441, %v1397, 0
  %v1701 = vsel %vm1441, %v1398, 0
  %v1704 = vsel %vm1441, %v1399, 0
  %v1707 = vsel %vm1441, %v1400, 0
  %v1710 = vsel %vm1441, %v1401, 0
  %v1713 = vsel %vm1441, %v1402, 0
  %v1716 = vsel %vm1441, %v1403, 0
  %v1719 = vsel %vm1441, %v1404, 0
  %v1722 = vsel %vm1441, %v1405, 0
  %v1725 = vsel %vm1441, %v1406, 0
  %v1728 = vsel %vm1441, %v1407, 0
  %v1731 = vsel %vm1441, %v1408, 0
  %v1734 = vsel %vm1441, %v1409, 0
  %v1737 = vsel %vm1441, %v1410, 0
  %v1740 = vsel %vm1441, %v1411, 0
  %v1743 = vsel %vm1441, %v1412, 0
  %v1746 = vsel %vm1441, %v1413, 0
  %v1749 = vsel %vm1441, %v1414, 0
  %v1752 = vsel %vm1441, %v1415, 0
  %v1755 = vsel %vm1441, %v1416, 0
  %v1758 = vsel %vm1441, %v1417, 0
  %v1761 = vsel %vm1441, %v1418, 0
  %v1764 = vsel %vm1441, %v1419, 0
  %v1767 = vsel %vm1441, %v1420, 0
  %v1770 = vsel %vm1441, %v1421, 0
  %v1773 = vsel %vm1441, %v1422, 0
  %v1776 = vsel %vm1441, %v1423, 0
  %v1779 = vsel %vm1441, %v1424, 0
  %v1782 = vsel %vm1441, %v1425, 0
  %v1785 = vsel %vm1441, %v1426, 0
  %v1788 = vsel %vm1441, %v1427, 0
  %v1791 = vsel %vm1441, %v1428, 0
  %v1794 = vsel %vm1441, %v1429, 0
  %v1797 = vsel %vm1441, %v1430, 0
  %v1800 = vsel %vm1441, %v1431, 0
  %v1803 = vsel %vm1441, %v1432, 0
  %v1806 = vsel %vm1441, %v1433, 0
  %v1809 = vsel %vm1441, %v1434, 0
  %v1812 = vsel %vm1441, %v1435, 0
  %v1815 = vsel %vm1441, %v1436, 0
  %v1818 = vsel %vm1441, %v1437, 0
  %v1821 = vsel %vm1441, %v1438, 0
  %v1824 = vsel %vm1441, %v1439, 0
  %vm1826 = vcmask 1043456
  %v1828 = vsel %vm1826, %v1440, 0
  %1830 = vmatprep.subr.bf16.mxu0 0
  %1831 = vmatpush1.bf16.msra.mxu0 0
  %1832 = vmatprep.subr.bf16.mxu0 0
  %1833 = vmatpush1.bf16.msra.mxu0 0
  %1834 = vmatprep.subr.bf16.mxu0 0
  %1835 = vmatpush1.bf16.msra.mxu0 0
  %1836 = vmatprep.subr.bf16.mxu0 0
  %1837 = vmatpush1.bf16.msra.mxu0 0
  %1838 = vmatprep.subr.bf16.mxu0 0
  %1839 = vmatpush1.bf16.msra.mxu0 0
  %1840 = vmatprep.subr.bf16.mxu0 0
  %1841 = vmatpush1.bf16.msra.mxu0 0
  %1842 = vmatprep.subr.bf16.mxu0 0
  %1843 = vmatpush1.bf16.msra.mxu0 0
  %1844 = vmatprep.subr.bf16.mxu0 0
  %1845 = vmatpush1.bf16.msra.mxu0 %v1828
  %1846 = vmatprep.subr.bf16.mxu0 0
  %1847 = vmatpush2.bf16.msra.mxu0 0
  %1848 = vmatprep.subr.bf16.mxu0 0
  %1849 = vmatpush2.bf16.msra.mxu0 0
  %1850 = vmatprep.subr.bf16.mxu0 0
  %1851 = vmatpush2.bf16.msra.mxu0 0
  %1852 = vmatprep.subr.bf16.mxu0 0
  %1853 = vmatpush2.bf16.msra.mxu0 0
  %1854 = vmatprep.subr.bf16.mxu0 0
  %1855 = vmatpush2.bf16.msra.mxu0 0
  %1856 = vmatprep.subr.bf16.mxu0 0
  %1857 = vmatpush2.bf16.msra.mxu0 0
  %1858 = vmatprep.subr.bf16.mxu0 0
  %1859 = vmatpush2.bf16.msra.mxu0 0
  %1860 = vmatprep.subr.bf16.mxu0 0
  %1861 = vmatpush2.bf16.msra.mxu0 0
  %1862 = vmatprep.mubr.bf16.mxu0 0
  %1863 = vmatmul.mubr.bf16.gmra.mxu0 %v1443
  %v1864 = vpop.f32.mrf.mxu0
  %v1865 = vadd.f32 0.0, %v1864
  %v1866 = vpop.f32.mrf.mxu0
  %v1867 = vpop.f32.mrf.mxu0
  %v1868 = vadd.f32 0.0, %v1867
  %v1869 = vpop.f32.mrf.mxu0
  %1870 = vmatprep.mubr.bf16.mxu0 0
  %1871 = vmatmul.mubr.bf16.gmra.mxu0 %v1446
  %v1872 = vpop.f32.mrf.mxu0
  %v1873 = vadd.f32 0.0, %v1872
  %v1874 = vpop.f32.mrf.mxu0
  %v1875 = vpop.f32.mrf.mxu0
  %v1876 = vadd.f32 0.0, %v1875
  %v1877 = vpop.f32.mrf.mxu0
  %1878 = vmatprep.mubr.bf16.mxu0 0
  %1879 = vmatmul.mubr.bf16.gmra.mxu0 %v1449
  %v1880 = vpop.f32.mrf.mxu0
  %v1881 = vadd.f32 0.0, %v1880
  %v1882 = vpop.f32.mrf.mxu0
  %v1883 = vpop.f32.mrf.mxu0
  %v1884 = vadd.f32 0.0, %v1883
  %v1885 = vpop.f32.mrf.mxu0
  %1886 = vmatprep.mubr.bf16.mxu0 0
  %1887 = vmatmul.mubr.bf16.gmra.mxu0 %v1452
  %v1888 = vpop.f32.mrf.mxu0
  %v1889 = vadd.f32 0.0, %v1888
  %v1890 = vpop.f32.mrf.mxu0
  %v1891 = vpop.f32.mrf.mxu0
  %v1892 = vadd.f32 0.0, %v1891
  %v1893 = vpop.f32.mrf.mxu0
  %1894 = vmatprep.mubr.bf16.mxu0 0
  %1895 = vmatmul.mubr.bf16.gmra.mxu0 %v1455
  %v1896 = vpop.f32.mrf.mxu0
  %v1897 = vadd.f32 0.0, %v1896
  %v1898 = vpop.f32.mrf.mxu0
  %v1899 = vpop.f32.mrf.mxu0
  %v1900 = vadd.f32 0.0, %v1899
  %v1901 = vpop.f32.mrf.mxu0
  %1902 = vmatprep.mubr.bf16.mxu0 0
  %1903 = vmatmul.mubr.bf16.gmra.mxu0 %v1458
  %v1904 = vpop.f32.mrf.mxu0
  %v1905 = vadd.f32 0.0, %v1904
  %v1906 = vpop.f32.mrf.mxu0
  %v1907 = vpop.f32.mrf.mxu0
  %v1908 = vadd.f32 0.0, %v1907
  %v1909 = vpop.f32.mrf.mxu0
  %1910 = vmatprep.mubr.bf16.mxu0 0
  %1911 = vmatmul.mubr.bf16.gmra.mxu0 %v1461
  %v1912 = vpop.f32.mrf.mxu0
  %v1913 = vadd.f32 0.0, %v1912
  %v1914 = vpop.f32.mrf.mxu0
  %v1915 = vpop.f32.mrf.mxu0
  %v1916 = vadd.f32 0.0, %v1915
  %v1917 = vpop.f32.mrf.mxu0
  %1918 = vmatprep.mubr.bf16.mxu0 0
  %1919 = vmatmul.mubr.bf16.gmra.mxu0 %v1464
  %v1920 = vpop.f32.mrf.mxu0
  %v1921 = vadd.f32 0.0, %v1920
  %v1922 = vpop.f32.mrf.mxu0
  %v1923 = vpop.f32.mrf.mxu0
  %v1924 = vadd.f32 0.0, %v1923
  %v1925 = vpop.f32.mrf.mxu0
  %1926 = vmatprep.mubr.bf16.mxu0 0
  %1927 = vmatmul.mubr.bf16.gmra.mxu0 %v1467
  %v1928 = vpop.f32.mrf.mxu0
  %v1929 = vadd.f32 0.0, %v1928
  %v1930 = vpop.f32.mrf.mxu0
  %v1931 = vpop.f32.mrf.mxu0
  %v1932 = vadd.f32 0.0, %v1931
  %v1933 = vpop.f32.mrf.mxu0
  %1934 = vmatprep.mubr.bf16.mxu0 0
  %1935 = vmatmul.mubr.bf16.gmra.mxu0 %v1470
  %v1936 = vpop.f32.mrf.mxu0
  %v1937 = vadd.f32 0.0, %v1936
  %v1938 = vpop.f32.mrf.mxu0
  %v1939 = vpop.f32.mrf.mxu0
  %v1940 = vadd.f32 0.0, %v1939
  %v1941 = vpop.f32.mrf.mxu0
  %1942 = vmatprep.mubr.bf16.mxu0 0
  %1943 = vmatmul.mubr.bf16.gmra.mxu0 %v1473
  %v1944 = vpop.f32.mrf.mxu0
  %v1945 = vadd.f32 0.0, %v1944
  %v1946 = vpop.f32.mrf.mxu0
  %v1947 = vpop.f32.mrf.mxu0
  %v1948 = vadd.f32 0.0, %v1947
  %v1949 = vpop.f32.mrf.mxu0
  %1950 = vmatprep.mubr.bf16.mxu0 0
  %1951 = vmatmul.mubr.bf16.gmra.mxu0 %v1476
  %v1952 = vpop.f32.mrf.mxu0
  %v1953 = vadd.f32 0.0, %v1952
  %v1954 = vpop.f32.mrf.mxu0
  %v1955 = vpop.f32.mrf.mxu0
  %v1956 = vadd.f32 0.0, %v1955
  %v1957 = vpop.f32.mrf.mxu0
  %1958 = vmatprep.mubr.bf16.mxu0 0
  %1959 = vmatmul.mubr.bf16.gmra.mxu0 %v1479
  %v1960 = vpop.f32.mrf.mxu0
  %v1961 = vadd.f32 0.0, %v1960
  %v1962 = vpop.f32.mrf.mxu0
  %v1963 = vpop.f32.mrf.mxu0
  %v1964 = vadd.f32 0.0, %v1963
  %v1965 = vpop.f32.mrf.mxu0
  %1966 = vmatprep.mubr.bf16.mxu0 0
  %1967 = vmatmul.mubr.bf16.gmra.mxu0 %v1482
  %v1968 = vpop.f32.mrf.mxu0
  %v1969 = vadd.f32 0.0, %v1968
  %v1970 = vpop.f32.mrf.mxu0
  %v1971 = vpop.f32.mrf.mxu0
  %v1972 = vadd.f32 0.0, %v1971
  %v1973 = vpop.f32.mrf.mxu0
  %1974 = vmatprep.mubr.bf16.mxu0 0
  %1975 = vmatmul.mubr.bf16.gmra.mxu0 %v1485
  %v1976 = vpop.f32.mrf.mxu0
  %v1977 = vadd.f32 0.0, %v1976
  %v1978 = vpop.f32.mrf.mxu0
  %v1979 = vpop.f32.mrf.mxu0
  %v1980 = vadd.f32 0.0, %v1979
  %v1981 = vpop.f32.mrf.mxu0
  %1982 = vmatprep.mubr.bf16.mxu0 0
  %1983 = vmatmul.mubr.bf16.gmra.mxu0 %v1488
  %v1984 = vpop.f32.mrf.mxu0
  %v1985 = vadd.f32 0.0, %v1984
  %v1986 = vpop.f32.mrf.mxu0
  %v1987 = vpop.f32.mrf.mxu0
  %v1988 = vadd.f32 0.0, %v1987
  %v1989 = vpop.f32.mrf.mxu0
  %1990 = vmatprep.mubr.bf16.mxu0 0
  %1991 = vmatmul.mubr.bf16.gmra.mxu0 %v1491
  %v1992 = vpop.f32.mrf.mxu0
  %v1993 = vadd.f32 0.0, %v1992
  %v1994 = vpop.f32.mrf.mxu0
  %v1995 = vpop.f32.mrf.mxu0
  %v1996 = vadd.f32 0.0, %v1995
  %v1997 = vpop.f32.mrf.mxu0
  %1998 = vmatprep.mubr.bf16.mxu0 0
  %1999 = vmatmul.mubr.bf16.gmra.mxu0 %v1494
  %v2000 = vpop.f32.mrf.mxu0
  %v2001 = vadd.f32 0.0, %v2000
  %v2002 = vpop.f32.mrf.mxu0
  %v2003 = vpop.f32.mrf.mxu0
  %v2004 = vadd.f32 0.0, %v2003
  %v2005 = vpop.f32.mrf.mxu0
  %2006 = vmatprep.mubr.bf16.mxu0 0
  %2007 = vmatmul.mubr.bf16.gmra.mxu0 %v1497
  %v2008 = vpop.f32.mrf.mxu0
  %v2009 = vadd.f32 0.0, %v2008
  %v2010 = vpop.f32.mrf.mxu0
  %v2011 = vpop.f32.mrf.mxu0
  %v2012 = vadd.f32 0.0, %v2011
  %v2013 = vpop.f32.mrf.mxu0
  %2014 = vmatprep.mubr.bf16.mxu0 0
  %2015 = vmatmul.mubr.bf16.gmra.mxu0 %v1500
  %v2016 = vpop.f32.mrf.mxu0
  %v2017 = vadd.f32 0.0, %v2016
  %v2018 = vpop.f32.mrf.mxu0
  %v2019 = vpop.f32.mrf.mxu0
  %v2020 = vadd.f32 0.0, %v2019
  %v2021 = vpop.f32.mrf.mxu0
  %2022 = vmatprep.mubr.bf16.mxu0 0
  %2023 = vmatmul.mubr.bf16.gmra.mxu0 %v1503
  %v2024 = vpop.f32.mrf.mxu0
  %v2025 = vadd.f32 0.0, %v2024
  %v2026 = vpop.f32.mrf.mxu0
  %v2027 = vpop.f32.mrf.mxu0
  %v2028 = vadd.f32 0.0, %v2027
  %v2029 = vpop.f32.mrf.mxu0
  %2030 = vmatprep.mubr.bf16.mxu0 0
  %2031 = vmatmul.mubr.bf16.gmra.mxu0 %v1506
  %v2032 = vpop.f32.mrf.mxu0
  %v2033 = vadd.f32 0.0, %v2032
  %v2034 = vpop.f32.mrf.mxu0
  %v2035 = vpop.f32.mrf.mxu0
  %v2036 = vadd.f32 0.0, %v2035
  %v2037 = vpop.f32.mrf.mxu0
  %2038 = vmatprep.mubr.bf16.mxu0 0
  %2039 = vmatmul.mubr.bf16.gmra.mxu0 %v1509
  %v2040 = vpop.f32.mrf.mxu0
  %v2041 = vadd.f32 0.0, %v2040
  %v2042 = vpop.f32.mrf.mxu0
  %v2043 = vpop.f32.mrf.mxu0
  %v2044 = vadd.f32 0.0, %v2043
  %v2045 = vpop.f32.mrf.mxu0
  %2046 = vmatprep.mubr.bf16.mxu0 0
  %2047 = vmatmul.mubr.bf16.gmra.mxu0 %v1512
  %v2048 = vpop.f32.mrf.mxu0
  %v2049 = vadd.f32 0.0, %v2048
  %v2050 = vpop.f32.mrf.mxu0
  %v2051 = vpop.f32.mrf.mxu0
  %v2052 = vadd.f32 0.0, %v2051
  %v2053 = vpop.f32.mrf.mxu0
  %2054 = vmatprep.mubr.bf16.mxu0 0
  %2055 = vmatmul.mubr.bf16.gmra.mxu0 %v1515
  %v2056 = vpop.f32.mrf.mxu0
  %v2057 = vadd.f32 0.0, %v2056
  %v2058 = vpop.f32.mrf.mxu0
  %v2059 = vpop.f32.mrf.mxu0
  %v2060 = vadd.f32 0.0, %v2059
  %v2061 = vpop.f32.mrf.mxu0
  %2062 = vmatprep.mubr.bf16.mxu0 0
  %2063 = vmatmul.mubr.bf16.gmra.mxu0 %v1518
  %v2064 = vpop.f32.mrf.mxu0
  %v2065 = vadd.f32 0.0, %v2064
  %v2066 = vpop.f32.mrf.mxu0
  %v2067 = vpop.f32.mrf.mxu0
  %v2068 = vadd.f32 0.0, %v2067
  %v2069 = vpop.f32.mrf.mxu0
  %2070 = vmatprep.mubr.bf16.mxu0 0
  %2071 = vmatmul.mubr.bf16.gmra.mxu0 %v1521
  %v2072 = vpop.f32.mrf.mxu0
  %v2073 = vadd.f32 0.0, %v2072
  %v2074 = vpop.f32.mrf.mxu0
  %v2075 = vpop.f32.mrf.mxu0
  %v2076 = vadd.f32 0.0, %v2075
  %v2077 = vpop.f32.mrf.mxu0
  %2078 = vmatprep.mubr.bf16.mxu0 0
  %2079 = vmatmul.mubr.bf16.gmra.mxu0 %v1524
  %v2080 = vpop.f32.mrf.mxu0
  %v2081 = vadd.f32 0.0, %v2080
  %v2082 = vpop.f32.mrf.mxu0
  %v2083 = vpop.f32.mrf.mxu0
  %v2084 = vadd.f32 0.0, %v2083
  %v2085 = vpop.f32.mrf.mxu0
  %2086 = vmatprep.mubr.bf16.mxu0 0
  %2087 = vmatmul.mubr.bf16.gmra.mxu0 %v1527
  %v2088 = vpop.f32.mrf.mxu0
  %v2089 = vadd.f32 0.0, %v2088
  %v2090 = vpop.f32.mrf.mxu0
  %v2091 = vpop.f32.mrf.mxu0
  %v2092 = vadd.f32 0.0, %v2091
  %v2093 = vpop.f32.mrf.mxu0
  %2094 = vmatprep.mubr.bf16.mxu0 0
  %2095 = vmatmul.mubr.bf16.gmra.mxu0 %v1530
  %v2096 = vpop.f32.mrf.mxu0
  %v2097 = vadd.f32 0.0, %v2096
  %v2098 = vpop.f32.mrf.mxu0
  %v2099 = vpop.f32.mrf.mxu0
  %v2100 = vadd.f32 0.0, %v2099
  %v2101 = vpop.f32.mrf.mxu0
  %2102 = vmatprep.mubr.bf16.mxu0 0
  %2103 = vmatmul.mubr.bf16.gmra.mxu0 %v1533
  %v2104 = vpop.f32.mrf.mxu0
  %v2105 = vadd.f32 0.0, %v2104
  %v2106 = vpop.f32.mrf.mxu0
  %v2107 = vpop.f32.mrf.mxu0
  %v2108 = vadd.f32 0.0, %v2107
  %v2109 = vpop.f32.mrf.mxu0
  %2110 = vmatprep.mubr.bf16.mxu0 0
  %2111 = vmatmul.mubr.bf16.gmra.mxu0 %v1536
  %v2112 = vpop.f32.mrf.mxu0
  %v2113 = vadd.f32 0.0, %v2112
  %v2114 = vpop.f32.mrf.mxu0
  %v2115 = vpop.f32.mrf.mxu0
  %v2116 = vadd.f32 0.0, %v2115
  %v2117 = vpop.f32.mrf.mxu0
  %2118 = vmatprep.mubr.bf16.mxu0 0
  %2119 = vmatmul.mubr.bf16.gmra.mxu0 %v1539
  %v2120 = vpop.f32.mrf.mxu0
  %v2121 = vadd.f32 0.0, %v2120
  %v2122 = vpop.f32.mrf.mxu0
  %v2123 = vpop.f32.mrf.mxu0
  %v2124 = vadd.f32 0.0, %v2123
  %v2125 = vpop.f32.mrf.mxu0
  %2126 = vmatprep.mubr.bf16.mxu0 0
  %2127 = vmatmul.mubr.bf16.gmra.mxu0 %v1542
  %v2128 = vpop.f32.mrf.mxu0
  %v2129 = vadd.f32 0.0, %v2128
  %v2130 = vpop.f32.mrf.mxu0
  %v2131 = vpop.f32.mrf.mxu0
  %v2132 = vadd.f32 0.0, %v2131
  %v2133 = vpop.f32.mrf.mxu0
  %2134 = vmatprep.mubr.bf16.mxu0 0
  %2135 = vmatmul.mubr.bf16.gmra.mxu0 %v1545
  %v2136 = vpop.f32.mrf.mxu0
  %v2137 = vadd.f32 0.0, %v2136
  %v2138 = vpop.f32.mrf.mxu0
  %v2139 = vpop.f32.mrf.mxu0
  %v2140 = vadd.f32 0.0, %v2139
  %v2141 = vpop.f32.mrf.mxu0
  %2142 = vmatprep.mubr.bf16.mxu0 0
  %2143 = vmatmul.mubr.bf16.gmra.mxu0 %v1548
  %v2144 = vpop.f32.mrf.mxu0
  %v2145 = vadd.f32 0.0, %v2144
  %v2146 = vpop.f32.mrf.mxu0
  %v2147 = vpop.f32.mrf.mxu0
  %v2148 = vadd.f32 0.0, %v2147
  %v2149 = vpop.f32.mrf.mxu0
  %2150 = vmatprep.mubr.bf16.mxu0 0
  %2151 = vmatmul.mubr.bf16.gmra.mxu0 %v1551
  %v2152 = vpop.f32.mrf.mxu0
  %v2153 = vadd.f32 0.0, %v2152
  %v2154 = vpop.f32.mrf.mxu0
  %v2155 = vpop.f32.mrf.mxu0
  %v2156 = vadd.f32 0.0, %v2155
  %v2157 = vpop.f32.mrf.mxu0
  %2158 = vmatprep.mubr.bf16.mxu0 0
  %2159 = vmatmul.mubr.bf16.gmra.mxu0 %v1554
  %v2160 = vpop.f32.mrf.mxu0
  %v2161 = vadd.f32 0.0, %v2160
  %v2162 = vpop.f32.mrf.mxu0
  %v2163 = vpop.f32.mrf.mxu0
  %v2164 = vadd.f32 0.0, %v2163
  %v2165 = vpop.f32.mrf.mxu0
  %2166 = vmatprep.mubr.bf16.mxu0 0
  %2167 = vmatmul.mubr.bf16.gmra.mxu0 %v1557
  %v2168 = vpop.f32.mrf.mxu0
  %v2169 = vadd.f32 0.0, %v2168
  %v2170 = vpop.f32.mrf.mxu0
  %v2171 = vpop.f32.mrf.mxu0
  %v2172 = vadd.f32 0.0, %v2171
  %v2173 = vpop.f32.mrf.mxu0
  %2174 = vmatprep.mubr.bf16.mxu0 0
  %2175 = vmatmul.mubr.bf16.gmra.mxu0 %v1560
  %v2176 = vpop.f32.mrf.mxu0
  %v2177 = vadd.f32 0.0, %v2176
  %v2178 = vpop.f32.mrf.mxu0
  %v2179 = vpop.f32.mrf.mxu0
  %v2180 = vadd.f32 0.0, %v2179
  %v2181 = vpop.f32.mrf.mxu0
  %2182 = vmatprep.mubr.bf16.mxu0 0
  %2183 = vmatmul.mubr.bf16.gmra.mxu0 %v1563
  %v2184 = vpop.f32.mrf.mxu0
  %v2185 = vadd.f32 0.0, %v2184
  %v2186 = vpop.f32.mrf.mxu0
  %v2187 = vpop.f32.mrf.mxu0
  %v2188 = vadd.f32 0.0, %v2187
  %v2189 = vpop.f32.mrf.mxu0
  %2190 = vmatprep.mubr.bf16.mxu0 0
  %2191 = vmatmul.mubr.bf16.gmra.mxu0 %v1566
  %v2192 = vpop.f32.mrf.mxu0
  %v2193 = vadd.f32 0.0, %v2192
  %v2194 = vpop.f32.mrf.mxu0
  %v2195 = vpop.f32.mrf.mxu0
  %v2196 = vadd.f32 0.0, %v2195
  %v2197 = vpop.f32.mrf.mxu0
  %2198 = vmatprep.mubr.bf16.mxu0 0
  %2199 = vmatmul.mubr.bf16.gmra.mxu0 %v1569
  %v2200 = vpop.f32.mrf.mxu0
  %v2201 = vadd.f32 0.0, %v2200
  %v2202 = vpop.f32.mrf.mxu0
  %v2203 = vpop.f32.mrf.mxu0
  %v2204 = vadd.f32 0.0, %v2203
  %v2205 = vpop.f32.mrf.mxu0
  %2206 = vmatprep.mubr.bf16.mxu0 0
  %2207 = vmatmul.mubr.bf16.gmra.mxu0 %v1572
  %v2208 = vpop.f32.mrf.mxu0
  %v2209 = vadd.f32 0.0, %v2208
  %v2210 = vpop.f32.mrf.mxu0
  %v2211 = vpop.f32.mrf.mxu0
  %v2212 = vadd.f32 0.0, %v2211
  %v2213 = vpop.f32.mrf.mxu0
  %2214 = vmatprep.mubr.bf16.mxu0 0
  %2215 = vmatmul.mubr.bf16.gmra.mxu0 %v1575
  %v2216 = vpop.f32.mrf.mxu0
  %v2217 = vadd.f32 0.0, %v2216
  %v2218 = vpop.f32.mrf.mxu0
  %v2219 = vpop.f32.mrf.mxu0
  %v2220 = vadd.f32 0.0, %v2219
  %v2221 = vpop.f32.mrf.mxu0
  %2222 = vmatprep.mubr.bf16.mxu0 0
  %2223 = vmatmul.mubr.bf16.gmra.mxu0 %v1578
  %v2224 = vpop.f32.mrf.mxu0
  %v2225 = vadd.f32 0.0, %v2224
  %v2226 = vpop.f32.mrf.mxu0
  %v2227 = vpop.f32.mrf.mxu0
  %v2228 = vadd.f32 0.0, %v2227
  %v2229 = vpop.f32.mrf.mxu0
  %2230 = vmatprep.mubr.bf16.mxu0 0
  %2231 = vmatmul.mubr.bf16.gmra.mxu0 %v1581
  %v2232 = vpop.f32.mrf.mxu0
  %v2233 = vadd.f32 0.0, %v2232
  %v2234 = vpop.f32.mrf.mxu0
  %v2235 = vpop.f32.mrf.mxu0
  %v2236 = vadd.f32 0.0, %v2235
  %v2237 = vpop.f32.mrf.mxu0
  %2238 = vmatprep.mubr.bf16.mxu0 0
  %2239 = vmatmul.mubr.bf16.gmra.mxu0 %v1584
  %v2240 = vpop.f32.mrf.mxu0
  %v2241 = vadd.f32 0.0, %v2240
  %v2242 = vpop.f32.mrf.mxu0
  %v2243 = vpop.f32.mrf.mxu0
  %v2244 = vadd.f32 0.0, %v2243
  %v2245 = vpop.f32.mrf.mxu0
  %2246 = vmatprep.mubr.bf16.mxu0 0
  %2247 = vmatmul.mubr.bf16.gmra.mxu0 %v1587
  %v2248 = vpop.f32.mrf.mxu0
  %v2249 = vadd.f32 0.0, %v2248
  %v2250 = vpop.f32.mrf.mxu0
  %v2251 = vpop.f32.mrf.mxu0
  %v2252 = vadd.f32 0.0, %v2251
  %v2253 = vpop.f32.mrf.mxu0
  %2254 = vmatprep.mubr.bf16.mxu0 0
  %2255 = vmatmul.mubr.bf16.gmra.mxu0 %v1590
  %v2256 = vpop.f32.mrf.mxu0
  %v2257 = vadd.f32 0.0, %v2256
  %v2258 = vpop.f32.mrf.mxu0
  %v2259 = vpop.f32.mrf.mxu0
  %v2260 = vadd.f32 0.0, %v2259
  %v2261 = vpop.f32.mrf.mxu0
  %2262 = vmatprep.mubr.bf16.mxu0 0
  %2263 = vmatmul.mubr.bf16.gmra.mxu0 %v1593
  %v2264 = vpop.f32.mrf.mxu0
  %v2265 = vadd.f32 0.0, %v2264
  %v2266 = vpop.f32.mrf.mxu0
  %v2267 = vpop.f32.mrf.mxu0
  %v2268 = vadd.f32 0.0, %v2267
  %v2269 = vpop.f32.mrf.mxu0
  %2270 = vmatprep.mubr.bf16.mxu0 0
  %2271 = vmatmul.mubr.bf16.gmra.mxu0 %v1596
  %v2272 = vpop.f32.mrf.mxu0
  %v2273 = vadd.f32 0.0, %v2272
  %v2274 = vpop.f32.mrf.mxu0
  %v2275 = vpop.f32.mrf.mxu0
  %v2276 = vadd.f32 0.0, %v2275
  %v2277 = vpop.f32.mrf.mxu0
  %2278 = vmatprep.mubr.bf16.mxu0 0
  %2279 = vmatmul.mubr.bf16.gmra.mxu0 %v1599
  %v2280 = vpop.f32.mrf.mxu0
  %v2281 = vadd.f32 0.0, %v2280
  %v2282 = vpop.f32.mrf.mxu0
  %v2283 = vpop.f32.mrf.mxu0
  %v2284 = vadd.f32 0.0, %v2283
  %v2285 = vpop.f32.mrf.mxu0
  %2286 = vmatprep.mubr.bf16.mxu0 0
  %2287 = vmatmul.mubr.bf16.gmra.mxu0 %v1602
  %v2288 = vpop.f32.mrf.mxu0
  %v2289 = vadd.f32 0.0, %v2288
  %v2290 = vpop.f32.mrf.mxu0
  %v2291 = vpop.f32.mrf.mxu0
  %v2292 = vadd.f32 0.0, %v2291
  %v2293 = vpop.f32.mrf.mxu0
  %2294 = vmatprep.mubr.bf16.mxu0 0
  %2295 = vmatmul.mubr.bf16.gmra.mxu0 %v1605
  %v2296 = vpop.f32.mrf.mxu0
  %v2297 = vadd.f32 0.0, %v2296
  %v2298 = vpop.f32.mrf.mxu0
  %v2299 = vpop.f32.mrf.mxu0
  %v2300 = vadd.f32 0.0, %v2299
  %v2301 = vpop.f32.mrf.mxu0
  %2302 = vmatprep.mubr.bf16.mxu0 0
  %2303 = vmatmul.mubr.bf16.gmra.mxu0 %v1608
  %v2304 = vpop.f32.mrf.mxu0
  %v2305 = vadd.f32 0.0, %v2304
  %v2306 = vpop.f32.mrf.mxu0
  %v2307 = vpop.f32.mrf.mxu0
  %v2308 = vadd.f32 0.0, %v2307
  %v2309 = vpop.f32.mrf.mxu0
  %2310 = vmatprep.mubr.bf16.mxu0 0
  %2311 = vmatmul.mubr.bf16.gmra.mxu0 %v1611
  %v2312 = vpop.f32.mrf.mxu0
  %v2313 = vadd.f32 0.0, %v2312
  %v2314 = vpop.f32.mrf.mxu0
  %v2315 = vpop.f32.mrf.mxu0
  %v2316 = vadd.f32 0.0, %v2315
  %v2317 = vpop.f32.mrf.mxu0
  %2318 = vmatprep.mubr.bf16.mxu0 0
  %2319 = vmatmul.mubr.bf16.gmra.mxu0 %v1614
  %v2320 = vpop.f32.mrf.mxu0
  %v2321 = vadd.f32 0.0, %v2320
  %v2322 = vpop.f32.mrf.mxu0
  %v2323 = vpop.f32.mrf.mxu0
  %v2324 = vadd.f32 0.0, %v2323
  %v2325 = vpop.f32.mrf.mxu0
  %2326 = vmatprep.mubr.bf16.mxu0 0
  %2327 = vmatmul.mubr.bf16.gmra.mxu0 %v1617
  %v2328 = vpop.f32.mrf.mxu0
  %v2329 = vadd.f32 0.0, %v2328
  %v2330 = vpop.f32.mrf.mxu0
  %v2331 = vpop.f32.mrf.mxu0
  %v2332 = vadd.f32 0.0, %v2331
  %v2333 = vpop.f32.mrf.mxu0
  %2334 = vmatprep.mubr.bf16.mxu0 0
  %2335 = vmatmul.mubr.bf16.gmra.mxu0 %v1620
  %v2336 = vpop.f32.mrf.mxu0
  %v2337 = vadd.f32 0.0, %v2336
  %v2338 = vpop.f32.mrf.mxu0
  %v2339 = vpop.f32.mrf.mxu0
  %v2340 = vadd.f32 0.0, %v2339
  %v2341 = vpop.f32.mrf.mxu0
  %2342 = vmatprep.mubr.bf16.mxu0 0
  %2343 = vmatmul.mubr.bf16.gmra.mxu0 %v1623
  %v2344 = vpop.f32.mrf.mxu0
  %v2345 = vadd.f32 0.0, %v2344
  %v2346 = vpop.f32.mrf.mxu0
  %v2347 = vpop.f32.mrf.mxu0
  %v2348 = vadd.f32 0.0, %v2347
  %v2349 = vpop.f32.mrf.mxu0
  %2350 = vmatprep.mubr.bf16.mxu0 0
  %2351 = vmatmul.mubr.bf16.gmra.mxu0 %v1626
  %v2352 = vpop.f32.mrf.mxu0
  %v2353 = vadd.f32 0.0, %v2352
  %v2354 = vpop.f32.mrf.mxu0
  %v2355 = vpop.f32.mrf.mxu0
  %v2356 = vadd.f32 0.0, %v2355
  %v2357 = vpop.f32.mrf.mxu0
  %2358 = vmatprep.mubr.bf16.mxu0 0
  %2359 = vmatmul.mubr.bf16.gmra.mxu0 %v1629
  %v2360 = vpop.f32.mrf.mxu0
  %v2361 = vadd.f32 0.0, %v2360
  %v2362 = vpop.f32.mrf.mxu0
  %v2363 = vpop.f32.mrf.mxu0
  %v2364 = vadd.f32 0.0, %v2363
  %v2365 = vpop.f32.mrf.mxu0
  %2366 = vmatprep.mubr.bf16.mxu0 0
  %2367 = vmatmul.mubr.bf16.gmra.mxu0 %v1632
  %v2368 = vpop.f32.mrf.mxu0
  %v2369 = vadd.f32 0.0, %v2368
  %v2370 = vpop.f32.mrf.mxu0
  %v2371 = vpop.f32.mrf.mxu0
  %v2372 = vadd.f32 0.0, %v2371
  %v2373 = vpop.f32.mrf.mxu0
  %2374 = vmatprep.mubr.bf16.mxu0 0
  %2375 = vmatmul.mubr.bf16.gmra.mxu0 %v1635
  %v2376 = vpop.f32.mrf.mxu0
  %v2377 = vadd.f32 0.0, %v2376
  %v2378 = vpop.f32.mrf.mxu0
  %v2379 = vpop.f32.mrf.mxu0
  %v2380 = vadd.f32 0.0, %v2379
  %v2381 = vpop.f32.mrf.mxu0
  %2382 = vmatprep.mubr.bf16.mxu0 0
  %2383 = vmatmul.mubr.bf16.gmra.mxu0 %v1638
  %v2384 = vpop.f32.mrf.mxu0
  %v2385 = vadd.f32 0.0, %v2384
  %v2386 = vpop.f32.mrf.mxu0
  %v2387 = vpop.f32.mrf.mxu0
  %v2388 = vadd.f32 0.0, %v2387
  %v2389 = vpop.f32.mrf.mxu0
  %2390 = vmatprep.mubr.bf16.mxu0 0
  %2391 = vmatmul.mubr.bf16.gmra.mxu0 %v1641
  %v2392 = vpop.f32.mrf.mxu0
  %v2393 = vadd.f32 0.0, %v2392
  %v2394 = vpop.f32.mrf.mxu0
  %v2395 = vpop.f32.mrf.mxu0
  %v2396 = vadd.f32 0.0, %v2395
  %v2397 = vpop.f32.mrf.mxu0
  %2398 = vmatprep.mubr.bf16.mxu0 0
  %2399 = vmatmul.mubr.bf16.gmra.mxu0 %v1644
  %v2400 = vpop.f32.mrf.mxu0
  %v2401 = vadd.f32 0.0, %v2400
  %v2402 = vpop.f32.mrf.mxu0
  %v2403 = vpop.f32.mrf.mxu0
  %v2404 = vadd.f32 0.0, %v2403
  %v2405 = vpop.f32.mrf.mxu0
  %2406 = vmatprep.mubr.bf16.mxu0 0
  %2407 = vmatmul.mubr.bf16.gmra.mxu0 %v1647
  %v2408 = vpop.f32.mrf.mxu0
  %v2409 = vadd.f32 0.0, %v2408
  %v2410 = vpop.f32.mrf.mxu0
  %v2411 = vpop.f32.mrf.mxu0
  %v2412 = vadd.f32 0.0, %v2411
  %v2413 = vpop.f32.mrf.mxu0
  %2414 = vmatprep.mubr.bf16.mxu0 0
  %2415 = vmatmul.mubr.bf16.gmra.mxu0 %v1650
  %v2416 = vpop.f32.mrf.mxu0
  %v2417 = vadd.f32 0.0, %v2416
  %v2418 = vpop.f32.mrf.mxu0
  %v2419 = vpop.f32.mrf.mxu0
  %v2420 = vadd.f32 0.0, %v2419
  %v2421 = vpop.f32.mrf.mxu0
  %2422 = vmatprep.mubr.bf16.mxu0 0
  %2423 = vmatmul.mubr.bf16.gmra.mxu0 %v1653
  %v2424 = vpop.f32.mrf.mxu0
  %v2425 = vadd.f32 0.0, %v2424
  %v2426 = vpop.f32.mrf.mxu0
  %v2427 = vpop.f32.mrf.mxu0
  %v2428 = vadd.f32 0.0, %v2427
  %v2429 = vpop.f32.mrf.mxu0
  %2430 = vmatprep.mubr.bf16.mxu0 0
  %2431 = vmatmul.mubr.bf16.gmra.mxu0 %v1656
  %v2432 = vpop.f32.mrf.mxu0
  %v2433 = vadd.f32 0.0, %v2432
  %v2434 = vpop.f32.mrf.mxu0
  %v2435 = vpop.f32.mrf.mxu0
  %v2436 = vadd.f32 0.0, %v2435
  %v2437 = vpop.f32.mrf.mxu0
  %2438 = vmatprep.mubr.bf16.mxu0 0
  %2439 = vmatmul.mubr.bf16.gmra.mxu0 %v1659
  %v2440 = vpop.f32.mrf.mxu0
  %v2441 = vadd.f32 0.0, %v2440
  %v2442 = vpop.f32.mrf.mxu0
  %v2443 = vpop.f32.mrf.mxu0
  %v2444 = vadd.f32 0.0, %v2443
  %v2445 = vpop.f32.mrf.mxu0
  %2446 = vmatprep.mubr.bf16.mxu0 0
  %2447 = vmatmul.mubr.bf16.gmra.mxu0 %v1662
  %v2448 = vpop.f32.mrf.mxu0
  %v2449 = vadd.f32 0.0, %v2448
  %v2450 = vpop.f32.mrf.mxu0
  %v2451 = vpop.f32.mrf.mxu0
  %v2452 = vadd.f32 0.0, %v2451
  %v2453 = vpop.f32.mrf.mxu0
  %2454 = vmatprep.mubr.bf16.mxu0 0
  %2455 = vmatmul.mubr.bf16.gmra.mxu0 %v1665
  %v2456 = vpop.f32.mrf.mxu0
  %v2457 = vadd.f32 0.0, %v2456
  %v2458 = vpop.f32.mrf.mxu0
  %v2459 = vpop.f32.mrf.mxu0
  %v2460 = vadd.f32 0.0, %v2459
  %v2461 = vpop.f32.mrf.mxu0
  %2462 = vmatprep.mubr.bf16.mxu0 0
  %2463 = vmatmul.mubr.bf16.gmra.mxu0 %v1668
  %v2464 = vpop.f32.mrf.mxu0
  %v2465 = vadd.f32 0.0, %v2464
  %v2466 = vpop.f32.mrf.mxu0
  %v2467 = vpop.f32.mrf.mxu0
  %v2468 = vadd.f32 0.0, %v2467
  %v2469 = vpop.f32.mrf.mxu0
  %2470 = vmatprep.mubr.bf16.mxu0 0
  %2471 = vmatmul.mubr.bf16.gmra.mxu0 %v1671
  %v2472 = vpop.f32.mrf.mxu0
  %v2473 = vadd.f32 0.0, %v2472
  %v2474 = vpop.f32.mrf.mxu0
  %v2475 = vpop.f32.mrf.mxu0
  %v2476 = vadd.f32 0.0, %v2475
  %v2477 = vpop.f32.mrf.mxu0
  %2478 = vmatprep.mubr.bf16.mxu0 0
  %2479 = vmatmul.mubr.bf16.gmra.mxu0 %v1674
  %v2480 = vpop.f32.mrf.mxu0
  %v2481 = vadd.f32 0.0, %v2480
  %v2482 = vpop.f32.mrf.mxu0
  %v2483 = vpop.f32.mrf.mxu0
  %v2484 = vadd.f32 0.0, %v2483
  %v2485 = vpop.f32.mrf.mxu0
  %2486 = vmatprep.mubr.bf16.mxu0 0
  %2487 = vmatmul.mubr.bf16.gmra.mxu0 %v1677
  %v2488 = vpop.f32.mrf.mxu0
  %v2489 = vadd.f32 0.0, %v2488
  %v2490 = vpop.f32.mrf.mxu0
  %v2491 = vpop.f32.mrf.mxu0
  %v2492 = vadd.f32 0.0, %v2491
  %v2493 = vpop.f32.mrf.mxu0
  %2494 = vmatprep.mubr.bf16.mxu0 0
  %2495 = vmatmul.mubr.bf16.gmra.mxu0 %v1680
  %v2496 = vpop.f32.mrf.mxu0
  %v2497 = vadd.f32 0.0, %v2496
  %v2498 = vpop.f32.mrf.mxu0
  %v2499 = vpop.f32.mrf.mxu0
  %v2500 = vadd.f32 0.0, %v2499
  %v2501 = vpop.f32.mrf.mxu0
  %2502 = vmatprep.mubr.bf16.mxu0 0
  %2503 = vmatmul.mubr.bf16.gmra.mxu0 %v1683
  %v2504 = vpop.f32.mrf.mxu0
  %v2505 = vadd.f32 0.0, %v2504
  %v2506 = vpop.f32.mrf.mxu0
  %v2507 = vpop.f32.mrf.mxu0
  %v2508 = vadd.f32 0.0, %v2507
  %v2509 = vpop.f32.mrf.mxu0
  %2510 = vmatprep.mubr.bf16.mxu0 0
  %2511 = vmatmul.mubr.bf16.gmra.mxu0 %v1686
  %v2512 = vpop.f32.mrf.mxu0
  %v2513 = vadd.f32 0.0, %v2512
  %v2514 = vpop.f32.mrf.mxu0
  %v2515 = vpop.f32.mrf.mxu0
  %v2516 = vadd.f32 0.0, %v2515
  %v2517 = vpop.f32.mrf.mxu0
  %2518 = vmatprep.mubr.bf16.mxu0 0
  %2519 = vmatmul.mubr.bf16.gmra.mxu0 %v1689
  %v2520 = vpop.f32.mrf.mxu0
  %v2521 = vadd.f32 0.0, %v2520
  %v2522 = vpop.f32.mrf.mxu0
  %v2523 = vpop.f32.mrf.mxu0
  %v2524 = vadd.f32 0.0, %v2523
  %v2525 = vpop.f32.mrf.mxu0
  %2526 = vmatprep.mubr.bf16.mxu0 0
  %2527 = vmatmul.mubr.bf16.gmra.mxu0 %v1692
  %v2528 = vpop.f32.mrf.mxu0
  %v2529 = vadd.f32 0.0, %v2528
  %v2530 = vpop.f32.mrf.mxu0
  %v2531 = vpop.f32.mrf.mxu0
  %v2532 = vadd.f32 0.0, %v2531
  %v2533 = vpop.f32.mrf.mxu0
  %2534 = vmatprep.mubr.bf16.mxu0 0
  %2535 = vmatmul.mubr.bf16.gmra.mxu0 %v1695
  %v2536 = vpop.f32.mrf.mxu0
  %v2537 = vadd.f32 0.0, %v2536
  %v2538 = vpop.f32.mrf.mxu0
  %v2539 = vpop.f32.mrf.mxu0
  %v2540 = vadd.f32 0.0, %v2539
  %v2541 = vpop.f32.mrf.mxu0
  %2542 = vmatprep.mubr.bf16.mxu0 0
  %2543 = vmatmul.mubr.bf16.gmra.mxu0 %v1698
  %v2544 = vpop.f32.mrf.mxu0
  %v2545 = vadd.f32 0.0, %v2544
  %v2546 = vpop.f32.mrf.mxu0
  %v2547 = vpop.f32.mrf.mxu0
  %v2548 = vadd.f32 0.0, %v2547
  %v2549 = vpop.f32.mrf.mxu0
  %2550 = vmatprep.mubr.bf16.mxu0 0
  %2551 = vmatmul.mubr.bf16.gmra.mxu0 %v1701
  %v2552 = vpop.f32.mrf.mxu0
  %v2553 = vadd.f32 0.0, %v2552
  %v2554 = vpop.f32.mrf.mxu0
  %v2555 = vpop.f32.mrf.mxu0
  %v2556 = vadd.f32 0.0, %v2555
  %v2557 = vpop.f32.mrf.mxu0
  %2558 = vmatprep.mubr.bf16.mxu0 0
  %2559 = vmatmul.mubr.bf16.gmra.mxu0 %v1704
  %v2560 = vpop.f32.mrf.mxu0
  %v2561 = vadd.f32 0.0, %v2560
  %v2562 = vpop.f32.mrf.mxu0
  %v2563 = vpop.f32.mrf.mxu0
  %v2564 = vadd.f32 0.0, %v2563
  %v2565 = vpop.f32.mrf.mxu0
  %2566 = vmatprep.mubr.bf16.mxu0 0
  %2567 = vmatmul.mubr.bf16.gmra.mxu0 %v1707
  %v2568 = vpop.f32.mrf.mxu0
  %v2569 = vadd.f32 0.0, %v2568
  %v2570 = vpop.f32.mrf.mxu0
  %v2571 = vpop.f32.mrf.mxu0
  %v2572 = vadd.f32 0.0, %v2571
  %v2573 = vpop.f32.mrf.mxu0
  %2574 = vmatprep.mubr.bf16.mxu0 0
  %2575 = vmatmul.mubr.bf16.gmra.mxu0 %v1710
  %v2576 = vpop.f32.mrf.mxu0
  %v2577 = vadd.f32 0.0, %v2576
  %v2578 = vpop.f32.mrf.mxu0
  %v2579 = vpop.f32.mrf.mxu0
  %v2580 = vadd.f32 0.0, %v2579
  %v2581 = vpop.f32.mrf.mxu0
  %2582 = vmatprep.mubr.bf16.mxu0 0
  %2583 = vmatmul.mubr.bf16.gmra.mxu0 %v1713
  %v2584 = vpop.f32.mrf.mxu0
  %v2585 = vadd.f32 0.0, %v2584
  %v2586 = vpop.f32.mrf.mxu0
  %v2587 = vpop.f32.mrf.mxu0
  %v2588 = vadd.f32 0.0, %v2587
  %v2589 = vpop.f32.mrf.mxu0
  %2590 = vmatprep.mubr.bf16.mxu0 0
  %2591 = vmatmul.mubr.bf16.gmra.mxu0 %v1716
  %v2592 = vpop.f32.mrf.mxu0
  %v2593 = vadd.f32 0.0, %v2592
  %v2594 = vpop.f32.mrf.mxu0
  %v2595 = vpop.f32.mrf.mxu0
  %v2596 = vadd.f32 0.0, %v2595
  %v2597 = vpop.f32.mrf.mxu0
  %2598 = vmatprep.mubr.bf16.mxu0 0
  %2599 = vmatmul.mubr.bf16.gmra.mxu0 %v1719
  %v2600 = vpop.f32.mrf.mxu0
  %v2601 = vadd.f32 0.0, %v2600
  %v2602 = vpop.f32.mrf.mxu0
  %v2603 = vpop.f32.mrf.mxu0
  %v2604 = vadd.f32 0.0, %v2603
  %v2605 = vpop.f32.mrf.mxu0
  %2606 = vmatprep.mubr.bf16.mxu0 0
  %2607 = vmatmul.mubr.bf16.gmra.mxu0 %v1722
  %v2608 = vpop.f32.mrf.mxu0
  %v2609 = vadd.f32 0.0, %v2608
  %v2610 = vpop.f32.mrf.mxu0
  %v2611 = vpop.f32.mrf.mxu0
  %v2612 = vadd.f32 0.0, %v2611
  %v2613 = vpop.f32.mrf.mxu0
  %2614 = vmatprep.mubr.bf16.mxu0 0
  %2615 = vmatmul.mubr.bf16.gmra.mxu0 %v1725
  %v2616 = vpop.f32.mrf.mxu0
  %v2617 = vadd.f32 0.0, %v2616
  %v2618 = vpop.f32.mrf.mxu0
  %v2619 = vpop.f32.mrf.mxu0
  %v2620 = vadd.f32 0.0, %v2619
  %v2621 = vpop.f32.mrf.mxu0
  %2622 = vmatprep.mubr.bf16.mxu0 0
  %2623 = vmatmul.mubr.bf16.gmra.mxu0 %v1728
  %v2624 = vpop.f32.mrf.mxu0
  %v2625 = vadd.f32 0.0, %v2624
  %v2626 = vpop.f32.mrf.mxu0
  %v2627 = vpop.f32.mrf.mxu0
  %v2628 = vadd.f32 0.0, %v2627
  %v2629 = vpop.f32.mrf.mxu0
  %2630 = vmatprep.mubr.bf16.mxu0 0
  %2631 = vmatmul.mubr.bf16.gmra.mxu0 %v1731
  %v2632 = vpop.f32.mrf.mxu0
  %v2633 = vadd.f32 0.0, %v2632
  %v2634 = vpop.f32.mrf.mxu0
  %v2635 = vpop.f32.mrf.mxu0
  %v2636 = vadd.f32 0.0, %v2635
  %v2637 = vpop.f32.mrf.mxu0
  %2638 = vmatprep.mubr.bf16.mxu0 0
  %2639 = vmatmul.mubr.bf16.gmra.mxu0 %v1734
  %v2640 = vpop.f32.mrf.mxu0
  %v2641 = vadd.f32 0.0, %v2640
  %v2642 = vpop.f32.mrf.mxu0
  %v2643 = vpop.f32.mrf.mxu0
  %v2644 = vadd.f32 0.0, %v2643
  %v2645 = vpop.f32.mrf.mxu0
  %2646 = vmatprep.mubr.bf16.mxu0 0
  %2647 = vmatmul.mubr.bf16.gmra.mxu0 %v1737
  %v2648 = vpop.f32.mrf.mxu0
  %v2649 = vadd.f32 0.0, %v2648
  %v2650 = vpop.f32.mrf.mxu0
  %v2651 = vpop.f32.mrf.mxu0
  %v2652 = vadd.f32 0.0, %v2651
  %v2653 = vpop.f32.mrf.mxu0
  %2654 = vmatprep.mubr.bf16.mxu0 0
  %2655 = vmatmul.mubr.bf16.gmra.mxu0 %v1740
  %v2656 = vpop.f32.mrf.mxu0
  %v2657 = vadd.f32 0.0, %v2656
  %v2658 = vpop.f32.mrf.mxu0
  %v2659 = vpop.f32.mrf.mxu0
  %v2660 = vadd.f32 0.0, %v2659
  %v2661 = vpop.f32.mrf.mxu0
  %2662 = vmatprep.mubr.bf16.mxu0 0
  %2663 = vmatmul.mubr.bf16.gmra.mxu0 %v1743
  %v2664 = vpop.f32.mrf.mxu0
  %v2665 = vadd.f32 0.0, %v2664
  %v2666 = vpop.f32.mrf.mxu0
  %v2667 = vpop.f32.mrf.mxu0
  %v2668 = vadd.f32 0.0, %v2667
  %v2669 = vpop.f32.mrf.mxu0
  %2670 = vmatprep.mubr.bf16.mxu0 0
  %2671 = vmatmul.mubr.bf16.gmra.mxu0 %v1746
  %v2672 = vpop.f32.mrf.mxu0
  %v2673 = vadd.f32 0.0, %v2672
  %v2674 = vpop.f32.mrf.mxu0
  %v2675 = vpop.f32.mrf.mxu0
  %v2676 = vadd.f32 0.0, %v2675
  %v2677 = vpop.f32.mrf.mxu0
  %2678 = vmatprep.mubr.bf16.mxu0 0
  %2679 = vmatmul.mubr.bf16.gmra.mxu0 %v1749
  %v2680 = vpop.f32.mrf.mxu0
  %v2681 = vadd.f32 0.0, %v2680
  %v2682 = vpop.f32.mrf.mxu0
  %v2683 = vpop.f32.mrf.mxu0
  %v2684 = vadd.f32 0.0, %v2683
  %v2685 = vpop.f32.mrf.mxu0
  %2686 = vmatprep.mubr.bf16.mxu0 0
  %2687 = vmatmul.mubr.bf16.gmra.mxu0 %v1752
  %v2688 = vpop.f32.mrf.mxu0
  %v2689 = vadd.f32 0.0, %v2688
  %v2690 = vpop.f32.mrf.mxu0
  %v2691 = vpop.f32.mrf.mxu0
  %v2692 = vadd.f32 0.0, %v2691
  %v2693 = vpop.f32.mrf.mxu0
  %2694 = vmatprep.mubr.bf16.mxu0 0
  %2695 = vmatmul.mubr.bf16.gmra.mxu0 %v1755
  %v2696 = vpop.f32.mrf.mxu0
  %v2697 = vadd.f32 0.0, %v2696
  %v2698 = vpop.f32.mrf.mxu0
  %v2699 = vpop.f32.mrf.mxu0
  %v2700 = vadd.f32 0.0, %v2699
  %v2701 = vpop.f32.mrf.mxu0
  %2702 = vmatprep.mubr.bf16.mxu0 0
  %2703 = vmatmul.mubr.bf16.gmra.mxu0 %v1758
  %v2704 = vpop.f32.mrf.mxu0
  %v2705 = vadd.f32 0.0, %v2704
  %v2706 = vpop.f32.mrf.mxu0
  %v2707 = vpop.f32.mrf.mxu0
  %v2708 = vadd.f32 0.0, %v2707
  %v2709 = vpop.f32.mrf.mxu0
  %2710 = vmatprep.mubr.bf16.mxu0 0
  %2711 = vmatmul.mubr.bf16.gmra.mxu0 %v1761
  %v2712 = vpop.f32.mrf.mxu0
  %v2713 = vadd.f32 0.0, %v2712
  %v2714 = vpop.f32.mrf.mxu0
  %v2715 = vpop.f32.mrf.mxu0
  %v2716 = vadd.f32 0.0, %v2715
  %v2717 = vpop.f32.mrf.mxu0
  %2718 = vmatprep.mubr.bf16.mxu0 0
  %2719 = vmatmul.mubr.bf16.gmra.mxu0 %v1764
  %v2720 = vpop.f32.mrf.mxu0
  %v2721 = vadd.f32 0.0, %v2720
  %v2722 = vpop.f32.mrf.mxu0
  %v2723 = vpop.f32.mrf.mxu0
  %v2724 = vadd.f32 0.0, %v2723
  %v2725 = vpop.f32.mrf.mxu0
  %2726 = vmatprep.mubr.bf16.mxu0 0
  %2727 = vmatmul.mubr.bf16.gmra.mxu0 %v1767
  %v2728 = vpop.f32.mrf.mxu0
  %v2729 = vadd.f32 0.0, %v2728
  %v2730 = vpop.f32.mrf.mxu0
  %v2731 = vpop.f32.mrf.mxu0
  %v2732 = vadd.f32 0.0, %v2731
  %v2733 = vpop.f32.mrf.mxu0
  %2734 = vmatprep.mubr.bf16.mxu0 0
  %2735 = vmatmul.mubr.bf16.gmra.mxu0 %v1770
  %v2736 = vpop.f32.mrf.mxu0
  %v2737 = vadd.f32 0.0, %v2736
  %v2738 = vpop.f32.mrf.mxu0
  %v2739 = vpop.f32.mrf.mxu0
  %v2740 = vadd.f32 0.0, %v2739
  %v2741 = vpop.f32.mrf.mxu0
  %2742 = vmatprep.mubr.bf16.mxu0 0
  %2743 = vmatmul.mubr.bf16.gmra.mxu0 %v1773
  %v2744 = vpop.f32.mrf.mxu0
  %v2745 = vadd.f32 0.0, %v2744
  %v2746 = vpop.f32.mrf.mxu0
  %v2747 = vpop.f32.mrf.mxu0
  %v2748 = vadd.f32 0.0, %v2747
  %v2749 = vpop.f32.mrf.mxu0
  %2750 = vmatprep.mubr.bf16.mxu0 0
  %2751 = vmatmul.mubr.bf16.gmra.mxu0 %v1776
  %v2752 = vpop.f32.mrf.mxu0
  %v2753 = vadd.f32 0.0, %v2752
  %v2754 = vpop.f32.mrf.mxu0
  %v2755 = vpop.f32.mrf.mxu0
  %v2756 = vadd.f32 0.0, %v2755
  %v2757 = vpop.f32.mrf.mxu0
  %2758 = vmatprep.mubr.bf16.mxu0 0
  %2759 = vmatmul.mubr.bf16.gmra.mxu0 %v1779
  %v2760 = vpop.f32.mrf.mxu0
  %v2761 = vadd.f32 0.0, %v2760
  %v2762 = vpop.f32.mrf.mxu0
  %v2763 = vpop.f32.mrf.mxu0
  %v2764 = vadd.f32 0.0, %v2763
  %v2765 = vpop.f32.mrf.mxu0
  %2766 = vmatprep.mubr.bf16.mxu0 0
  %2767 = vmatmul.mubr.bf16.gmra.mxu0 %v1782
  %v2768 = vpop.f32.mrf.mxu0
  %v2769 = vadd.f32 0.0, %v2768
  %v2770 = vpop.f32.mrf.mxu0
  %v2771 = vpop.f32.mrf.mxu0
  %v2772 = vadd.f32 0.0, %v2771
  %v2773 = vpop.f32.mrf.mxu0
  %2774 = vmatprep.mubr.bf16.mxu0 0
  %2775 = vmatmul.mubr.bf16.gmra.mxu0 %v1785
  %v2776 = vpop.f32.mrf.mxu0
  %v2777 = vadd.f32 0.0, %v2776
  %v2778 = vpop.f32.mrf.mxu0
  %v2779 = vpop.f32.mrf.mxu0
  %v2780 = vadd.f32 0.0, %v2779
  %v2781 = vpop.f32.mrf.mxu0
  %2782 = vmatprep.mubr.bf16.mxu0 0
  %2783 = vmatmul.mubr.bf16.gmra.mxu0 %v1788
  %v2784 = vpop.f32.mrf.mxu0
  %v2785 = vadd.f32 0.0, %v2784
  %v2786 = vpop.f32.mrf.mxu0
  %v2787 = vpop.f32.mrf.mxu0
  %v2788 = vadd.f32 0.0, %v2787
  %v2789 = vpop.f32.mrf.mxu0
  %2790 = vmatprep.mubr.bf16.mxu0 0
  %2791 = vmatmul.mubr.bf16.gmra.mxu0 %v1791
  %v2792 = vpop.f32.mrf.mxu0
  %v2793 = vadd.f32 0.0, %v2792
  %v2794 = vpop.f32.mrf.mxu0
  %v2795 = vpop.f32.mrf.mxu0
  %v2796 = vadd.f32 0.0, %v2795
  %v2797 = vpop.f32.mrf.mxu0
  %2798 = vmatprep.mubr.bf16.mxu0 0
  %2799 = vmatmul.mubr.bf16.gmra.mxu0 %v1794
  %v2800 = vpop.f32.mrf.mxu0
  %v2801 = vadd.f32 0.0, %v2800
  %v2802 = vpop.f32.mrf.mxu0
  %v2803 = vpop.f32.mrf.mxu0
  %v2804 = vadd.f32 0.0, %v2803
  %v2805 = vpop.f32.mrf.mxu0
  %2806 = vmatprep.mubr.bf16.mxu0 0
  %2807 = vmatmul.mubr.bf16.gmra.mxu0 %v1797
  %v2808 = vpop.f32.mrf.mxu0
  %v2809 = vadd.f32 0.0, %v2808
  %v2810 = vpop.f32.mrf.mxu0
  %v2811 = vpop.f32.mrf.mxu0
  %v2812 = vadd.f32 0.0, %v2811
  %v2813 = vpop.f32.mrf.mxu0
  %2814 = vmatprep.mubr.bf16.mxu0 0
  %2815 = vmatmul.mubr.bf16.gmra.mxu0 %v1800
  %v2816 = vpop.f32.mrf.mxu0
  %v2817 = vadd.f32 0.0, %v2816
  %v2818 = vpop.f32.mrf.mxu0
  %v2819 = vpop.f32.mrf.mxu0
  %v2820 = vadd.f32 0.0, %v2819
  %v2821 = vpop.f32.mrf.mxu0
  %2822 = vmatprep.mubr.bf16.mxu0 0
  %2823 = vmatmul.mubr.bf16.gmra.mxu0 %v1803
  %v2824 = vpop.f32.mrf.mxu0
  %v2825 = vadd.f32 0.0, %v2824
  %v2826 = vpop.f32.mrf.mxu0
  %v2827 = vpop.f32.mrf.mxu0
  %v2828 = vadd.f32 0.0, %v2827
  %v2829 = vpop.f32.mrf.mxu0
  %2830 = vmatprep.mubr.bf16.mxu0 0
  %2831 = vmatmul.mubr.bf16.gmra.mxu0 %v1806
  %v2832 = vpop.f32.mrf.mxu0
  %v2833 = vadd.f32 0.0, %v2832
  %v2834 = vpop.f32.mrf.mxu0
  %v2835 = vpop.f32.mrf.mxu0
  %v2836 = vadd.f32 0.0, %v2835
  %v2837 = vpop.f32.mrf.mxu0
  %2838 = vmatprep.mubr.bf16.mxu0 0
  %2839 = vmatmul.mubr.bf16.gmra.mxu0 %v1809
  %v2840 = vpop.f32.mrf.mxu0
  %v2841 = vadd.f32 0.0, %v2840
  %v2842 = vpop.f32.mrf.mxu0
  %v2843 = vpop.f32.mrf.mxu0
  %v2844 = vadd.f32 0.0, %v2843
  %v2845 = vpop.f32.mrf.mxu0
  %2846 = vmatprep.mubr.bf16.mxu0 0
  %2847 = vmatmul.mubr.bf16.gmra.mxu0 %v1812
  %v2848 = vpop.f32.mrf.mxu0
  %v2849 = vadd.f32 0.0, %v2848
  %v2850 = vpop.f32.mrf.mxu0
  %v2851 = vpop.f32.mrf.mxu0
  %v2852 = vadd.f32 0.0, %v2851
  %v2853 = vpop.f32.mrf.mxu0
  %2854 = vmatprep.mubr.bf16.mxu0 0
  %2855 = vmatmul.mubr.bf16.gmra.mxu0 %v1815
  %v2856 = vpop.f32.mrf.mxu0
  %v2857 = vadd.f32 0.0, %v2856
  %v2858 = vpop.f32.mrf.mxu0
  %v2859 = vpop.f32.mrf.mxu0
  %v2860 = vadd.f32 0.0, %v2859
  %v2861 = vpop.f32.mrf.mxu0
  %2862 = vmatprep.mubr.bf16.mxu0 0
  %2863 = vmatmul.mubr.bf16.gmra.mxu0 %v1818
  %v2864 = vpop.f32.mrf.mxu0
  %v2865 = vadd.f32 0.0, %v2864
  %v2866 = vpop.f32.mrf.mxu0
  %v2867 = vpop.f32.mrf.mxu0
  %v2868 = vadd.f32 0.0, %v2867
  %v2869 = vpop.f32.mrf.mxu0
  %2870 = vmatprep.mubr.bf16.mxu0 0
  %2871 = vmatmul.mubr.bf16.gmra.mxu0 %v1821
  %v2872 = vpop.f32.mrf.mxu0
  %v2873 = vadd.f32 0.0, %v2872
  %v2874 = vpop.f32.mrf.mxu0
  %v2875 = vpop.f32.mrf.mxu0
  %v2876 = vadd.f32 0.0, %v2875
  %v2877 = vpop.f32.mrf.mxu0
  %2878 = vmatprep.mubr.bf16.mxu0 0
  %2879 = vmatmul.mubr.bf16.gmra.mxu0 %v1824
  %v2880 = vpop.f32.mrf.mxu0
  %v2881 = vadd.f32 0.0, %v2880
  %v2882 = vpop.f32.mrf.mxu0
  %v2883 = vpop.f32.mrf.mxu0
  %v2884 = vadd.f32 0.0, %v2883
  %v2885 = vpop.f32.mrf.mxu0
  %2886 = vdwg.mxu0
  %v2887 = vpack.c.bf16 %v1868, %v1865
  %v2888 = vpack.c.bf16 %v1876, %v1873
  %v2889 = vpack.c.bf16 %v1884, %v1881
  %v2890 = vpack.c.bf16 %v1892, %v1889
  %v2891 = vpack.c.bf16 %v1900, %v1897
  %v2892 = vpack.c.bf16 %v1908, %v1905
  %v2893 = vpack.c.bf16 %v1916, %v1913
  %v2894 = vpack.c.bf16 %v1924, %v1921
  %v2895 = vpack.c.bf16 %v1932, %v1929
  %v2896 = vpack.c.bf16 %v1940, %v1937
  %v2897 = vpack.c.bf16 %v1948, %v1945
  %v2898 = vpack.c.bf16 %v1956, %v1953
  %v2899 = vpack.c.bf16 %v1964, %v1961
  %v2900 = vpack.c.bf16 %v1972, %v1969
  %v2901 = vpack.c.bf16 %v1980, %v1977
  %v2902 = vpack.c.bf16 %v1988, %v1985
  %v2903 = vpack.c.bf16 %v1996, %v1993
  %v2904 = vpack.c.bf16 %v2004, %v2001
  %v2905 = vpack.c.bf16 %v2012, %v2009
  %v2906 = vpack.c.bf16 %v2020, %v2017
  %v2907 = vpack.c.bf16 %v2028, %v2025
  %v2908 = vpack.c.bf16 %v2036, %v2033
  %v2909 = vpack.c.bf16 %v2044, %v2041
  %v2910 = vpack.c.bf16 %v2052, %v2049
  %v2911 = vpack.c.bf16 %v2060, %v2057
  %v2912 = vpack.c.bf16 %v2068, %v2065
  %v2913 = vpack.c.bf16 %v2076, %v2073
  %v2914 = vpack.c.bf16 %v2084, %v2081
  %v2915 = vpack.c.bf16 %v2092, %v2089
  %v2916 = vpack.c.bf16 %v2100, %v2097
  %v2917 = vpack.c.bf16 %v2108, %v2105
  %v2918 = vpack.c.bf16 %v2116, %v2113
  %v2919 = vpack.c.bf16 %v2124, %v2121
  %v2920 = vpack.c.bf16 %v2132, %v2129
  %v2921 = vpack.c.bf16 %v2140, %v2137
  %v2922 = vpack.c.bf16 %v2148, %v2145
  %v2923 = vpack.c.bf16 %v2156, %v2153
  %v2924 = vpack.c.bf16 %v2164, %v2161
  %v2925 = vpack.c.bf16 %v2172, %v2169
  %v2926 = vpack.c.bf16 %v2180, %v2177
  %v2927 = vpack.c.bf16 %v2188, %v2185
  %v2928 = vpack.c.bf16 %v2196, %v2193
  %v2929 = vpack.c.bf16 %v2204, %v2201
  %v2930 = vpack.c.bf16 %v2212, %v2209
  %v2931 = vpack.c.bf16 %v2220, %v2217
  %v2932 = vpack.c.bf16 %v2228, %v2225
  %v2933 = vpack.c.bf16 %v2236, %v2233
  %v2934 = vpack.c.bf16 %v2244, %v2241
  %v2935 = vpack.c.bf16 %v2252, %v2249
  %v2936 = vpack.c.bf16 %v2260, %v2257
  %v2937 = vpack.c.bf16 %v2268, %v2265
  %v2938 = vpack.c.bf16 %v2276, %v2273
  %v2939 = vpack.c.bf16 %v2284, %v2281
  %v2940 = vpack.c.bf16 %v2292, %v2289
  %v2941 = vpack.c.bf16 %v2300, %v2297
  %v2942 = vpack.c.bf16 %v2308, %v2305
  %v2943 = vpack.c.bf16 %v2316, %v2313
  %v2944 = vpack.c.bf16 %v2324, %v2321
  %v2945 = vpack.c.bf16 %v2332, %v2329
  %v2946 = vpack.c.bf16 %v2340, %v2337
  %v2947 = vpack.c.bf16 %v2348, %v2345
  %v2948 = vpack.c.bf16 %v2356, %v2353
  %v2949 = vpack.c.bf16 %v2364, %v2361
  %v2950 = vpack.c.bf16 %v2372, %v2369
  %v2951 = vpack.c.bf16 %v2380, %v2377
  %v2952 = vpack.c.bf16 %v2388, %v2385
  %v2953 = vpack.c.bf16 %v2396, %v2393
  %v2954 = vpack.c.bf16 %v2404, %v2401
  %v2955 = vpack.c.bf16 %v2412, %v2409
  %v2956 = vpack.c.bf16 %v2420, %v2417
  %v2957 = vpack.c.bf16 %v2428, %v2425
  %v2958 = vpack.c.bf16 %v2436, %v2433
  %v2959 = vpack.c.bf16 %v2444, %v2441
  %v2960 = vpack.c.bf16 %v2452, %v2449
  %v2961 = vpack.c.bf16 %v2460, %v2457
  %v2962 = vpack.c.bf16 %v2468, %v2465
  %v2963 = vpack.c.bf16 %v2476, %v2473
  %v2964 = vpack.c.bf16 %v2484, %v2481
  %v2965 = vpack.c.bf16 %v2492, %v2489
  %v2966 = vpack.c.bf16 %v2500, %v2497
  %v2967 = vpack.c.bf16 %v2508, %v2505
  %v2968 = vpack.c.bf16 %v2516, %v2513
  %v2969 = vpack.c.bf16 %v2524, %v2521
  %v2970 = vpack.c.bf16 %v2532, %v2529
  %v2971 = vpack.c.bf16 %v2540, %v2537
  %v2972 = vpack.c.bf16 %v2548, %v2545
  %v2973 = vpack.c.bf16 %v2556, %v2553
  %v2974 = vpack.c.bf16 %v2564, %v2561
  %v2975 = vpack.c.bf16 %v2572, %v2569
  %v2976 = vpack.c.bf16 %v2580, %v2577
  %v2977 = vpack.c.bf16 %v2588, %v2585
  %v2978 = vpack.c.bf16 %v2596, %v2593
  %v2979 = vpack.c.bf16 %v2604, %v2601
  %v2980 = vpack.c.bf16 %v2612, %v2609
  %v2981 = vpack.c.bf16 %v2620, %v2617
  %v2982 = vpack.c.bf16 %v2628, %v2625
  %v2983 = vpack.c.bf16 %v2636, %v2633
  %v2984 = vpack.c.bf16 %v2644, %v2641
  %v2985 = vpack.c.bf16 %v2652, %v2649
  %v2986 = vpack.c.bf16 %v2660, %v2657
  %v2987 = vpack.c.bf16 %v2668, %v2665
  %v2988 = vpack.c.bf16 %v2676, %v2673
  %v2989 = vpack.c.bf16 %v2684, %v2681
  %v2990 = vpack.c.bf16 %v2692, %v2689
  %v2991 = vpack.c.bf16 %v2700, %v2697
  %v2992 = vpack.c.bf16 %v2708, %v2705
  %v2993 = vpack.c.bf16 %v2716, %v2713
  %v2994 = vpack.c.bf16 %v2724, %v2721
  %v2995 = vpack.c.bf16 %v2732, %v2729
  %v2996 = vpack.c.bf16 %v2740, %v2737
  %v2997 = vpack.c.bf16 %v2748, %v2745
  %v2998 = vpack.c.bf16 %v2756, %v2753
  %v2999 = vpack.c.bf16 %v2764, %v2761
  %v3000 = vpack.c.bf16 %v2772, %v2769
  %v3001 = vpack.c.bf16 %v2780, %v2777
  %v3002 = vpack.c.bf16 %v2788, %v2785
  %v3003 = vpack.c.bf16 %v2796, %v2793
  %v3004 = vpack.c.bf16 %v2804, %v2801
  %v3005 = vpack.c.bf16 %v2812, %v2809
  %v3006 = vpack.c.bf16 %v2820, %v2817
  %v3007 = vpack.c.bf16 %v2828, %v2825
  %v3008 = vpack.c.bf16 %v2836, %v2833
  %v3009 = vpack.c.bf16 %v2844, %v2841
  %v3010 = vpack.c.bf16 %v2852, %v2849
  %v3011 = vpack.c.bf16 %v2860, %v2857
  %v3012 = vpack.c.bf16 %v2868, %v2865
  %v3013 = vpack.c.bf16 %v2876, %v2873
  %v3014 = vpack.c.bf16 %v2884, %v2881
  %v3143 = vunpack.c.l.b16 %v2887
  %v3144 = vunpack.c.h.b16 %v2887
  %v3145 = vunpack.c.l.b16 %v2888
  %v3146 = vunpack.c.h.b16 %v2888
  %v3147 = vunpack.c.l.b16 %v2889
  %v3148 = vunpack.c.h.b16 %v2889
  %v3149 = vunpack.c.l.b16 %v2890
  %v3150 = vunpack.c.h.b16 %v2890
  %v3151 = vunpack.c.l.b16 %v2891
  %v3152 = vunpack.c.h.b16 %v2891
  %v3153 = vunpack.c.l.b16 %v2892
  %v3154 = vunpack.c.h.b16 %v2892
  %v3155 = vunpack.c.l.b16 %v2893
  %v3156 = vunpack.c.h.b16 %v2893
  %v3157 = vunpack.c.l.b16 %v2894
  %v3158 = vunpack.c.h.b16 %v2894
  %v3159 = vunpack.c.l.b16 %v2895
  %v3160 = vunpack.c.h.b16 %v2895
  %v3161 = vunpack.c.l.b16 %v2896
  %v3162 = vunpack.c.h.b16 %v2896
  %v3163 = vunpack.c.l.b16 %v2897
  %v3164 = vunpack.c.h.b16 %v2897
  %v3165 = vunpack.c.l.b16 %v2898
  %v3166 = vunpack.c.h.b16 %v2898
  %v3167 = vunpack.c.l.b16 %v2899
  %v3168 = vunpack.c.h.b16 %v2899
  %v3169 = vunpack.c.l.b16 %v2900
  %v3170 = vunpack.c.h.b16 %v2900
  %v3171 = vunpack.c.l.b16 %v2901
  %v3172 = vunpack.c.h.b16 %v2901
  %v3173 = vunpack.c.l.b16 %v2902
  %v3174 = vunpack.c.h.b16 %v2902
  %v3175 = vunpack.c.l.b16 %v2903
  %v3176 = vunpack.c.h.b16 %v2903
  %v3177 = vunpack.c.l.b16 %v2904
  %v3178 = vunpack.c.h.b16 %v2904
  %v3179 = vunpack.c.l.b16 %v2905
  %v3180 = vunpack.c.h.b16 %v2905
  %v3181 = vunpack.c.l.b16 %v2906
  %v3182 = vunpack.c.h.b16 %v2906
  %v3183 = vunpack.c.l.b16 %v2907
  %v3184 = vunpack.c.h.b16 %v2907
  %v3185 = vunpack.c.l.b16 %v2908
  %v3186 = vunpack.c.h.b16 %v2908
  %v3187 = vunpack.c.l.b16 %v2909
  %v3188 = vunpack.c.h.b16 %v2909
  %v3189 = vunpack.c.l.b16 %v2910
  %v3190 = vunpack.c.h.b16 %v2910
  %v3191 = vunpack.c.l.b16 %v2911
  %v3192 = vunpack.c.h.b16 %v2911
  %v3193 = vunpack.c.l.b16 %v2912
  %v3194 = vunpack.c.h.b16 %v2912
  %v3195 = vunpack.c.l.b16 %v2913
  %v3196 = vunpack.c.h.b16 %v2913
  %v3197 = vunpack.c.l.b16 %v2914
  %v3198 = vunpack.c.h.b16 %v2914
  %v3199 = vunpack.c.l.b16 %v2915
  %v3200 = vunpack.c.h.b16 %v2915
  %v3201 = vunpack.c.l.b16 %v2916
  %v3202 = vunpack.c.h.b16 %v2916
  %v3203 = vunpack.c.l.b16 %v2917
  %v3204 = vunpack.c.h.b16 %v2917
  %v3205 = vunpack.c.l.b16 %v2918
  %v3206 = vunpack.c.h.b16 %v2918
  %v3207 = vunpack.c.l.b16 %v2919
  %v3208 = vunpack.c.h.b16 %v2919
  %v3209 = vunpack.c.l.b16 %v2920
  %v3210 = vunpack.c.h.b16 %v2920
  %v3211 = vunpack.c.l.b16 %v2921
  %v3212 = vunpack.c.h.b16 %v2921
  %v3213 = vunpack.c.l.b16 %v2922
  %v3214 = vunpack.c.h.b16 %v2922
  %v3215 = vunpack.c.l.b16 %v2923
  %v3216 = vunpack.c.h.b16 %v2923
  %v3217 = vunpack.c.l.b16 %v2924
  %v3218 = vunpack.c.h.b16 %v2924
  %v3219 = vunpack.c.l.b16 %v2925
  %v3220 = vunpack.c.h.b16 %v2925
  %v3221 = vunpack.c.l.b16 %v2926
  %v3222 = vunpack.c.h.b16 %v2926
  %v3223 = vunpack.c.l.b16 %v2927
  %v3224 = vunpack.c.h.b16 %v2927
  %v3225 = vunpack.c.l.b16 %v2928
  %v3226 = vunpack.c.h.b16 %v2928
  %v3227 = vunpack.c.l.b16 %v2929
  %v3228 = vunpack.c.h.b16 %v2929
  %v3229 = vunpack.c.l.b16 %v2930
  %v3230 = vunpack.c.h.b16 %v2930
  %v3231 = vunpack.c.l.b16 %v2931
  %v3232 = vunpack.c.h.b16 %v2931
  %v3233 = vunpack.c.l.b16 %v2932
  %v3234 = vunpack.c.h.b16 %v2932
  %v3235 = vunpack.c.l.b16 %v2933
  %v3236 = vunpack.c.h.b16 %v2933
  %v3237 = vunpack.c.l.b16 %v2934
  %v3238 = vunpack.c.h.b16 %v2934
  %v3239 = vunpack.c.l.b16 %v2935
  %v3240 = vunpack.c.h.b16 %v2935
  %v3241 = vunpack.c.l.b16 %v2936
  %v3242 = vunpack.c.h.b16 %v2936
  %v3243 = vunpack.c.l.b16 %v2937
  %v3244 = vunpack.c.h.b16 %v2937
  %v3245 = vunpack.c.l.b16 %v2938
  %v3246 = vunpack.c.h.b16 %v2938
  %v3247 = vunpack.c.l.b16 %v2939
  %v3248 = vunpack.c.h.b16 %v2939
  %v3249 = vunpack.c.l.b16 %v2940
  %v3250 = vunpack.c.h.b16 %v2940
  %v3251 = vunpack.c.l.b16 %v2941
  %v3252 = vunpack.c.h.b16 %v2941
  %v3253 = vunpack.c.l.b16 %v2942
  %v3254 = vunpack.c.h.b16 %v2942
  %v3255 = vunpack.c.l.b16 %v2943
  %v3256 = vunpack.c.h.b16 %v2943
  %v3257 = vunpack.c.l.b16 %v2944
  %v3258 = vunpack.c.h.b16 %v2944
  %v3259 = vunpack.c.l.b16 %v2945
  %v3260 = vunpack.c.h.b16 %v2945
  %v3261 = vunpack.c.l.b16 %v2946
  %v3262 = vunpack.c.h.b16 %v2946
  %v3263 = vunpack.c.l.b16 %v2947
  %v3264 = vunpack.c.h.b16 %v2947
  %v3265 = vunpack.c.l.b16 %v2948
  %v3266 = vunpack.c.h.b16 %v2948
  %v3267 = vunpack.c.l.b16 %v2949
  %v3268 = vunpack.c.h.b16 %v2949
  %v3269 = vunpack.c.l.b16 %v2950
  %v3270 = vunpack.c.h.b16 %v2950
  %v3271 = vunpack.c.l.b16 %v2951
  %v3272 = vunpack.c.h.b16 %v2951
  %v3273 = vunpack.c.l.b16 %v2952
  %v3274 = vunpack.c.h.b16 %v2952
  %v3275 = vunpack.c.l.b16 %v2953
  %v3276 = vunpack.c.h.b16 %v2953
  %v3277 = vunpack.c.l.b16 %v2954
  %v3278 = vunpack.c.h.b16 %v2954
  %v3279 = vunpack.c.l.b16 %v2955
  %v3280 = vunpack.c.h.b16 %v2955
  %v3281 = vunpack.c.l.b16 %v2956
  %v3282 = vunpack.c.h.b16 %v2956
  %v3283 = vunpack.c.l.b16 %v2957
  %v3284 = vunpack.c.h.b16 %v2957
  %v3285 = vunpack.c.l.b16 %v2958
  %v3286 = vunpack.c.h.b16 %v2958
  %v3287 = vunpack.c.l.b16 %v2959
  %v3288 = vunpack.c.h.b16 %v2959
  %v3289 = vunpack.c.l.b16 %v2960
  %v3290 = vunpack.c.h.b16 %v2960
  %v3291 = vunpack.c.l.b16 %v2961
  %v3292 = vunpack.c.h.b16 %v2961
  %v3293 = vunpack.c.l.b16 %v2962
  %v3294 = vunpack.c.h.b16 %v2962
  %v3295 = vunpack.c.l.b16 %v2963
  %v3296 = vunpack.c.h.b16 %v2963
  %v3297 = vunpack.c.l.b16 %v2964
  %v3298 = vunpack.c.h.b16 %v2964
  %v3299 = vunpack.c.l.b16 %v2965
  %v3300 = vunpack.c.h.b16 %v2965
  %v3301 = vunpack.c.l.b16 %v2966
  %v3302 = vunpack.c.h.b16 %v2966
  %v3303 = vunpack.c.l.b16 %v2967
  %v3304 = vunpack.c.h.b16 %v2967
  %v3305 = vunpack.c.l.b16 %v2968
  %v3306 = vunpack.c.h.b16 %v2968
  %v3307 = vunpack.c.l.b16 %v2969
  %v3308 = vunpack.c.h.b16 %v2969
  %v3309 = vunpack.c.l.b16 %v2970
  %v3310 = vunpack.c.h.b16 %v2970
  %v3311 = vunpack.c.l.b16 %v2971
  %v3312 = vunpack.c.h.b16 %v2971
  %v3313 = vunpack.c.l.b16 %v2972
  %v3314 = vunpack.c.h.b16 %v2972
  %v3315 = vunpack.c.l.b16 %v2973
  %v3316 = vunpack.c.h.b16 %v2973
  %v3317 = vunpack.c.l.b16 %v2974
  %v3318 = vunpack.c.h.b16 %v2974
  %v3319 = vunpack.c.l.b16 %v2975
  %v3320 = vunpack.c.h.b16 %v2975
  %v3321 = vunpack.c.l.b16 %v2976
  %v3322 = vunpack.c.h.b16 %v2976
  %v3323 = vunpack.c.l.b16 %v2977
  %v3324 = vunpack.c.h.b16 %v2977
  %v3325 = vunpack.c.l.b16 %v2978
  %v3326 = vunpack.c.h.b16 %v2978
  %v3327 = vunpack.c.l.b16 %v2979
  %v3328 = vunpack.c.h.b16 %v2979
  %v3329 = vunpack.c.l.b16 %v2980
  %v3330 = vunpack.c.h.b16 %v2980
  %v3331 = vunpack.c.l.b16 %v2981
  %v3332 = vunpack.c.h.b16 %v2981
  %v3333 = vunpack.c.l.b16 %v2982
  %v3334 = vunpack.c.h.b16 %v2982
  %v3335 = vunpack.c.l.b16 %v2983
  %v3336 = vunpack.c.h.b16 %v2983
  %v3337 = vunpack.c.l.b16 %v2984
  %v3338 = vunpack.c.h.b16 %v2984
  %v3339 = vunpack.c.l.b16 %v2985
  %v3340 = vunpack.c.h.b16 %v2985
  %v3341 = vunpack.c.l.b16 %v2986
  %v3342 = vunpack.c.h.b16 %v2986
  %v3343 = vunpack.c.l.b16 %v2987
  %v3344 = vunpack.c.h.b16 %v2987
  %v3345 = vunpack.c.l.b16 %v2988
  %v3346 = vunpack.c.h.b16 %v2988
  %v3347 = vunpack.c.l.b16 %v2989
  %v3348 = vunpack.c.h.b16 %v2989
  %v3349 = vunpack.c.l.b16 %v2990
  %v3350 = vunpack.c.h.b16 %v2990
  %v3351 = vunpack.c.l.b16 %v2991
  %v3352 = vunpack.c.h.b16 %v2991
  %v3353 = vunpack.c.l.b16 %v2992
  %v3354 = vunpack.c.h.b16 %v2992
  %v3355 = vunpack.c.l.b16 %v2993
  %v3356 = vunpack.c.h.b16 %v2993
  %v3357 = vunpack.c.l.b16 %v2994
  %v3358 = vunpack.c.h.b16 %v2994
  %v3359 = vunpack.c.l.b16 %v2995
  %v3360 = vunpack.c.h.b16 %v2995
  %v3361 = vunpack.c.l.b16 %v2996
  %v3362 = vunpack.c.h.b16 %v2996
  %v3363 = vunpack.c.l.b16 %v2997
  %v3364 = vunpack.c.h.b16 %v2997
  %v3365 = vunpack.c.l.b16 %v2998
  %v3366 = vunpack.c.h.b16 %v2998
  %v3367 = vunpack.c.l.b16 %v2999
  %v3368 = vunpack.c.h.b16 %v2999
  %v3369 = vunpack.c.l.b16 %v3000
  %v3370 = vunpack.c.h.b16 %v3000
  %v3371 = vunpack.c.l.b16 %v3001
  %v3372 = vunpack.c.h.b16 %v3001
  %v3373 = vunpack.c.l.b16 %v3002
  %v3374 = vunpack.c.h.b16 %v3002
  %v3375 = vunpack.c.l.b16 %v3003
  %v3376 = vunpack.c.h.b16 %v3003
  %v3377 = vunpack.c.l.b16 %v3004
  %v3378 = vunpack.c.h.b16 %v3004
  %v3379 = vunpack.c.l.b16 %v3005
  %v3380 = vunpack.c.h.b16 %v3005
  %v3381 = vunpack.c.l.b16 %v3006
  %v3382 = vunpack.c.h.b16 %v3006
  %v3383 = vunpack.c.l.b16 %v3007
  %v3384 = vunpack.c.h.b16 %v3007
  %v3385 = vunpack.c.l.b16 %v3008
  %v3386 = vunpack.c.h.b16 %v3008
  %v3387 = vunpack.c.l.b16 %v3009
  %v3388 = vunpack.c.h.b16 %v3009
  %v3389 = vunpack.c.l.b16 %v3010
  %v3390 = vunpack.c.h.b16 %v3010
  %v3391 = vunpack.c.l.b16 %v3011
  %v3392 = vunpack.c.h.b16 %v3011
  %v3393 = vunpack.c.l.b16 %v3012
  %v3394 = vunpack.c.h.b16 %v3012
  %v3395 = vunpack.c.l.b16 %v3013
  %v3396 = vunpack.c.h.b16 %v3013
  %v3397 = vunpack.c.l.b16 %v3014
  %v3398 = vunpack.c.h.b16 %v3014
  %v3399 = vpack.c.b16 %v3143, %v3143
  %v3400 = vpack.c.b16 %v3144, %v3144
  %v3401 = vpack.c.b16 %v3145, %v3145
  %v3402 = vpack.c.b16 %v3146, %v3146
  %v3403 = vpack.c.b16 %v3147, %v3147
  %v3404 = vpack.c.b16 %v3148, %v3148
  %v3405 = vpack.c.b16 %v3149, %v3149
  %v3406 = vpack.c.b16 %v3150, %v3150
  %v3407 = vpack.c.b16 %v3151, %v3151
  %v3408 = vpack.c.b16 %v3152, %v3152
  %v3409 = vpack.c.b16 %v3153, %v3153
  %v3410 = vpack.c.b16 %v3154, %v3154
  %v3411 = vpack.c.b16 %v3155, %v3155
  %v3412 = vpack.c.b16 %v3156, %v3156
  %v3413 = vpack.c.b16 %v3157, %v3157
  %v3414 = vpack.c.b16 %v3158, %v3158
  %v3415 = vpack.c.b16 %v3159, %v3159
  %v3416 = vpack.c.b16 %v3160, %v3160
  %v3417 = vpack.c.b16 %v3161, %v3161
  %v3418 = vpack.c.b16 %v3162, %v3162
  %v3419 = vpack.c.b16 %v3163, %v3163
  %v3420 = vpack.c.b16 %v3164, %v3164
  %v3421 = vpack.c.b16 %v3165, %v3165
  %v3422 = vpack.c.b16 %v3166, %v3166
  %v3423 = vpack.c.b16 %v3167, %v3167
  %v3424 = vpack.c.b16 %v3168, %v3168
  %v3425 = vpack.c.b16 %v3169, %v3169
  %v3426 = vpack.c.b16 %v3170, %v3170
  %v3427 = vpack.c.b16 %v3171, %v3171
  %v3428 = vpack.c.b16 %v3172, %v3172
  %v3429 = vpack.c.b16 %v3173, %v3173
  %v3430 = vpack.c.b16 %v3174, %v3174
  %v3431 = vpack.c.b16 %v3175, %v3175
  %v3432 = vpack.c.b16 %v3176, %v3176
  %v3433 = vpack.c.b16 %v3177, %v3177
  %v3434 = vpack.c.b16 %v3178, %v3178
  %v3435 = vpack.c.b16 %v3179, %v3179
  %v3436 = vpack.c.b16 %v3180, %v3180
  %v3437 = vpack.c.b16 %v3181, %v3181
  %v3438 = vpack.c.b16 %v3182, %v3182
  %v3439 = vpack.c.b16 %v3183, %v3183
  %v3440 = vpack.c.b16 %v3184, %v3184
  %v3441 = vpack.c.b16 %v3185, %v3185
  %v3442 = vpack.c.b16 %v3186, %v3186
  %v3443 = vpack.c.b16 %v3187, %v3187
  %v3444 = vpack.c.b16 %v3188, %v3188
  %v3445 = vpack.c.b16 %v3189, %v3189
  %v3446 = vpack.c.b16 %v3190, %v3190
  %v3447 = vpack.c.b16 %v3191, %v3191
  %v3448 = vpack.c.b16 %v3192, %v3192
  %v3449 = vpack.c.b16 %v3193, %v3193
  %v3450 = vpack.c.b16 %v3194, %v3194
  %v3451 = vpack.c.b16 %v3195, %v3195
  %v3452 = vpack.c.b16 %v3196, %v3196
  %v3453 = vpack.c.b16 %v3197, %v3197
  %v3454 = vpack.c.b16 %v3198, %v3198
  %v3455 = vpack.c.b16 %v3199, %v3199
  %v3456 = vpack.c.b16 %v3200, %v3200
  %v3457 = vpack.c.b16 %v3201, %v3201
  %v3458 = vpack.c.b16 %v3202, %v3202
  %v3459 = vpack.c.b16 %v3203, %v3203
  %v3460 = vpack.c.b16 %v3204, %v3204
  %v3461 = vpack.c.b16 %v3205, %v3205
  %v3462 = vpack.c.b16 %v3206, %v3206
  %v3463 = vpack.c.b16 %v3207, %v3207
  %v3464 = vpack.c.b16 %v3208, %v3208
  %v3465 = vpack.c.b16 %v3209, %v3209
  %v3466 = vpack.c.b16 %v3210, %v3210
  %v3467 = vpack.c.b16 %v3211, %v3211
  %v3468 = vpack.c.b16 %v3212, %v3212
  %v3469 = vpack.c.b16 %v3213, %v3213
  %v3470 = vpack.c.b16 %v3214, %v3214
  %v3471 = vpack.c.b16 %v3215, %v3215
  %v3472 = vpack.c.b16 %v3216, %v3216
  %v3473 = vpack.c.b16 %v3217, %v3217
  %v3474 = vpack.c.b16 %v3218, %v3218
  %v3475 = vpack.c.b16 %v3219, %v3219
  %v3476 = vpack.c.b16 %v3220, %v3220
  %v3477 = vpack.c.b16 %v3221, %v3221
  %v3478 = vpack.c.b16 %v3222, %v3222
  %v3479 = vpack.c.b16 %v3223, %v3223
  %v3480 = vpack.c.b16 %v3224, %v3224
  %v3481 = vpack.c.b16 %v3225, %v3225
  %v3482 = vpack.c.b16 %v3226, %v3226
  %v3483 = vpack.c.b16 %v3227, %v3227
  %v3484 = vpack.c.b16 %v3228, %v3228
  %v3485 = vpack.c.b16 %v3229, %v3229
  %v3486 = vpack.c.b16 %v3230, %v3230
  %v3487 = vpack.c.b16 %v3231, %v3231
  %v3488 = vpack.c.b16 %v3232, %v3232
  %v3489 = vpack.c.b16 %v3233, %v3233
  %v3490 = vpack.c.b16 %v3234, %v3234
  %v3491 = vpack.c.b16 %v3235, %v3235
  %v3492 = vpack.c.b16 %v3236, %v3236
  %v3493 = vpack.c.b16 %v3237, %v3237
  %v3494 = vpack.c.b16 %v3238, %v3238
  %v3495 = vpack.c.b16 %v3239, %v3239
  %v3496 = vpack.c.b16 %v3240, %v3240
  %v3497 = vpack.c.b16 %v3241, %v3241
  %v3498 = vpack.c.b16 %v3242, %v3242
  %v3499 = vpack.c.b16 %v3243, %v3243
  %v3500 = vpack.c.b16 %v3244, %v3244
  %v3501 = vpack.c.b16 %v3245, %v3245
  %v3502 = vpack.c.b16 %v3246, %v3246
  %v3503 = vpack.c.b16 %v3247, %v3247
  %v3504 = vpack.c.b16 %v3248, %v3248
  %v3505 = vpack.c.b16 %v3249, %v3249
  %v3506 = vpack.c.b16 %v3250, %v3250
  %v3507 = vpack.c.b16 %v3251, %v3251
  %v3508 = vpack.c.b16 %v3252, %v3252
  %v3509 = vpack.c.b16 %v3253, %v3253
  %v3510 = vpack.c.b16 %v3254, %v3254
  %v3511 = vpack.c.b16 %v3255, %v3255
  %v3512 = vpack.c.b16 %v3256, %v3256
  %v3513 = vpack.c.b16 %v3257, %v3257
  %v3514 = vpack.c.b16 %v3258, %v3258
  %v3515 = vpack.c.b16 %v3259, %v3259
  %v3516 = vpack.c.b16 %v3260, %v3260
  %v3517 = vpack.c.b16 %v3261, %v3261
  %v3518 = vpack.c.b16 %v3262, %v3262
  %v3519 = vpack.c.b16 %v3263, %v3263
  %v3520 = vpack.c.b16 %v3264, %v3264
  %v3521 = vpack.c.b16 %v3265, %v3265
  %v3522 = vpack.c.b16 %v3266, %v3266
  %v3523 = vpack.c.b16 %v3267, %v3267
  %v3524 = vpack.c.b16 %v3268, %v3268
  %v3525 = vpack.c.b16 %v3269, %v3269
  %v3526 = vpack.c.b16 %v3270, %v3270
  %v3527 = vpack.c.b16 %v3271, %v3271
  %v3528 = vpack.c.b16 %v3272, %v3272
  %v3529 = vpack.c.b16 %v3273, %v3273
  %v3530 = vpack.c.b16 %v3274, %v3274
  %v3531 = vpack.c.b16 %v3275, %v3275
  %v3532 = vpack.c.b16 %v3276, %v3276
  %v3533 = vpack.c.b16 %v3277, %v3277
  %v3534 = vpack.c.b16 %v3278, %v3278
  %v3535 = vpack.c.b16 %v3279, %v3279
  %v3536 = vpack.c.b16 %v3280, %v3280
  %v3537 = vpack.c.b16 %v3281, %v3281
  %v3538 = vpack.c.b16 %v3282, %v3282
  %v3539 = vpack.c.b16 %v3283, %v3283
  %v3540 = vpack.c.b16 %v3284, %v3284
  %v3541 = vpack.c.b16 %v3285, %v3285
  %v3542 = vpack.c.b16 %v3286, %v3286
  %v3543 = vpack.c.b16 %v3287, %v3287
  %v3544 = vpack.c.b16 %v3288, %v3288
  %v3545 = vpack.c.b16 %v3289, %v3289
  %v3546 = vpack.c.b16 %v3290, %v3290
  %v3547 = vpack.c.b16 %v3291, %v3291
  %v3548 = vpack.c.b16 %v3292, %v3292
  %v3549 = vpack.c.b16 %v3293, %v3293
  %v3550 = vpack.c.b16 %v3294, %v3294
  %v3551 = vpack.c.b16 %v3295, %v3295
  %v3552 = vpack.c.b16 %v3296, %v3296
  %v3553 = vpack.c.b16 %v3297, %v3297
  %v3554 = vpack.c.b16 %v3298, %v3298
  %v3555 = vpack.c.b16 %v3299, %v3299
  %v3556 = vpack.c.b16 %v3300, %v3300
  %v3557 = vpack.c.b16 %v3301, %v3301
  %v3558 = vpack.c.b16 %v3302, %v3302
  %v3559 = vpack.c.b16 %v3303, %v3303
  %v3560 = vpack.c.b16 %v3304, %v3304
  %v3561 = vpack.c.b16 %v3305, %v3305
  %v3562 = vpack.c.b16 %v3306, %v3306
  %v3563 = vpack.c.b16 %v3307, %v3307
  %v3564 = vpack.c.b16 %v3308, %v3308
  %v3565 = vpack.c.b16 %v3309, %v3309
  %v3566 = vpack.c.b16 %v3310, %v3310
  %v3567 = vpack.c.b16 %v3311, %v3311
  %v3568 = vpack.c.b16 %v3312, %v3312
  %v3569 = vpack.c.b16 %v3313, %v3313
  %v3570 = vpack.c.b16 %v3314, %v3314
  %v3571 = vpack.c.b16 %v3315, %v3315
  %v3572 = vpack.c.b16 %v3316, %v3316
  %v3573 = vpack.c.b16 %v3317, %v3317
  %v3574 = vpack.c.b16 %v3318, %v3318
  %v3575 = vpack.c.b16 %v3319, %v3319
  %v3576 = vpack.c.b16 %v3320, %v3320
  %v3577 = vpack.c.b16 %v3321, %v3321
  %v3578 = vpack.c.b16 %v3322, %v3322
  %v3579 = vpack.c.b16 %v3323, %v3323
  %v3580 = vpack.c.b16 %v3324, %v3324
  %v3581 = vpack.c.b16 %v3325, %v3325
  %v3582 = vpack.c.b16 %v3326, %v3326
  %v3583 = vpack.c.b16 %v3327, %v3327
  %v3584 = vpack.c.b16 %v3328, %v3328
  %v3585 = vpack.c.b16 %v3329, %v3329
  %v3586 = vpack.c.b16 %v3330, %v3330
  %v3587 = vpack.c.b16 %v3331, %v3331
  %v3588 = vpack.c.b16 %v3332, %v3332
  %v3589 = vpack.c.b16 %v3333, %v3333
  %v3590 = vpack.c.b16 %v3334, %v3334
  %v3591 = vpack.c.b16 %v3335, %v3335
  %v3592 = vpack.c.b16 %v3336, %v3336
  %v3593 = vpack.c.b16 %v3337, %v3337
  %v3594 = vpack.c.b16 %v3338, %v3338
  %v3595 = vpack.c.b16 %v3339, %v3339
  %v3596 = vpack.c.b16 %v3340, %v3340
  %v3597 = vpack.c.b16 %v3341, %v3341
  %v3598 = vpack.c.b16 %v3342, %v3342
  %v3599 = vpack.c.b16 %v3343, %v3343
  %v3600 = vpack.c.b16 %v3344, %v3344
  %v3601 = vpack.c.b16 %v3345, %v3345
  %v3602 = vpack.c.b16 %v3346, %v3346
  %v3603 = vpack.c.b16 %v3347, %v3347
  %v3604 = vpack.c.b16 %v3348, %v3348
  %v3605 = vpack.c.b16 %v3349, %v3349
  %v3606 = vpack.c.b16 %v3350, %v3350
  %v3607 = vpack.c.b16 %v3351, %v3351
  %v3608 = vpack.c.b16 %v3352, %v3352
  %v3609 = vpack.c.b16 %v3353, %v3353
  %v3610 = vpack.c.b16 %v3354, %v3354
  %v3611 = vpack.c.b16 %v3355, %v3355
  %v3612 = vpack.c.b16 %v3356, %v3356
  %v3613 = vpack.c.b16 %v3357, %v3357
  %v3614 = vpack.c.b16 %v3358, %v3358
  %v3615 = vpack.c.b16 %v3359, %v3359
  %v3616 = vpack.c.b16 %v3360, %v3360
  %v3617 = vpack.c.b16 %v3361, %v3361
  %v3618 = vpack.c.b16 %v3362, %v3362
  %v3619 = vpack.c.b16 %v3363, %v3363
  %v3620 = vpack.c.b16 %v3364, %v3364
  %v3621 = vpack.c.b16 %v3365, %v3365
  %v3622 = vpack.c.b16 %v3366, %v3366
  %v3623 = vpack.c.b16 %v3367, %v3367
  %v3624 = vpack.c.b16 %v3368, %v3368
  %v3625 = vpack.c.b16 %v3369, %v3369
  %v3626 = vpack.c.b16 %v3370, %v3370
  %v3627 = vpack.c.b16 %v3371, %v3371
  %v3628 = vpack.c.b16 %v3372, %v3372
  %v3629 = vpack.c.b16 %v3373, %v3373
  %v3630 = vpack.c.b16 %v3374, %v3374
  %v3631 = vpack.c.b16 %v3375, %v3375
  %v3632 = vpack.c.b16 %v3376, %v3376
  %v3633 = vpack.c.b16 %v3377, %v3377
  %v3634 = vpack.c.b16 %v3378, %v3378
  %v3635 = vpack.c.b16 %v3379, %v3379
  %v3636 = vpack.c.b16 %v3380, %v3380
  %v3637 = vpack.c.b16 %v3381, %v3381
  %v3638 = vpack.c.b16 %v3382, %v3382
  %v3639 = vpack.c.b16 %v3383, %v3383
  %v3640 = vpack.c.b16 %v3384, %v3384
  %v3641 = vpack.c.b16 %v3385, %v3385
  %v3642 = vpack.c.b16 %v3386, %v3386
  %v3643 = vpack.c.b16 %v3387, %v3387
  %v3644 = vpack.c.b16 %v3388, %v3388
  %v3645 = vpack.c.b16 %v3389, %v3389
  %v3646 = vpack.c.b16 %v3390, %v3390
  %v3647 = vpack.c.b16 %v3391, %v3391
  %v3648 = vpack.c.b16 %v3392, %v3392
  %v3649 = vpack.c.b16 %v3393, %v3393
  %v3650 = vpack.c.b16 %v3394, %v3394
  %v3651 = vpack.c.b16 %v3395, %v3395
  %v3652 = vpack.c.b16 %v3396, %v3396
  %v3653 = vpack.c.b16 %v3397, %v3397
  %v3654 = vpack.c.b16 %v3398, %v3398
  %3911 = vst [vmem:[%s4] sm:$0xf] %v3399
  %3912 = vst [vmem:[%s4 + $0x4] sm:$0xf] %v3400
  %3913 = vst [vmem:[%s4 + $0x8] sm:$0xf] %v3401
  %3914 = vst [vmem:[%s4 + $0xc] sm:$0xf] %v3402
  %3915 = vst [vmem:[%s4 + $0x10] sm:$0xf] %v3403
  %3916 = vst [vmem:[%s4 + $0x14] sm:$0xf] %v3404
  %3917 = vst [vmem:[%s4 + $0x18] sm:$0xf] %v3405
  %3918 = vst [vmem:[%s4 + $0x1c] sm:$0xf] %v3406
  %3919 = vst [vmem:[%s4 + $0x20] sm:$0xf] %v3407
  %3920 = vst [vmem:[%s4 + $0x24] sm:$0xf] %v3408
  %3921 = vst [vmem:[%s4 + $0x28] sm:$0xf] %v3409
  %3922 = vst [vmem:[%s4 + $0x2c] sm:$0xf] %v3410
  %3923 = vst [vmem:[%s4 + $0x30] sm:$0xf] %v3411
  %3924 = vst [vmem:[%s4 + $0x34] sm:$0xf] %v3412
  %3925 = vst [vmem:[%s4 + $0x38] sm:$0xf] %v3413
  %3926 = vst [vmem:[%s4 + $0x3c] sm:$0xf] %v3414
  %3927 = vst [vmem:[%s4 + $0x40] sm:$0xf] %v3415
  %3928 = vst [vmem:[%s4 + $0x44] sm:$0xf] %v3416
  %3929 = vst [vmem:[%s4 + $0x48] sm:$0xf] %v3417
  %3930 = vst [vmem:[%s4 + $0x4c] sm:$0xf] %v3418
  %3931 = vst [vmem:[%s4 + $0x50] sm:$0xf] %v3419
  %3932 = vst [vmem:[%s4 + $0x54] sm:$0xf] %v3420
  %3933 = vst [vmem:[%s4 + $0x58] sm:$0xf] %v3421
  %3934 = vst [vmem:[%s4 + $0x5c] sm:$0xf] %v3422
  %3935 = vst [vmem:[%s4 + $0x60] sm:$0xf] %v3423
  %3936 = vst [vmem:[%s4 + $0x64] sm:$0xf] %v3424
  %3937 = vst [vmem:[%s4 + $0x68] sm:$0xf] %v3425
  %3938 = vst [vmem:[%s4 + $0x6c] sm:$0xf] %v3426
  %3939 = vst [vmem:[%s4 + $0x70] sm:$0xf] %v3427
  %3940 = vst [vmem:[%s4 + $0x74] sm:$0xf] %v3428
  %3941 = vst [vmem:[%s4 + $0x78] sm:$0xf] %v3429
  %3942 = vst [vmem:[%s4 + $0x7c] sm:$0xf] %v3430
  %3943 = vst [vmem:[%s4 + $0x80] sm:$0xf] %v3431
  %3944 = vst [vmem:[%s4 + $0x84] sm:$0xf] %v3432
  %3945 = vst [vmem:[%s4 + $0x88] sm:$0xf] %v3433
  %3946 = vst [vmem:[%s4 + $0x8c] sm:$0xf] %v3434
  %3947 = vst [vmem:[%s4 + $0x90] sm:$0xf] %v3435
  %3948 = vst [vmem:[%s4 + $0x94] sm:$0xf] %v3436
  %3949 = vst [vmem:[%s4 + $0x98] sm:$0xf] %v3437
  %3950 = vst [vmem:[%s4 + $0x9c] sm:$0xf] %v3438
  %3951 = vst [vmem:[%s4 + $0xa0] sm:$0xf] %v3439
  %3952 = vst [vmem:[%s4 + $0xa4] sm:$0xf] %v3440
  %3953 = vst [vmem:[%s4 + $0xa8] sm:$0xf] %v3441
  %3954 = vst [vmem:[%s4 + $0xac] sm:$0xf] %v3442
  %3955 = vst [vmem:[%s4 + $0xb0] sm:$0xf] %v3443
  %3956 = vst [vmem:[%s4 + $0xb4] sm:$0xf] %v3444
  %3957 = vst [vmem:[%s4 + $0xb8] sm:$0xf] %v3445
  %3958 = vst [vmem:[%s4 + $0xbc] sm:$0xf] %v3446
  %3959 = vst [vmem:[%s4 + $0xc0] sm:$0xf] %v3447
  %3960 = vst [vmem:[%s4 + $0xc4] sm:$0xf] %v3448
  %3961 = vst [vmem:[%s4 + $0xc8] sm:$0xf] %v3449
  %3962 = vst [vmem:[%s4 + $0xcc] sm:$0xf] %v3450
  %3963 = vst [vmem:[%s4 + $0xd0] sm:$0xf] %v3451
  %3964 = vst [vmem:[%s4 + $0xd4] sm:$0xf] %v3452
  %3965 = vst [vmem:[%s4 + $0xd8] sm:$0xf] %v3453
  %3966 = vst [vmem:[%s4 + $0xdc] sm:$0xf] %v3454
  %3967 = vst [vmem:[%s4 + $0xe0] sm:$0xf] %v3455
  %3968 = vst [vmem:[%s4 + $0xe4] sm:$0xf] %v3456
  %3969 = vst [vmem:[%s4 + $0xe8] sm:$0xf] %v3457
  %3970 = vst [vmem:[%s4 + $0xec] sm:$0xf] %v3458
  %3971 = vst [vmem:[%s4 + $0xf0] sm:$0xf] %v3459
  %3972 = vst [vmem:[%s4 + $0xf4] sm:$0xf] %v3460
  %3973 = vst [vmem:[%s4 + $0xf8] sm:$0xf] %v3461
  %3974 = vst [vmem:[%s4 + $0xfc] sm:$0xf] %v3462
  %3975 = vst [vmem:[%s4 + $0x100] sm:$0xf] %v3463
  %3976 = vst [vmem:[%s4 + $0x104] sm:$0xf] %v3464
  %3977 = vst [vmem:[%s4 + $0x108] sm:$0xf] %v3465
  %3978 = vst [vmem:[%s4 + $0x10c] sm:$0xf] %v3466
  %3979 = vst [vmem:[%s4 + $0x110] sm:$0xf] %v3467
  %3980 = vst [vmem:[%s4 + $0x114] sm:$0xf] %v3468
  %3981 = vst [vmem:[%s4 + $0x118] sm:$0xf] %v3469
  %3982 = vst [vmem:[%s4 + $0x11c] sm:$0xf] %v3470
  %3983 = vst [vmem:[%s4 + $0x120] sm:$0xf] %v3471
  %3984 = vst [vmem:[%s4 + $0x124] sm:$0xf] %v3472
  %3985 = vst [vmem:[%s4 + $0x128] sm:$0xf] %v3473
  %3986 = vst [vmem:[%s4 + $0x12c] sm:$0xf] %v3474
  %3987 = vst [vmem:[%s4 + $0x130] sm:$0xf] %v3475
  %3988 = vst [vmem:[%s4 + $0x134] sm:$0xf] %v3476
  %3989 = vst [vmem:[%s4 + $0x138] sm:$0xf] %v3477
  %3990 = vst [vmem:[%s4 + $0x13c] sm:$0xf] %v3478
  %3991 = vst [vmem:[%s4 + $0x140] sm:$0xf] %v3479
  %3992 = vst [vmem:[%s4 + $0x144] sm:$0xf] %v3480
  %3993 = vst [vmem:[%s4 + $0x148] sm:$0xf] %v3481
  %3994 = vst [vmem:[%s4 + $0x14c] sm:$0xf] %v3482
  %3995 = vst [vmem:[%s4 + $0x150] sm:$0xf] %v3483
  %3996 = vst [vmem:[%s4 + $0x154] sm:$0xf] %v3484
  %3997 = vst [vmem:[%s4 + $0x158] sm:$0xf] %v3485
  %3998 = vst [vmem:[%s4 + $0x15c] sm:$0xf] %v3486
  %3999 = vst [vmem:[%s4 + $0x160] sm:$0xf] %v3487
  %4000 = vst [vmem:[%s4 + $0x164] sm:$0xf] %v3488
  %4001 = vst [vmem:[%s4 + $0x168] sm:$0xf] %v3489
  %4002 = vst [vmem:[%s4 + $0x16c] sm:$0xf] %v3490
  %4003 = vst [vmem:[%s4 + $0x170] sm:$0xf] %v3491
  %4004 = vst [vmem:[%s4 + $0x174] sm:$0xf] %v3492
  %4005 = vst [vmem:[%s4 + $0x178] sm:$0xf] %v3493
  %4006 = vst [vmem:[%s4 + $0x17c] sm:$0xf] %v3494
  %4007 = vst [vmem:[%s4 + $0x180] sm:$0xf] %v3495
  %4008 = vst [vmem:[%s4 + $0x184] sm:$0xf] %v3496
  %4009 = vst [vmem:[%s4 + $0x188] sm:$0xf] %v3497
  %4010 = vst [vmem:[%s4 + $0x18c] sm:$0xf] %v3498
  %4011 = vst [vmem:[%s4 + $0x190] sm:$0xf] %v3499
  %4012 = vst [vmem:[%s4 + $0x194] sm:$0xf] %v3500
  %4013 = vst [vmem:[%s4 + $0x198] sm:$0xf] %v3501
  %4014 = vst [vmem:[%s4 + $0x19c] sm:$0xf] %v3502
  %4015 = vst [vmem:[%s4 + $0x1a0] sm:$0xf] %v3503
  %4016 = vst [vmem:[%s4 + $0x1a4] sm:$0xf] %v3504
  %4017 = vst [vmem:[%s4 + $0x1a8] sm:$0xf] %v3505
  %4018 = vst [vmem:[%s4 + $0x1ac] sm:$0xf] %v3506
  %4019 = vst [vmem:[%s4 + $0x1b0] sm:$0xf] %v3507
  %4020 = vst [vmem:[%s4 + $0x1b4] sm:$0xf] %v3508
  %4021 = vst [vmem:[%s4 + $0x1b8] sm:$0xf] %v3509
  %4022 = vst [vmem:[%s4 + $0x1bc] sm:$0xf] %v3510
  %4023 = vst [vmem:[%s4 + $0x1c0] sm:$0xf] %v3511
  %4024 = vst [vmem:[%s4 + $0x1c4] sm:$0xf] %v3512
  %4025 = vst [vmem:[%s4 + $0x1c8] sm:$0xf] %v3513
  %4026 = vst [vmem:[%s4 + $0x1cc] sm:$0xf] %v3514
  %4027 = vst [vmem:[%s4 + $0x1d0] sm:$0xf] %v3515
  %4028 = vst [vmem:[%s4 + $0x1d4] sm:$0xf] %v3516
  %4029 = vst [vmem:[%s4 + $0x1d8] sm:$0xf] %v3517
  %4030 = vst [vmem:[%s4 + $0x1dc] sm:$0xf] %v3518
  %4031 = vst [vmem:[%s4 + $0x1e0] sm:$0xf] %v3519
  %4032 = vst [vmem:[%s4 + $0x1e4] sm:$0xf] %v3520
  %4033 = vst [vmem:[%s4 + $0x1e8] sm:$0xf] %v3521
  %4034 = vst [vmem:[%s4 + $0x1ec] sm:$0xf] %v3522
  %4035 = vst [vmem:[%s4 + $0x1f0] sm:$0xf] %v3523
  %4036 = vst [vmem:[%s4 + $0x1f4] sm:$0xf] %v3524
  %4037 = vst [vmem:[%s4 + $0x1f8] sm:$0xf] %v3525
  %4038 = vst [vmem:[%s4 + $0x1fc] sm:$0xf] %v3526
  %4039 = vst [vmem:[%s4 + $0x200] sm:$0xf] %v3527
  %4040 = vst [vmem:[%s4 + $0x204] sm:$0xf] %v3528
  %4041 = vst [vmem:[%s4 + $0x208] sm:$0xf] %v3529
  %4042 = vst [vmem:[%s4 + $0x20c] sm:$0xf] %v3530
  %4043 = vst [vmem:[%s4 + $0x210] sm:$0xf] %v3531
  %4044 = vst [vmem:[%s4 + $0x214] sm:$0xf] %v3532
  %4045 = vst [vmem:[%s4 + $0x218] sm:$0xf] %v3533
  %4046 = vst [vmem:[%s4 + $0x21c] sm:$0xf] %v3534
  %4047 = vst [vmem:[%s4 + $0x220] sm:$0xf] %v3535
  %4048 = vst [vmem:[%s4 + $0x224] sm:$0xf] %v3536
  %4049 = vst [vmem:[%s4 + $0x228] sm:$0xf] %v3537
  %4050 = vst [vmem:[%s4 + $0x22c] sm:$0xf] %v3538
  %4051 = vst [vmem:[%s4 + $0x230] sm:$0xf] %v3539
  %4052 = vst [vmem:[%s4 + $0x234] sm:$0xf] %v3540
  %4053 = vst [vmem:[%s4 + $0x238] sm:$0xf] %v3541
  %4054 = vst [vmem:[%s4 + $0x23c] sm:$0xf] %v3542
  %4055 = vst [vmem:[%s4 + $0x240] sm:$0xf] %v3543
  %4056 = vst [vmem:[%s4 + $0x244] sm:$0xf] %v3544
  %4057 = vst [vmem:[%s4 + $0x248] sm:$0xf] %v3545
  %4058 = vst [vmem:[%s4 + $0x24c] sm:$0xf] %v3546
  %4059 = vst [vmem:[%s4 + $0x250] sm:$0xf] %v3547
  %4060 = vst [vmem:[%s4 + $0x254] sm:$0xf] %v3548
  %4061 = vst [vmem:[%s4 + $0x258] sm:$0xf] %v3549
  %4062 = vst [vmem:[%s4 + $0x25c] sm:$0xf] %v3550
  %4063 = vst [vmem:[%s4 + $0x260] sm:$0xf] %v3551
  %4064 = vst [vmem:[%s4 + $0x264] sm:$0xf] %v3552
  %4065 = vst [vmem:[%s4 + $0x268] sm:$0xf] %v3553
  %4066 = vst [vmem:[%s4 + $0x26c] sm:$0xf] %v3554
  %4067 = vst [vmem:[%s4 + $0x270] sm:$0xf] %v3555
  %4068 = vst [vmem:[%s4 + $0x274] sm:$0xf] %v3556
  %4069 = vst [vmem:[%s4 + $0x278] sm:$0xf] %v3557
  %4070 = vst [vmem:[%s4 + $0x27c] sm:$0xf] %v3558
  %4071 = vst [vmem:[%s4 + $0x280] sm:$0xf] %v3559
  %4072 = vst [vmem:[%s4 + $0x284] sm:$0xf] %v3560
  %4073 = vst [vmem:[%s4 + $0x288] sm:$0xf] %v3561
  %4074 = vst [vmem:[%s4 + $0x28c] sm:$0xf] %v3562
  %4075 = vst [vmem:[%s4 + $0x290] sm:$0xf] %v3563
  %4076 = vst [vmem:[%s4 + $0x294] sm:$0xf] %v3564
  %4077 = vst [vmem:[%s4 + $0x298] sm:$0xf] %v3565
  %4078 = vst [vmem:[%s4 + $0x29c] sm:$0xf] %v3566
  %4079 = vst [vmem:[%s4 + $0x2a0] sm:$0xf] %v3567
  %4080 = vst [vmem:[%s4 + $0x2a4] sm:$0xf] %v3568
  %4081 = vst [vmem:[%s4 + $0x2a8] sm:$0xf] %v3569
  %4082 = vst [vmem:[%s4 + $0x2ac] sm:$0xf] %v3570
  %4083 = vst [vmem:[%s4 + $0x2b0] sm:$0xf] %v3571
  %4084 = vst [vmem:[%s4 + $0x2b4] sm:$0xf] %v3572
  %4085 = vst [vmem:[%s4 + $0x2b8] sm:$0xf] %v3573
  %4086 = vst [vmem:[%s4 + $0x2bc] sm:$0xf] %v3574
  %4087 = vst [vmem:[%s4 + $0x2c0] sm:$0xf] %v3575
  %4088 = vst [vmem:[%s4 + $0x2c4] sm:$0xf] %v3576
  %4089 = vst [vmem:[%s4 + $0x2c8] sm:$0xf] %v3577
  %4090 = vst [vmem:[%s4 + $0x2cc] sm:$0xf] %v3578
  %4091 = vst [vmem:[%s4 + $0x2d0] sm:$0xf] %v3579
  %4092 = vst [vmem:[%s4 + $0x2d4] sm:$0xf] %v3580
  %4093 = vst [vmem:[%s4 + $0x2d8] sm:$0xf] %v3581
  %4094 = vst [vmem:[%s4 + $0x2dc] sm:$0xf] %v3582
  %4095 = vst [vmem:[%s4 + $0x2e0] sm:$0xf] %v3583
  %4096 = vst [vmem:[%s4 + $0x2e4] sm:$0xf] %v3584
  %4097 = vst [vmem:[%s4 + $0x2e8] sm:$0xf] %v3585
  %4098 = vst [vmem:[%s4 + $0x2ec] sm:$0xf] %v3586
  %4099 = vst [vmem:[%s4 + $0x2f0] sm:$0xf] %v3587
  %4100 = vst [vmem:[%s4 + $0x2f4] sm:$0xf] %v3588
  %4101 = vst [vmem:[%s4 + $0x2f8] sm:$0xf] %v3589
  %4102 = vst [vmem:[%s4 + $0x2fc] sm:$0xf] %v3590
  %4103 = vst [vmem:[%s4 + $0x300] sm:$0xf] %v3591
  %4104 = vst [vmem:[%s4 + $0x304] sm:$0xf] %v3592
  %4105 = vst [vmem:[%s4 + $0x308] sm:$0xf] %v3593
  %4106 = vst [vmem:[%s4 + $0x30c] sm:$0xf] %v3594
  %4107 = vst [vmem:[%s4 + $0x310] sm:$0xf] %v3595
  %4108 = vst [vmem:[%s4 + $0x314] sm:$0xf] %v3596
  %4109 = vst [vmem:[%s4 + $0x318] sm:$0xf] %v3597
  %4110 = vst [vmem:[%s4 + $0x31c] sm:$0xf] %v3598
  %4111 = vst [vmem:[%s4 + $0x320] sm:$0xf] %v3599
  %4112 = vst [vmem:[%s4 + $0x324] sm:$0xf] %v3600
  %4113 = vst [vmem:[%s4 + $0x328] sm:$0xf] %v3601
  %4114 = vst [vmem:[%s4 + $0x32c] sm:$0xf] %v3602
  %4115 = vst [vmem:[%s4 + $0x330] sm:$0xf] %v3603
  %4116 = vst [vmem:[%s4 + $0x334] sm:$0xf] %v3604
  %4117 = vst [vmem:[%s4 + $0x338] sm:$0xf] %v3605
  %4118 = vst [vmem:[%s4 + $0x33c] sm:$0xf] %v3606
  %4119 = vst [vmem:[%s4 + $0x340] sm:$0xf] %v3607
  %4120 = vst [vmem:[%s4 + $0x344] sm:$0xf] %v3608
  %4121 = vst [vmem:[%s4 + $0x348] sm:$0xf] %v3609
  %4122 = vst [vmem:[%s4 + $0x34c] sm:$0xf] %v3610
  %4123 = vst [vmem:[%s4 + $0x350] sm:$0xf] %v3611
  %4124 = vst [vmem:[%s4 + $0x354] sm:$0xf] %v3612
  %4125 = vst [vmem:[%s4 + $0x358] sm:$0xf] %v3613
  %4126 = vst [vmem:[%s4 + $0x35c] sm:$0xf] %v3614
  %4127 = vst [vmem:[%s4 + $0x360] sm:$0xf] %v3615
  %4128 = vst [vmem:[%s4 + $0x364] sm:$0xf] %v3616
  %4129 = vst [vmem:[%s4 + $0x368] sm:$0xf] %v3617
  %4130 = vst [vmem:[%s4 + $0x36c] sm:$0xf] %v3618
  %4131 = vst [vmem:[%s4 + $0x370] sm:$0xf] %v3619
  %4132 = vst [vmem:[%s4 + $0x374] sm:$0xf] %v3620
  %4133 = vst [vmem:[%s4 + $0x378] sm:$0xf] %v3621
  %4134 = vst [vmem:[%s4 + $0x37c] sm:$0xf] %v3622
  %4135 = vst [vmem:[%s4 + $0x380] sm:$0xf] %v3623
  %4136 = vst [vmem:[%s4 + $0x384] sm:$0xf] %v3624
  %4137 = vst [vmem:[%s4 + $0x388] sm:$0xf] %v3625
  %4138 = vst [vmem:[%s4 + $0x38c] sm:$0xf] %v3626
  %4139 = vst [vmem:[%s4 + $0x390] sm:$0xf] %v3627
  %4140 = vst [vmem:[%s4 + $0x394] sm:$0xf] %v3628
  %4141 = vst [vmem:[%s4 + $0x398] sm:$0xf] %v3629
  %4142 = vst [vmem:[%s4 + $0x39c] sm:$0xf] %v3630
  %4143 = vst [vmem:[%s4 + $0x3a0] sm:$0xf] %v3631
  %4144 = vst [vmem:[%s4 + $0x3a4] sm:$0xf] %v3632
  %4145 = vst [vmem:[%s4 + $0x3a8] sm:$0xf] %v3633
  %4146 = vst [vmem:[%s4 + $0x3ac] sm:$0xf] %v3634
  %4147 = vst [vmem:[%s4 + $0x3b0] sm:$0xf] %v3635
  %4148 = vst [vmem:[%s4 + $0x3b4] sm:$0xf] %v3636
  %4149 = vst [vmem:[%s4 + $0x3b8] sm:$0xf] %v3637
  %4150 = vst [vmem:[%s4 + $0x3bc] sm:$0xf] %v3638
  %4151 = vst [vmem:[%s4 + $0x3c0] sm:$0xf] %v3639
  %4152 = vst [vmem:[%s4 + $0x3c4] sm:$0xf] %v3640
  %4153 = vst [vmem:[%s4 + $0x3c8] sm:$0xf] %v3641
  %4154 = vst [vmem:[%s4 + $0x3cc] sm:$0xf] %v3642
  %4155 = vst [vmem:[%s4 + $0x3d0] sm:$0xf] %v3643
  %4156 = vst [vmem:[%s4 + $0x3d4] sm:$0xf] %v3644
  %4157 = vst [vmem:[%s4 + $0x3d8] sm:$0xf] %v3645
  %4158 = vst [vmem:[%s4 + $0x3dc] sm:$0xf] %v3646
  %4159 = vst [vmem:[%s4 + $0x3e0] sm:$0xf] %v3647
  %4160 = vst [vmem:[%s4 + $0x3e4] sm:$0xf] %v3648
  %4161 = vst [vmem:[%s4 + $0x3e8] sm:$0xf] %v3649
  %4162 = vst [vmem:[%s4 + $0x3ec] sm:$0xf] %v3650
  %4163 = vst [vmem:[%s4 + $0x3f0] sm:$0xf] %v3651
  %4164 = vst [vmem:[%s4 + $0x3f4] sm:$0xf] %v3652
  %4165 = vst [vmem:[%s4 + $0x3f8] sm:$0xf] %v3653
  %4166 = vst [vmem:[%s4 + $0x3fc] sm:$0xf] %v3654
  // Predicated region
  $region18: #{generator_forward.9} parent=0 // pred_check
    _
  $region19: #{generator_forward.9} parent=0 // pred_check_branch
    %4168 = sbr.rel (0) target = $region21
  $region20: #{generator_forward.9} parent=0 // pred_region
    _
  $region21: #{generator_forward.9} parent=0 // pred_fallthru
    _
  // Predicated region
  $region22: #{generator_forward.9} parent=0 // pred_check
    _
  $region23: #{generator_forward.9} parent=0 // pred_check_branch
    %4170 = sbr.rel (0) target = $region25
  $region24: #{generator_forward.9} parent=0 // pred_region
    _
  $region25: #{generator_forward.9} parent=0 // pred_fallthru
    _

</llo_original>
